<compile_context>
chip_gen: v7x
topology: tpu7x:2x2x1
jax: 0.10.0
libtpu: 0.0.40
codegen_flags: <defaults>
</compile_context>

<pallas_src>
import functools

import jax
import jax.numpy as jnp
from jax import lax
from jax.experimental import pallas as pl
from jax.experimental.pallas import tpu as pltpu

_EPS = 1e-5
_LANE = 128


def _round_up(x, m):
    return (x + m - 1) // m * m


def _wide_basic_kernel(*refs, has_proj, stride, Ho, Wo):
    """One batch element per grid step.

    refs = (x, bn1_scale, bn1_bias, w1, bn2_scale, bn2_bias, w2,
            [proj_w, proj_b,]  out,  pad1_scratch, pad2_scratch)
    """
    if has_proj:
        (x_ref, s1_ref, b1_ref, w1_ref, s2_ref, b2_ref, w2_ref,
         ws_ref, bs_ref, o_ref, pad1_ref, pad2_ref) = refs
    else:
        (x_ref, s1_ref, b1_ref, w1_ref, s2_ref, b2_ref, w2_ref,
         o_ref, pad1_ref, pad2_ref) = refs
        ws_ref = bs_ref = None

    _, H, W, Ci = x_ref.shape
    Co = w2_ref.shape[-1]

    def dot_bf16(a, b):
        # bf16 MXU inputs, f32 accumulation (no Precision.HIGHEST multi-pass).
        return jnp.dot(a.astype(jnp.bfloat16), b,
                       preferred_element_type=jnp.float32)

    # ---- zero only the 1-element halo border (perimeter, not full buffer) ----
    # Interior is fully overwritten below; done per-step for megacore safety.
    pad1_ref[0:1, :, :] = jnp.zeros((1, W + 2, Ci), jnp.float32)
    pad1_ref[H + 1:H + 2, :, :] = jnp.zeros((1, W + 2, Ci), jnp.float32)
    pad1_ref[:, 0:1, :] = jnp.zeros((H + 2, 1, Ci), jnp.float32)
    pad1_ref[:, W + 1:W + 2, :] = jnp.zeros((H + 2, 1, Ci), jnp.float32)
    pad2_ref[0:1, :, :] = jnp.zeros((1, W + 2, Co), jnp.float32)
    pad2_ref[H + 1:H + 2, :, :] = jnp.zeros((1, W + 2, Co), jnp.float32)
    pad2_ref[:, 0:1, :] = jnp.zeros((H + 2, 1, Co), jnp.float32)
    pad2_ref[:, W + 1:W + 2, :] = jnp.zeros((H + 2, 1, Co), jnp.float32)

    # ---- BN1 (folded affine) + ReLU, f32 on the VPU ------------------------
    x = x_ref[0]                                             # (H, W, Ci) f32
    h1 = jnp.maximum(x * s1_ref[0] + b1_ref[0], 0.0)
    pad1_ref[1:H + 1, 1:W + 1, :] = h1

    # ---- conv1: 3x3, pad=1, stride=1 ---------------------------------------
    # One band load per kh; the 3 kw taps are folded into K (K = 3*Ci).
    acc1 = jnp.zeros((H * W, Co), jnp.float32)
    for kh in range(3):
        band = pad1_ref[kh:kh + H, :, :]                     # (H, W+2, Ci)
        patch = jnp.concatenate(
            [band[:, kw:kw + W, :] for kw in range(3)], axis=-1)   # (H, W, 3*Ci)
        acc1 = acc1 + dot_bf16(patch.reshape(H * W, 3 * Ci), w1_ref[kh])

    # TODO(synk): dropout is identity here (inference semantics).

    # ---- BN2 + ReLU fused into conv1 epilogue, written into pad2 interior ---
    h2 = jnp.maximum(acc1.reshape(H, W, Co) * s2_ref[0] + b2_ref[0], 0.0)
    pad2_ref[1:H + 1, 1:W + 1, :] = h2

    # ---- conv2: 3x3, pad=1, stride applied in-kernel ------------------------
    # Only strided output positions are computed (strided pl.ds reads).
    acc2 = jnp.zeros((Ho * Wo, Co), jnp.float32)
    for kh in range(3):
        if stride == 1:
            band2 = pad2_ref[kh:kh + H, :, :]                # (H, W+2, Co)
            patch2 = jnp.concatenate(
                [band2[:, kw:kw + W, :] for kw in range(3)], axis=-1)
        else:
            patch2 = jnp.concatenate(
                [pad2_ref[pl.ds(kh, Ho, stride), pl.ds(kw, Wo, stride), :]
                 for kw in range(3)], axis=-1)               # (Ho, Wo, 3*Co)
        acc2 = acc2 + dot_bf16(patch2.reshape(Ho * Wo, 3 * Co), w2_ref[kh])

    # ---- shortcut: 1x1 strided projection (+bias) or identity ---------------
    if has_proj:
        if stride == 1:
            x_sub = x
        else:
            x_sub = x_ref[:, pl.ds(0, Ho, stride), pl.ds(0, Wo, stride), :]
        sc = dot_bf16(x_sub.reshape(Ho * Wo, Ci), ws_ref[...]) + bs_ref[0]
    else:
        # identity shortcut: requires stride == 1 and Ci == Co (wrapper asserts)
        sc = x.reshape(H * W, Co)

    o_ref[0] = (acc2 + sc).reshape(Ho, Wo, Co)


def wide_basic_block_forward(x_nchw, params, stride=1):
    """Forward of WideBasicBlock. x_nchw: (N, Cin, H, W) f32 -> (N, Cp, Ho, Wo)."""
    x_nchw = x_nchw.astype(jnp.float32)
    N, Cin, H, W = x_nchw.shape

    g1, b1, m1, v1 = params["bn1"]
    g2, b2, m2, v2 = params["bn2"]
    w1 = params["w1"]                                   # (Cp, Cin, 3, 3) OIHW
    w2 = params["w2"]                                   # (Cp, Cp, 3, 3)
    Cp = w1.shape[0]
    has_proj = "ws" in params
    # Guard the identity-shortcut semantics (matches the PyTorch module).
    assert has_proj == (stride != 1 or Cin != Cp), \
        "projection shortcut must be present iff stride != 1 or in_planes != planes"

    Ci = _round_up(Cin, _LANE)                          # lane-dense channel pads
    Co = _round_up(Cp, _LANE)
    Ho = (H - 1) // stride + 1
    Wo = (W - 1) // stride + 1

    # NCHW -> NHWC, pad channels to the lane width (once, in the wrapper).
    x = jnp.transpose(x_nchw, (0, 2, 3, 1))
    x = jnp.pad(x, ((0, 0), (0, 0), (0, 0), (0, Ci - Cin)))

    # Fold BN (inference) into per-channel scale/bias, pad to lane width.
    inv1 = g1 / jnp.sqrt(v1 + _EPS)
    s1 = jnp.pad(inv1, (0, Ci - Cin)).reshape(1, Ci).astype(jnp.float32)
    o1 = jnp.pad(b1 - m1 * inv1, (0, Ci - Cin)).reshape(1, Ci).astype(jnp.float32)
    inv2 = g2 / jnp.sqrt(v2 + _EPS)
    s2 = jnp.pad(inv2, (0, Co - Cp)).reshape(1, Co).astype(jnp.float32)
    o2 = jnp.pad(b2 - m2 * inv2, (0, Co - Cp)).reshape(1, Co).astype(jnp.float32)

    # OIHW -> (kh, kw*Cin_pad + cin, cout): kw folded into K, zero-padded, bf16.
    def conv_w(w, cin, cin_pad, cout_pad):
        cout = w.shape[0]
        wt = jnp.transpose(w, (2, 3, 1, 0))             # (3, 3, cin, cout)
        wt = jnp.pad(wt, ((0, 0), (0, 0), (0, cin_pad - cin), (0, cout_pad - cout)))
        return wt.reshape(3, 3 * cin_pad, cout_pad).astype(jnp.bfloat16)

    w1k = conv_w(w1, Cin, Ci, Co)
    w2k = conv_w(w2, Cp, Co, Co)

    operands = [x, s1, o1, w1k, s2, o2, w2k]
    in_specs = [
        pl.BlockSpec((1, H, W, Ci), lambda b: (b, 0, 0, 0)),    # x
        pl.BlockSpec((1, Ci), lambda b: (0, 0)),                # bn1 scale
        pl.BlockSpec((1, Ci), lambda b: (0, 0)),                # bn1 bias
        pl.BlockSpec((3, 3 * Ci, Co), lambda b: (0, 0, 0)),     # conv1 w (bf16)
        pl.BlockSpec((1, Co), lambda b: (0, 0)),                # bn2 scale
        pl.BlockSpec((1, Co), lambda b: (0, 0)),                # bn2 bias
        pl.BlockSpec((3, 3 * Co, Co), lambda b: (0, 0, 0)),     # conv2 w (bf16)
    ]
    if has_proj:
        wsk = jnp.pad(params["ws"][:, :, 0, 0].T,
                      ((0, Ci - Cin), (0, Co - Cp))).astype(jnp.bfloat16)
        bsk = jnp.pad(params["bs"], (0, Co - Cp)).reshape(1, Co).astype(jnp.float32)
        operands += [wsk, bsk]
        in_specs += [pl.BlockSpec((Ci, Co), lambda b: (0, 0)),  # shortcut w
                     pl.BlockSpec((1, Co), lambda b: (0, 0))]   # shortcut b

    kernel = functools.partial(_wide_basic_kernel, has_proj=has_proj,
                               stride=stride, Ho=Ho, Wo=Wo)

    grid_spec = pltpu.PrefetchScalarGridSpec(
        num_scalar_prefetch=0,
        grid=(N,),
        in_specs=in_specs,
        out_specs=pl.BlockSpec((1, Ho, Wo, Co), lambda b: (b, 0, 0, 0)),
        scratch_shapes=[
            pltpu.VMEM((H + 2, W + 2, Ci), jnp.float32),        # padded act 1
            pltpu.VMEM((H + 2, W + 2, Co), jnp.float32),        # padded act 2
        ],
    )

    out = pl.pallas_call(
        kernel,
        out_shape=jax.ShapeDtypeStruct((N, Ho, Wo, Co), jnp.float32),
        grid_spec=grid_spec,
        compiler_params=pltpu.CompilerParams(
            dimension_semantics=("parallel",),
            vmem_limit_bytes=64 * 1024 * 1024,   # explicit VMEM budget (v7x-safe)
        ),
    )(*operands)

    out = out[:, :, :, :Cp]                                     # drop lane padding
    return jnp.transpose(out, (0, 3, 1, 2))                     # -> NCHW


# ----------------------------- pure-JAX reference -----------------------------
def _conv_nchw(x, w, stride, pad):
    return lax.conv_general_dilated(
        x, w, window_strides=(stride, stride),
        padding=((pad, pad), (pad, pad)),
        dimension_numbers=("NCHW", "OIHW", "NCHW"),
        precision=lax.Precision.HIGHEST)


def _bn_nchw(x, g, b, m, v):
    sh = (1, -1, 1, 1)
    return (x - m.reshape(sh)) / jnp.sqrt(v + _EPS).reshape(sh) * g.reshape(sh) \
        + b.reshape(sh)


def reference_forward(x, params, stride):
    h = jax.nn.relu(_bn_nchw(x, *params["bn1"]))
    h = _conv_nchw(h, params["w1"], 1, 1)
    h = jax.nn.relu(_bn_nchw(h, *params["bn2"]))
    h = _conv_nchw(h, params["w2"], stride, 1)
    if "ws" in params:
        sc = _conv_nchw(x, params["ws"], stride, 0) \
            + params["bs"].reshape(1, -1, 1, 1)
    else:
        sc = x
    return h + sc


# ----------------------------------- main --------------------------------------
if __name__ == "__main__":
    def make_params(key, cin, cp, with_proj):
        keys = jax.random.split(key, 13)
        p = {
            "bn1": (jax.random.uniform(keys[1], (cin,), minval=0.5, maxval=1.5),
                    0.1 * jax.random.normal(keys[2], (cin,), jnp.float32),
                    0.1 * jax.random.normal(keys[3], (cin,), jnp.float32),
                    jax.random.uniform(keys[4], (cin,), minval=0.5, maxval=1.5)),
            "w1": 0.2 * jax.random.normal(keys[5], (cp, cin, 3, 3), jnp.float32),
            "bn2": (jax.random.uniform(keys[6], (cp,), minval=0.5, maxval=1.5),
                    0.1 * jax.random.normal(keys[7], (cp,), jnp.float32),
                    0.1 * jax.random.normal(keys[8], (cp,), jnp.float32),
                    jax.random.uniform(keys[9], (cp,), minval=0.5, maxval=1.5)),
            "w2": 0.2 * jax.random.normal(keys[10], (cp, cp, 3, 3), jnp.float32),
        }
        if with_proj:
            p["ws"] = 0.2 * jax.random.normal(keys[11], (cp, cin, 1, 1), jnp.float32)
            p["bs"] = 0.1 * jax.random.normal(keys[12], (cp,), jnp.float32)
        return p

    k_a, k_b, k_xa, k_xb = jax.random.split(jax.random.PRNGKey(0), 4)

    # Case A: stride=2, in_planes != planes -> projection (1x1) shortcut.
    N, Cin, H, W, Cp, stride = 2, 4, 16, 16, 8, 2
    xA = jax.random.normal(k_xa, (N, Cin, H, W), jnp.float32)
    pA = make_params(k_a, Cin, Cp, with_proj=True)
    outA = jax.block_until_ready(wide_basic_block_forward(xA, pA, stride=stride))
    assert outA.shape == (N, Cp, H // stride, W // stride), outA.shape
    refA = reference_forward(xA, pA, stride)
    errA = float(jnp.max(jnp.abs(outA - refA)))
    tolA = 5e-2 * float(jnp.max(jnp.abs(refA)) + 1.0)   # bf16 MXU inputs
    assert errA < tolA, f"case A max abs error {errA} (tol {tolA})"

    # Case B: stride=1, in_planes == planes -> identity shortcut.
    xB = jax.random.normal(k_xb, (N, Cp, H, W), jnp.float32)
    pB = make_params(k_b, Cp, Cp, with_proj=False)
    outB = jax.block_until_ready(wide_basic_block_forward(xB, pB, stride=1))
    assert outB.shape == (N, Cp, H, W), outB.shape
    refB = reference_forward(xB, pB, 1)
    errB = float(jnp.max(jnp.abs(outB - refB)))
    tolB = 5e-2 * float(jnp.max(jnp.abs(refB)) + 1.0)
    assert errB < tolB, f"case B max abs error {errB} (tol {tolB})"

    print("KERNEL_OK")
</pallas_src>

<mosaic_0001>
module attributes {stable_mosaic.version = 11 : i64} {
  func.func @_wide_basic_kernel(%arg0: i32, %arg1: memref<1x16x16x128xf32, #tpu.memory_space<vmem>>, %arg2: memref<1x128xf32, #tpu.memory_space<vmem>>, %arg3: memref<1x128xf32, #tpu.memory_space<vmem>>, %arg4: memref<3x384x128xbf16, #tpu.memory_space<vmem>>, %arg5: memref<1x128xf32, #tpu.memory_space<vmem>>, %arg6: memref<1x128xf32, #tpu.memory_space<vmem>>, %arg7: memref<3x384x128xbf16, #tpu.memory_space<vmem>>, %arg8: memref<128x128xbf16, #tpu.memory_space<vmem>>, %arg9: memref<1x128xf32, #tpu.memory_space<vmem>>, %arg10: memref<1x8x8x128xf32, #tpu.memory_space<vmem>>, %arg11: memref<18x18x128xf32, #tpu.memory_space<vmem>>, %arg12: memref<18x18x128xf32, #tpu.memory_space<vmem>>) attributes {dimension_semantics = [#tpu.dimension_semantics<parallel>], iteration_bounds = array<i64: 2>, scalar_prefetch = 0 : i64, scratch_operands = 2 : i64, tpu.core_type = #tpu.core_type<tc>, window_params = [{transform_indices = @transform_0, window_bounds = array<i64: 1, 16, 16, 128>}, {pipeline_mode = #tpu.pipeline_mode<synchronous>, transform_indices = @transform_1, window_bounds = array<i64: 1, 128>}, {pipeline_mode = #tpu.pipeline_mode<synchronous>, transform_indices = @transform_2, window_bounds = array<i64: 1, 128>}, {pipeline_mode = #tpu.pipeline_mode<synchronous>, transform_indices = @transform_3, window_bounds = array<i64: 3, 384, 128>}, {pipeline_mode = #tpu.pipeline_mode<synchronous>, transform_indices = @transform_4, window_bounds = array<i64: 1, 128>}, {pipeline_mode = #tpu.pipeline_mode<synchronous>, transform_indices = @transform_5, window_bounds = array<i64: 1, 128>}, {pipeline_mode = #tpu.pipeline_mode<synchronous>, transform_indices = @transform_6, window_bounds = array<i64: 3, 384, 128>}, {pipeline_mode = #tpu.pipeline_mode<synchronous>, transform_indices = @transform_7, window_bounds = array<i64: 128, 128>}, {pipeline_mode = #tpu.pipeline_mode<synchronous>, transform_indices = @transform_8, window_bounds = array<i64: 1, 128>}, {transform_indices = @transform_9, window_bounds = array<i64: 1, 8, 8, 128>}]} {
    %cst = arith.constant 0.000000e+00 : f32
    %0 = vector.broadcast %cst : f32 to vector<1x18x128xf32>
    %c0 = arith.constant 0 : index
    %c0_0 = arith.constant 0 : index
    %c0_1 = arith.constant 0 : index
    %1 = vector.load %arg11[%c0, %c0_0, %c0_1] : memref<18x18x128xf32, #tpu.memory_space<vmem>>, vector<1x18x128xf32>
    tpu.vector_store %arg11[%c0, %c0_0, %c0_1], %0 {strides = array<i32>} : memref<18x18x128xf32, #tpu.memory_space<vmem>>, vector<1x18x128xf32>,
    %cst_2 = arith.constant 0.000000e+00 : f32
    %2 = vector.broadcast %cst_2 : f32 to vector<1x18x128xf32>
    %c17 = arith.constant 17 : index
    %c0_3 = arith.constant 0 : index
    %c0_4 = arith.constant 0 : index
    %3 = vector.load %arg11[%c17, %c0_3, %c0_4] : memref<18x18x128xf32, #tpu.memory_space<vmem>>, vector<1x18x128xf32>
    tpu.vector_store %arg11[%c17, %c0_3, %c0_4], %2 {strides = array<i32>} : memref<18x18x128xf32, #tpu.memory_space<vmem>>, vector<1x18x128xf32>,
    %cst_5 = arith.constant 0.000000e+00 : f32
    %4 = vector.broadcast %cst_5 : f32 to vector<18x1x128xf32>
    %c0_6 = arith.constant 0 : index
    %c0_7 = arith.constant 0 : index
    %c0_8 = arith.constant 0 : index
    %5 = vector.load %arg11[%c0_6, %c0_7, %c0_8] : memref<18x18x128xf32, #tpu.memory_space<vmem>>, vector<18x1x128xf32>
    tpu.vector_store %arg11[%c0_6, %c0_7, %c0_8], %4 {strides = array<i32>} : memref<18x18x128xf32, #tpu.memory_space<vmem>>, vector<18x1x128xf32>,
    %cst_9 = arith.constant 0.000000e+00 : f32
    %6 = vector.broadcast %cst_9 : f32 to vector<18x1x128xf32>
    %c0_10 = arith.constant 0 : index
    %c17_11 = arith.constant 17 : index
    %c0_12 = arith.constant 0 : index
    %7 = vector.load %arg11[%c0_10, %c17_11, %c0_12] : memref<18x18x128xf32, #tpu.memory_space<vmem>>, vector<18x1x128xf32>
    tpu.vector_store %arg11[%c0_10, %c17_11, %c0_12], %6 {strides = array<i32>} : memref<18x18x128xf32, #tpu.memory_space<vmem>>, vector<18x1x128xf32>,
    %cst_13 = arith.constant 0.000000e+00 : f32
    %8 = vector.broadcast %cst_13 : f32 to vector<1x18x128xf32>
    %c0_14 = arith.constant 0 : index
    %c0_15 = arith.constant 0 : index
    %c0_16 = arith.constant 0 : index
    %9 = vector.load %arg12[%c0_14, %c0_15, %c0_16] : memref<18x18x128xf32, #tpu.memory_space<vmem>>, vector<1x18x128xf32>
    tpu.vector_store %arg12[%c0_14, %c0_15, %c0_16], %8 {strides = array<i32>} : memref<18x18x128xf32, #tpu.memory_space<vmem>>, vector<1x18x128xf32>,
    %cst_17 = arith.constant 0.000000e+00 : f32
    %10 = vector.broadcast %cst_17 : f32 to vector<1x18x128xf32>
    %c17_18 = arith.constant 17 : index
    %c0_19 = arith.constant 0 : index
    %c0_20 = arith.constant 0 : index
    %11 = vector.load %arg12[%c17_18, %c0_19, %c0_20] : memref<18x18x128xf32, #tpu.memory_space<vmem>>, vector<1x18x128xf32>
    tpu.vector_store %arg12[%c17_18, %c0_19, %c0_20], %10 {strides = array<i32>} : memref<18x18x128xf32, #tpu.memory_space<vmem>>, vector<1x18x128xf32>,
    %cst_21 = arith.constant 0.000000e+00 : f32
    %12 = vector.broadcast %cst_21 : f32 to vector<18x1x128xf32>
    %c0_22 = arith.constant 0 : index
    %c0_23 = arith.constant 0 : index
    %c0_24 = arith.constant 0 : index
    %13 = vector.load %arg12[%c0_22, %c0_23, %c0_24] : memref<18x18x128xf32, #tpu.memory_space<vmem>>, vector<18x1x128xf32>
    tpu.vector_store %arg12[%c0_22, %c0_23, %c0_24], %12 {strides = array<i32>} : memref<18x18x128xf32, #tpu.memory_space<vmem>>, vector<18x1x128xf32>,
    %cst_25 = arith.constant 0.000000e+00 : f32
    %14 = vector.broadcast %cst_25 : f32 to vector<18x1x128xf32>
    %c0_26 = arith.constant 0 : index
    %c17_27 = arith.constant 17 : index
    %c0_28 = arith.constant 0 : index
    %15 = vector.load %arg12[%c0_26, %c17_27, %c0_28] : memref<18x18x128xf32, #tpu.memory_space<vmem>>, vector<18x1x128xf32>
    tpu.vector_store %arg12[%c0_26, %c17_27, %c0_28], %14 {strides = array<i32>} : memref<18x18x128xf32, #tpu.memory_space<vmem>>, vector<18x1x128xf32>,
    %c0_29 = arith.constant 0 : index
    %c0_30 = arith.constant 0 : index
    %c0_31 = arith.constant 0 : index
    %c0_32 = arith.constant 0 : index
    %16 = vector.load %arg1[%c0_29, %c0_30, %c0_31, %c0_32] : memref<1x16x16x128xf32, #tpu.memory_space<vmem>>, vector<1x16x16x128xf32>
    %17 = vector.shape_cast %16 : vector<1x16x16x128xf32> to vector<16x16x128xf32>
    %c0_33 = arith.constant 0 : index
    %c0_34 = arith.constant 0 : index
    %18 = vector.load %arg2[%c0_33, %c0_34] : memref<1x128xf32, #tpu.memory_space<vmem>>, vector<1x128xf32>
    %19 = vector.shape_cast %18 : vector<1x128xf32> to vector<128xf32>
    %20 = vector.shape_cast %19 : vector<128xf32> to vector<1x1x128xf32>
    %21 = vector.broadcast %20 : vector<1x1x128xf32> to vector<16x16x128xf32>
    %22 = arith.mulf %17, %21 : vector<16x16x128xf32>
    %c0_35 = arith.constant 0 : index
    %c0_36 = arith.constant 0 : index
    %23 = vector.load %arg3[%c0_35, %c0_36] : memref<1x128xf32, #tpu.memory_space<vmem>>, vector<1x128xf32>
    %24 = vector.shape_cast %23 : vector<1x128xf32> to vector<128xf32>
    %25 = vector.shape_cast %24 : vector<128xf32> to vector<1x1x128xf32>
    %26 = vector.broadcast %25 : vector<1x1x128xf32> to vector<16x16x128xf32>
    %27 = arith.addf %22, %26 : vector<16x16x128xf32>
    %cst_37 = arith.constant 0.000000e+00 : f32
    %28 = vector.broadcast %cst_37 : f32 to vector<16x16x128xf32>
    %29 = arith.maximumf %27, %28 : vector<16x16x128xf32>
    %c1 = arith.constant 1 : index
    %c1_38 = arith.constant 1 : index
    %c0_39 = arith.constant 0 : index
    %30 = vector.load %arg11[%c1, %c1_38, %c0_39] : memref<18x18x128xf32, #tpu.memory_space<vmem>>, vector<16x16x128xf32>
    tpu.vector_store %arg11[%c1, %c1_38, %c0_39], %29 {strides = array<i32>} : memref<18x18x128xf32, #tpu.memory_space<vmem>>, vector<16x16x128xf32>,
    %cst_40 = arith.constant 0.000000e+00 : f32
    %31 = vector.broadcast %cst_40 : f32 to vector<256x128xf32>
    %c0_41 = arith.constant 0 : index
    %c0_42 = arith.constant 0 : index
    %c0_43 = arith.constant 0 : index
    %32 = vector.load %arg11[%c0_41, %c0_42, %c0_43] : memref<18x18x128xf32, #tpu.memory_space<vmem>>, vector<16x18x128xf32>
    %33 = vector.extract_strided_slice %32 {offsets = [0, 0, 0], sizes = [16, 16, 128], strides = [1, 1, 1]} : vector<16x18x128xf32> to vector<16x16x128xf32>
    %34 = vector.extract_strided_slice %32 {offsets = [0, 1, 0], sizes = [16, 16, 128], strides = [1, 1, 1]} : vector<16x18x128xf32> to vector<16x16x128xf32>
    %35 = vector.extract_strided_slice %32 {offsets = [0, 2, 0], sizes = [16, 16, 128], strides = [1, 1, 1]} : vector<16x18x128xf32> to vector<16x16x128xf32>
    %36 = tpu.concatenate %33, %34, %35 in 2 : vector<16x16x128xf32>, vector<16x16x128xf32>, vector<16x16x128xf32> -> vector<16x16x384xf32>
    %37 = vector.shape_cast %36 : vector<16x16x384xf32> to vector<256x384xf32>
    %c0_44 = arith.constant 0 : index
    %c0_45 = arith.constant 0 : index
    %c0_46 = arith.constant 0 : index
    %38 = vector.load %arg4[%c0_44, %c0_45, %c0_46] : memref<3x384x128xbf16, #tpu.memory_space<vmem>>, vector<1x384x128xbf16>
    %39 = vector.shape_cast %38 : vector<1x384x128xbf16> to vector<384x128xbf16>
    %40 = arith.truncf %37 : vector<256x384xf32> to vector<256x384xbf16>
    %cst_47 = arith.constant dense<0.000000e+00> : vector<256x128xf32>
    %41 = tpu.matmul %40, %39, %cst_47 {dimension_numbers = #tpu.dot_dimension_numbers<[1], [0], [0], [1], [0, 0, 1, 1], [], []>} : vector<256x384xbf16>, vector<384x128xbf16>, vector<256x128xf32> -> vector<256x128xf32>
    %42 = arith.addf %31, %41 : vector<256x128xf32>
    %c1_48 = arith.constant 1 : index
    %c0_49 = arith.constant 0 : index
    %c0_50 = arith.constant 0 : index
    %43 = vector.load %arg11[%c1_48, %c0_49, %c0_50] : memref<18x18x128xf32, #tpu.memory_space<vmem>>, vector<16x18x128xf32>
    %44 = vector.extract_strided_slice %43 {offsets = [0, 0, 0], sizes = [16, 16, 128], strides = [1, 1, 1]} : vector<16x18x128xf32> to vector<16x16x128xf32>
    %45 = vector.extract_strided_slice %43 {offsets = [0, 1, 0], sizes = [16, 16, 128], strides = [1, 1, 1]} : vector<16x18x128xf32> to vector<16x16x128xf32>
    %46 = vector.extract_strided_slice %43 {offsets = [0, 2, 0], sizes = [16, 16, 128], strides = [1, 1, 1]} : vector<16x18x128xf32> to vector<16x16x128xf32>
    %47 = tpu.concatenate %44, %45, %46 in 2 : vector<16x16x128xf32>, vector<16x16x128xf32>, vector<16x16x128xf32> -> vector<16x16x384xf32>
    %48 = vector.shape_cast %47 : vector<16x16x384xf32> to vector<256x384xf32>
    %c1_51 = arith.constant 1 : index
    %c0_52 = arith.constant 0 : index
    %c0_53 = arith.constant 0 : index
    %49 = vector.load %arg4[%c1_51, %c0_52, %c0_53] : memref<3x384x128xbf16, #tpu.memory_space<vmem>>, vector<1x384x128xbf16>
    %50 = vector.shape_cast %49 : vector<1x384x128xbf16> to vector<384x128xbf16>
    %51 = arith.truncf %48 : vector<256x384xf32> to vector<256x384xbf16>
    %cst_54 = arith.constant dense<0.000000e+00> : vector<256x128xf32>
    %52 = tpu.matmul %51, %50, %cst_54 {dimension_numbers = #tpu.dot_dimension_numbers<[1], [0], [0], [1], [0, 0, 1, 1], [], []>} : vector<256x384xbf16>, vector<384x128xbf16>, vector<256x128xf32> -> vector<256x128xf32>
    %53 = arith.addf %42, %52 : vector<256x128xf32>
    %c2 = arith.constant 2 : index
    %c0_55 = arith.constant 0 : index
    %c0_56 = arith.constant 0 : index
    %54 = vector.load %arg11[%c2, %c0_55, %c0_56] : memref<18x18x128xf32, #tpu.memory_space<vmem>>, vector<16x18x128xf32>
    %55 = vector.extract_strided_slice %54 {offsets = [0, 0, 0], sizes = [16, 16, 128], strides = [1, 1, 1]} : vector<16x18x128xf32> to vector<16x16x128xf32>
    %56 = vector.extract_strided_slice %54 {offsets = [0, 1, 0], sizes = [16, 16, 128], strides = [1, 1, 1]} : vector<16x18x128xf32> to vector<16x16x128xf32>
    %57 = vector.extract_strided_slice %54 {offsets = [0, 2, 0], sizes = [16, 16, 128], strides = [1, 1, 1]} : vector<16x18x128xf32> to vector<16x16x128xf32>
    %58 = tpu.concatenate %55, %56, %57 in 2 : vector<16x16x128xf32>, vector<16x16x128xf32>, vector<16x16x128xf32> -> vector<16x16x384xf32>
    %59 = vector.shape_cast %58 : vector<16x16x384xf32> to vector<256x384xf32>
    %c2_57 = arith.constant 2 : index
    %c0_58 = arith.constant 0 : index
    %c0_59 = arith.constant 0 : index
    %60 = vector.load %arg4[%c2_57, %c0_58, %c0_59] : memref<3x384x128xbf16, #tpu.memory_space<vmem>>, vector<1x384x128xbf16>
    %61 = vector.shape_cast %60 : vector<1x384x128xbf16> to vector<384x128xbf16>
    %62 = arith.truncf %59 : vector<256x384xf32> to vector<256x384xbf16>
    %cst_60 = arith.constant dense<0.000000e+00> : vector<256x128xf32>
    %63 = tpu.matmul %62, %61, %cst_60 {dimension_numbers = #tpu.dot_dimension_numbers<[1], [0], [0], [1], [0, 0, 1, 1], [], []>} : vector<256x384xbf16>, vector<384x128xbf16>, vector<256x128xf32> -> vector<256x128xf32>
    %64 = arith.addf %53, %63 : vector<256x128xf32>
    %65 = vector.shape_cast %64 : vector<256x128xf32> to vector<16x16x128xf32>
    %c0_61 = arith.constant 0 : index
    %c0_62 = arith.constant 0 : index
    %66 = vector.load %arg5[%c0_61, %c0_62] : memref<1x128xf32, #tpu.memory_space<vmem>>, vector<1x128xf32>
    %67 = vector.shape_cast %66 : vector<1x128xf32> to vector<128xf32>
    %68 = vector.shape_cast %67 : vector<128xf32> to vector<1x1x128xf32>
    %69 = vector.broadcast %68 : vector<1x1x128xf32> to vector<16x16x128xf32>
    %70 = arith.mulf %65, %69 : vector<16x16x128xf32>
    %c0_63 = arith.constant 0 : index
    %c0_64 = arith.constant 0 : index
    %71 = vector.load %arg6[%c0_63, %c0_64] : memref<1x128xf32, #tpu.memory_space<vmem>>, vector<1x128xf32>
    %72 = vector.shape_cast %71 : vector<1x128xf32> to vector<128xf32>
    %73 = vector.shape_cast %72 : vector<128xf32> to vector<1x1x128xf32>
    %74 = vector.broadcast %73 : vector<1x1x128xf32> to vector<16x16x128xf32>
    %75 = arith.addf %70, %74 : vector<16x16x128xf32>
    %cst_65 = arith.constant 0.000000e+00 : f32
    %76 = vector.broadcast %cst_65 : f32 to vector<16x16x128xf32>
    %77 = arith.maximumf %75, %76 : vector<16x16x128xf32>
    %c1_66 = arith.constant 1 : index
    %c1_67 = arith.constant 1 : index
    %c0_68 = arith.constant 0 : index
    %78 = vector.load %arg12[%c1_66, %c1_67, %c0_68] : memref<18x18x128xf32, #tpu.memory_space<vmem>>, vector<16x16x128xf32>
    tpu.vector_store %arg12[%c1_66, %c1_67, %c0_68], %77 {strides = array<i32>} : memref<18x18x128xf32, #tpu.memory_space<vmem>>, vector<16x16x128xf32>,
    %cst_69 = arith.constant 0.000000e+00 : f32
    %79 = vector.broadcast %cst_69 : f32 to vector<64x128xf32>
    %c0_70 = arith.constant 0 : index
    %c0_71 = arith.constant 0 : index
    %c0_72 = arith.constant 0 : index
    %80 = tpu.strided_load %arg12[%c0_70, %c0_71, %c0_72] {strides = array<i32: 2, 2, 1>} : memref<18x18x128xf32, #tpu.memory_space<vmem>>, vector<8x8x128xf32>
    %c0_73 = arith.constant 0 : index
    %c1_74 = arith.constant 1 : index
    %c0_75 = arith.constant 0 : index
    %81 = tpu.strided_load %arg12[%c0_73, %c1_74, %c0_75] {strides = array<i32: 2, 2, 1>} : memref<18x18x128xf32, #tpu.memory_space<vmem>>, vector<8x8x128xf32>
    %c0_76 = arith.constant 0 : index
    %c2_77 = arith.constant 2 : index
    %c0_78 = arith.constant 0 : index
    %82 = tpu.strided_load %arg12[%c0_76, %c2_77, %c0_78] {strides = array<i32: 2, 2, 1>} : memref<18x18x128xf32, #tpu.memory_space<vmem>>, vector<8x8x128xf32>
    %83 = tpu.concatenate %80, %81, %82 in 2 : vector<8x8x128xf32>, vector<8x8x128xf32>, vector<8x8x128xf32> -> vector<8x8x384xf32>
    %84 = vector.shape_cast %83 : vector<8x8x384xf32> to vector<64x384xf32>
    %c0_79 = arith.constant 0 : index
    %c0_80 = arith.constant 0 : index
    %c0_81 = arith.constant 0 : index
    %85 = vector.load %arg7[%c0_79, %c0_80, %c0_81] : memref<3x384x128xbf16, #tpu.memory_space<vmem>>, vector<1x384x128xbf16>
    %86 = vector.shape_cast %85 : vector<1x384x128xbf16> to vector<384x128xbf16>
    %87 = arith.truncf %84 : vector<64x384xf32> to vector<64x384xbf16>
    %cst_82 = arith.constant dense<0.000000e+00> : vector<64x128xf32>
    %88 = tpu.matmul %87, %86, %cst_82 {dimension_numbers = #tpu.dot_dimension_numbers<[1], [0], [0], [1], [0, 0, 1, 1], [], []>} : vector<64x384xbf16>, vector<384x128xbf16>, vector<64x128xf32> -> vector<64x128xf32>
    %89 = arith.addf %79, %88 : vector<64x128xf32>
    %c1_83 = arith.constant 1 : index
    %c0_84 = arith.constant 0 : index
    %c0_85 = arith.constant 0 : index
    %90 = tpu.strided_load %arg12[%c1_83, %c0_84, %c0_85] {strides = array<i32: 2, 2, 1>} : memref<18x18x128xf32, #tpu.memory_space<vmem>>, vector<8x8x128xf32>
    %c1_86 = arith.constant 1 : index
    %c1_87 = arith.constant 1 : index
    %c0_88 = arith.constant 0 : index
    %91 = tpu.strided_load %arg12[%c1_86, %c1_87, %c0_88] {strides = array<i32: 2, 2, 1>} : memref<18x18x128xf32, #tpu.memory_space<vmem>>, vector<8x8x128xf32>
    %c1_89 = arith.constant 1 : index
    %c2_90 = arith.constant 2 : index
    %c0_91 = arith.constant 0 : index
    %92 = tpu.strided_load %arg12[%c1_89, %c2_90, %c0_91] {strides = array<i32: 2, 2, 1>} : memref<18x18x128xf32, #tpu.memory_space<vmem>>, vector<8x8x128xf32>
    %93 = tpu.concatenate %90, %91, %92 in 2 : vector<8x8x128xf32>, vector<8x8x128xf32>, vector<8x8x128xf32> -> vector<8x8x384xf32>
    %94 = vector.shape_cast %93 : vector<8x8x384xf32> to vector<64x384xf32>
    %c1_92 = arith.constant 1 : index
    %c0_93 = arith.constant 0 : index
    %c0_94 = arith.constant 0 : index
    %95 = vector.load %arg7[%c1_92, %c0_93, %c0_94] : memref<3x384x128xbf16, #tpu.memory_space<vmem>>, vector<1x384x128xbf16>
    %96 = vector.shape_cast %95 : vector<1x384x128xbf16> to vector<384x128xbf16>
    %97 = arith.truncf %94 : vector<64x384xf32> to vector<64x384xbf16>
    %cst_95 = arith.constant dense<0.000000e+00> : vector<64x128xf32>
    %98 = tpu.matmul %97, %96, %cst_95 {dimension_numbers = #tpu.dot_dimension_numbers<[1], [0], [0], [1], [0, 0, 1, 1], [], []>} : vector<64x384xbf16>, vector<384x128xbf16>, vector<64x128xf32> -> vector<64x128xf32>
    %99 = arith.addf %89, %98 : vector<64x128xf32>
    %c2_96 = arith.constant 2 : index
    %c0_97 = arith.constant 0 : index
    %c0_98 = arith.constant 0 : index
    %100 = tpu.strided_load %arg12[%c2_96, %c0_97, %c0_98] {strides = array<i32: 2, 2, 1>} : memref<18x18x128xf32, #tpu.memory_space<vmem>>, vector<8x8x128xf32>
    %c2_99 = arith.constant 2 : index
    %c1_100 = arith.constant 1 : index
    %c0_101 = arith.constant 0 : index
    %101 = tpu.strided_load %arg12[%c2_99, %c1_100, %c0_101] {strides = array<i32: 2, 2, 1>} : memref<18x18x128xf32, #tpu.memory_space<vmem>>, vector<8x8x128xf32>
    %c2_102 = arith.constant 2 : index
    %c2_103 = arith.constant 2 : index
    %c0_104 = arith.constant 0 : index
    %102 = tpu.strided_load %arg12[%c2_102, %c2_103, %c0_104] {strides = array<i32: 2, 2, 1>} : memref<18x18x128xf32, #tpu.memory_space<vmem>>, vector<8x8x128xf32>
    %103 = tpu.concatenate %100, %101, %102 in 2 : vector<8x8x128xf32>, vector<8x8x128xf32>, vector<8x8x128xf32> -> vector<8x8x384xf32>
    %104 = vector.shape_cast %103 : vector<8x8x384xf32> to vector<64x384xf32>
    %c2_105 = arith.constant 2 : index
    %c0_106 = arith.constant 0 : index
    %c0_107 = arith.constant 0 : index
    %105 = vector.load %arg7[%c2_105, %c0_106, %c0_107] : memref<3x384x128xbf16, #tpu.memory_space<vmem>>, vector<1x384x128xbf16>
    %106 = vector.shape_cast %105 : vector<1x384x128xbf16> to vector<384x128xbf16>
    %107 = arith.truncf %104 : vector<64x384xf32> to vector<64x384xbf16>
    %cst_108 = arith.constant dense<0.000000e+00> : vector<64x128xf32>
    %108 = tpu.matmul %107, %106, %cst_108 {dimension_numbers = #tpu.dot_dimension_numbers<[1], [0], [0], [1], [0, 0, 1, 1], [], []>} : vector<64x384xbf16>, vector<384x128xbf16>, vector<64x128xf32> -> vector<64x128xf32>
    %109 = arith.addf %99, %108 : vector<64x128xf32>
    %c0_109 = arith.constant 0 : index
    %c0_110 = arith.constant 0 : index
    %c0_111 = arith.constant 0 : index
    %c0_112 = arith.constant 0 : index
    %110 = tpu.strided_load %arg1[%c0_109, %c0_110, %c0_111, %c0_112] {strides = array<i32: 1, 2, 2, 1>} : memref<1x16x16x128xf32, #tpu.memory_space<vmem>>, vector<1x8x8x128xf32>
    %111 = vector.shape_cast %110 : vector<1x8x8x128xf32> to vector<64x128xf32>
    %c0_113 = arith.constant 0 : index
    %c0_114 = arith.constant 0 : index
    %112 = vector.load %arg8[%c0_113, %c0_114] : memref<128x128xbf16, #tpu.memory_space<vmem>>, vector<128x128xbf16>
    %113 = arith.truncf %111 : vector<64x128xf32> to vector<64x128xbf16>
    %cst_115 = arith.constant dense<0.000000e+00> : vector<64x128xf32>
    %114 = tpu.matmul %113, %112, %cst_115 {dimension_numbers = #tpu.dot_dimension_numbers<[1], [0], [0], [1], [0, 0, 1, 1], [], []>} : vector<64x128xbf16>, vector<128x128xbf16>, vector<64x128xf32> -> vector<64x128xf32>
    %c0_116 = arith.constant 0 : index
    %c0_117 = arith.constant 0 : index
    %115 = vector.load %arg9[%c0_116, %c0_117] : memref<1x128xf32, #tpu.memory_space<vmem>>, vector<1x128xf32>
    %116 = vector.shape_cast %115 : vector<1x128xf32> to vector<128xf32>
    %117 = vector.shape_cast %116 : vector<128xf32> to vector<1x128xf32>
    %118 = vector.broadcast %117 : vector<1x128xf32> to vector<64x128xf32>
    %119 = arith.addf %114, %118 : vector<64x128xf32>
    %120 = arith.addf %109, %119 : vector<64x128xf32>
    %121 = vector.shape_cast %120 : vector<64x128xf32> to vector<8x8x128xf32>
    %c0_118 = arith.constant 0 : index
    %c0_119 = arith.constant 0 : index
    %c0_120 = arith.constant 0 : index
    %c0_121 = arith.constant 0 : index
    %122 = vector.load %arg10[%c0_118, %c0_119, %c0_120, %c0_121] : memref<1x8x8x128xf32, #tpu.memory_space<vmem>>, vector<1x8x8x128xf32>
    %123 = vector.shape_cast %122 : vector<1x8x8x128xf32> to vector<8x8x128xf32>
    %124 = vector.shape_cast %121 : vector<8x8x128xf32> to vector<1x8x8x128xf32>
    tpu.vector_store %arg10[%c0_118, %c0_119, %c0_120, %c0_121], %124 {strides = array<i32>} : memref<1x8x8x128xf32, #tpu.memory_space<vmem>>, vector<1x8x8x128xf32>,
    return
  }
  func.func @transform_0(%arg0: i32) -> (i32, i32, i32, i32) {
    %c0_i32 = arith.constant 0 : i32
    %c0_i32_0 = arith.constant 0 : i32
    %c0_i32_1 = arith.constant 0 : i32
    %c0_i32_2 = arith.constant 0 : i32
    return %arg0, %c0_i32, %c0_i32_0, %c0_i32_1 : i32, i32, i32, i32
  }
  func.func @transform_1(%arg0: i32) -> (i32, i32) {
    %c0_i32 = arith.constant 0 : i32
    %c0_i32_0 = arith.constant 0 : i32
    %c0_i32_1 = arith.constant 0 : i32
    return %c0_i32, %c0_i32_0 : i32, i32
  }
  func.func @transform_2(%arg0: i32) -> (i32, i32) {
    %c0_i32 = arith.constant 0 : i32
    %c0_i32_0 = arith.constant 0 : i32
    %c0_i32_1 = arith.constant 0 : i32
    return %c0_i32, %c0_i32_0 : i32, i32
  }
  func.func @transform_3(%arg0: i32) -> (i32, i32, i32) {
    %c0_i32 = arith.constant 0 : i32
    %c0_i32_0 = arith.constant 0 : i32
    %c0_i32_1 = arith.constant 0 : i32
    %c0_i32_2 = arith.constant 0 : i32
    return %c0_i32, %c0_i32_0, %c0_i32_1 : i32, i32, i32
  }
  func.func @transform_4(%arg0: i32) -> (i32, i32) {
    %c0_i32 = arith.constant 0 : i32
    %c0_i32_0 = arith.constant 0 : i32
    %c0_i32_1 = arith.constant 0 : i32
    return %c0_i32, %c0_i32_0 : i32, i32
  }
  func.func @transform_5(%arg0: i32) -> (i32, i32) {
    %c0_i32 = arith.constant 0 : i32
    %c0_i32_0 = arith.constant 0 : i32
    %c0_i32_1 = arith.constant 0 : i32
    return %c0_i32, %c0_i32_0 : i32, i32
  }
  func.func @transform_6(%arg0: i32) -> (i32, i32, i32) {
    %c0_i32 = arith.constant 0 : i32
    %c0_i32_0 = arith.constant 0 : i32
    %c0_i32_1 = arith.constant 0 : i32
    %c0_i32_2 = arith.constant 0 : i32
    return %c0_i32, %c0_i32_0, %c0_i32_1 : i32, i32, i32
  }
  func.func @transform_7(%arg0: i32) -> (i32, i32) {
    %c0_i32 = arith.constant 0 : i32
    %c0_i32_0 = arith.constant 0 : i32
    %c0_i32_1 = arith.constant 0 : i32
    return %c0_i32, %c0_i32_0 : i32, i32
  }
  func.func @transform_8(%arg0: i32) -> (i32, i32) {
    %c0_i32 = arith.constant 0 : i32
    %c0_i32_0 = arith.constant 0 : i32
    %c0_i32_1 = arith.constant 0 : i32
    return %c0_i32, %c0_i32_0 : i32, i32
  }
  func.func @transform_9(%arg0: i32) -> (i32, i32, i32, i32) {
    %c0_i32 = arith.constant 0 : i32
    %c0_i32_0 = arith.constant 0 : i32
    %c0_i32_1 = arith.constant 0 : i32
    %c0_i32_2 = arith.constant 0 : i32
    return %arg0, %c0_i32, %c0_i32_0, %c0_i32_1 : i32, i32, i32, i32
  }
}

</mosaic_0001>

<llo_original>
// kernel: tpu_custom_call.1
$region0: #{tpu_custom_call.1}
  #allocation0 [shape = 'u32[]', space=smem, size = 0x4, offset = 0x4, fixed_abs, tag = 'smem constant byte address 0x4 - core index']
  #allocation1 [shape = 'u32[144,128]{1,0:T(1,128)}', space=vmem, size = 0x12000, scoped, tag = 'internal scratch']
  #allocation2 [shape = 'f32[18,18,128]{2,1,0:T(8,128)}', space=vmem, size = 0x36000, scoped, tag = 'scratch operand']
  #allocation3 [shape = 'f32[18,18,128]{2,1,0:T(8,128)}', space=vmem, size = 0x36000, scoped, tag = 'scratch operand']
  %s0 = inlined_call_operand.hbm [shape: f32[2,16,16,128], index: 0, kind: input, shape index: {}]
  %s1 = inlined_call_operand.hbm [shape: f32[1,128], index: 1, kind: input, shape index: {}]
  %s2 = inlined_call_operand.hbm [shape: f32[1,128], index: 2, kind: input, shape index: {}]
  %s3 = inlined_call_operand.hbm [shape: bf16[3,384,128], index: 3, kind: input, shape index: {}]
  %s4 = inlined_call_operand.hbm [shape: f32[1,128], index: 4, kind: input, shape index: {}]
  %s5 = inlined_call_operand.hbm [shape: f32[1,128], index: 5, kind: input, shape index: {}]
  %s6 = inlined_call_operand.hbm [shape: bf16[3,384,128], index: 6, kind: input, shape index: {}]
  %s7 = inlined_call_operand.hbm [shape: bf16[128,128], index: 7, kind: input, shape index: {}]
  %s8 = inlined_call_operand.hbm [shape: f32[1,128], index: 8, kind: input, shape index: {}]
  %s9 = inlined_call_operand.hbm [shape: f32[2,8,8,128], index: 9, kind: output, shape index: {}]
  %s10 = sld [smem:[#allocation0]]
  $region105: #{tpu_custom_call.1} parent=0
    _
  %s12 = ssub.s32 1, %s10
  %s13 = scalar_select 0, %s12, %s10
  $region1: #{tpu_custom_call.1} parent=0
    #allocation4 [shape = 'u8[262144]{0}', space=vmem, size = 0x40000, scoped, tag = 'input window, operand 0']
    #allocation5 [shape = 's32[2]{0}', space=sflag, size = 0x8, scoped, tag = 'scoped memory for tpu_custom_call.1']
    #allocation6 [shape = 's32[2]{0}', space=sflag, size = 0x8, scoped, tag = 'scoped memory for tpu_custom_call.1']
    #allocation7 [shape = 'u8[512]{0}', space=vmem, size = 0x400, scoped, tag = 'input window, operand 1, single buffered']
    #allocation8 [shape = 's32[1]{0}', space=sflag, size = 0x4, scoped, tag = 'scoped memory for tpu_custom_call.1']
    #allocation9 [shape = 'u8[512]{0}', space=vmem, size = 0x400, scoped, tag = 'input window, operand 2, single buffered']
    #allocation10 [shape = 'u8[294912]{0}', space=vmem, size = 0x48000, scoped, tag = 'input window, operand 3, single buffered']
    #allocation11 [shape = 's32[1]{0}', space=sflag, size = 0x4, scoped, tag = 'scoped memory for tpu_custom_call.1']
    #allocation12 [shape = 'u8[512]{0}', space=vmem, size = 0x400, scoped, tag = 'input window, operand 4, single buffered']
    #allocation13 [shape = 'u8[512]{0}', space=vmem, size = 0x400, scoped, tag = 'input window, operand 5, single buffered']
    #allocation14 [shape = 's32[1]{0}', space=sflag, size = 0x4, scoped, tag = 'scoped memory for tpu_custom_call.1']
    #allocation15 [shape = 'u8[294912]{0}', space=vmem, size = 0x48000, scoped, tag = 'input window, operand 6, single buffered']
    #allocation16 [shape = 'u8[32768]{0}', space=vmem, size = 0x8000, scoped, tag = 'input window, operand 7, single buffered']
    #allocation17 [shape = 's32[1]{0}', space=sflag, size = 0x4, scoped, tag = 'scoped memory for tpu_custom_call.1']
    #allocation18 [shape = 'u8[512]{0}', space=vmem, size = 0x400, scoped, tag = 'input window, operand 8, single buffered']
    #allocation19 [shape = 'u8[65536]{0}', space=vmem, size = 0x10000, scoped, tag = 'output window, operand 0']
    %14 = vsyncpa [#allocation5], 0
    %s15 = scalar_lea.sflag [#allocation5], 1
    %16 = vsyncpa %s15, 0
    %17 = vsyncpa [#allocation8], 0
    %18 = vsyncpa [#allocation11], 0
    %19 = vsyncpa [#allocation14], 0
    %20 = vsyncpa [#allocation17], 0
    %21 = vsyncpa [#allocation6], 0
    %s22 = scalar_lea.sflag [#allocation6], 1
    %23 = vsyncpa %s22, 0
    loop: start=0, step=1, limit=4
    $region2: #{tpu_custom_call.1} parent=1 // loop_pre_header
      _
    $region3: #{tpu_custom_call.1} parent=1 // loop_header
      %s25 = sphi 0, %s29
      %p26 = scmp.ge.s32.totalorder %s25, 4
      %s35 = sphi 0, %s37
      %s38 = sphi 0, %s35
      %s39 = sphi 0, %s38
      %s55 = sphi 0, %s39
      %s59 = sphi 0, %s59
      %s61 = sphi 0, %s59
      %s62 = sphi 0, %s61
      %s76 = sphi 0, %s62
      %s80 = sphi 0, %s80
      %s82 = sphi 0, %s80
      %s83 = sphi 0, %s82
      %s97 = sphi 0, %s83
      %s101 = sphi 0, %s101
      %s103 = sphi 0, %s101
      %s104 = sphi 0, %s103
      %s118 = sphi 0, %s104
      %s122 = sphi 0, %s122
      %s124 = sphi 0, %s122
      %s125 = sphi 0, %s124
      %s139 = sphi 0, %s125
      %s143 = sphi 0, %s143
      %s145 = sphi 0, %s143
      %s146 = sphi 0, %s145
      %s160 = sphi 0, %s146
      %s164 = sphi 0, %s164
      %s166 = sphi 0, %s164
      %s167 = sphi 0, %s166
      %s181 = sphi 0, %s167
      %s185 = sphi 0, %s185
      %s187 = sphi 0, %s185
      %s188 = sphi 0, %s187
      %s202 = sphi 0, %s188
      %s206 = sphi 0, %s206
      %s208 = sphi 0, %s206
      %s209 = sphi 0, %s208
      %s223 = sphi 0, %s209
      %s229 = sphi 0, %s231
      %s232 = sphi 0, %s229
      %s233 = sphi 0, %s232
      %s249 = sphi 0, %s233
    $region4: #{tpu_custom_call.1} parent=1 // loop_header_branch
      %28 = sbr.rel (%p26) target = $region8
    $region5: #{tpu_custom_call.1} parent=1 // loop_body
      %s30 = ssub.s32 %s25, 1
      %s31 = ssub.s32 %s25, 2
      %s32 = sadd.s32 %s25, 1
      %s33 = ssub.s32 %s25, %s32
      %p34 = scmp.eq.s32.totalorder %s33, 0
      %s36 = sadd.s32 %s35, 1
      %s37 = scalar_select %p34, %s35, %s36
      %p40 = pneg %p34
      %p41 = scmp.eq.s32.totalorder %s25, 1
      %p42 = por %p40, %p41
      %p43 = scmp.ne.s32.totalorder %s35, %s38
      %p44 = scmp.eq.s32.totalorder %s25, 0
      %p45 = por %p43, %p44
      %p46 = scmp.ne.s32.totalorder %s35, %s38
      %p47 = scmp.eq.s32.totalorder %s30, 1
      %p48 = por %p46, %p47
      %p49 = scmp.ne.s32.totalorder %s38, %s39
      %p50 = scmp.eq.s32.totalorder %s30, 0
      %p51 = por %p49, %p50
      %p52 = scmp.ne.s32.totalorder %s38, %s39
      %p53 = scmp.eq.s32.totalorder %s31, 1
      %p54 = por %p52, %p53
      %p56 = scmp.ne.s32.totalorder %s39, %s55
      %p57 = scmp.eq.s32.totalorder %s31, 0
      %p58 = por %p56, %p57
      %s60 = sadd.s32 %s59, 1
      %p63 = scmp.eq.s32.totalorder %s25, 1
      %p64 = scmp.ne.s32.totalorder %s59, %s61
      %p65 = scmp.eq.s32.totalorder %s25, 0
      %p66 = por %p64, %p65
      %p67 = scmp.ne.s32.totalorder %s59, %s61
      %p68 = scmp.eq.s32.totalorder %s30, 1
      %p69 = por %p67, %p68
      %p70 = scmp.ne.s32.totalorder %s61, %s62
      %p71 = scmp.eq.s32.totalorder %s30, 0
      %p72 = por %p70, %p71
      %p73 = scmp.ne.s32.totalorder %s61, %s62
      %p74 = scmp.eq.s32.totalorder %s31, 1
      %p75 = por %p73, %p74
      %p77 = scmp.ne.s32.totalorder %s62, %s76
      %p78 = scmp.eq.s32.totalorder %s31, 0
      %p79 = por %p77, %p78
      %s81 = sadd.s32 %s80, 1
      %p84 = scmp.eq.s32.totalorder %s25, 1
      %p85 = scmp.ne.s32.totalorder %s80, %s82
      %p86 = scmp.eq.s32.totalorder %s25, 0
      %p87 = por %p85, %p86
      %p88 = scmp.ne.s32.totalorder %s80, %s82
      %p89 = scmp.eq.s32.totalorder %s30, 1
      %p90 = por %p88, %p89
      %p91 = scmp.ne.s32.totalorder %s82, %s83
      %p92 = scmp.eq.s32.totalorder %s30, 0
      %p93 = por %p91, %p92
      %p94 = scmp.ne.s32.totalorder %s82, %s83
      %p95 = scmp.eq.s32.totalorder %s31, 1
      %p96 = por %p94, %p95
      %p98 = scmp.ne.s32.totalorder %s83, %s97
      %p99 = scmp.eq.s32.totalorder %s31, 0
      %p100 = por %p98, %p99
      %s102 = sadd.s32 %s101, 1
      %p105 = scmp.eq.s32.totalorder %s25, 1
      %p106 = scmp.ne.s32.totalorder %s101, %s103
      %p107 = scmp.eq.s32.totalorder %s25, 0
      %p108 = por %p106, %p107
      %p109 = scmp.ne.s32.totalorder %s101, %s103
      %p110 = scmp.eq.s32.totalorder %s30, 1
      %p111 = por %p109, %p110
      %p112 = scmp.ne.s32.totalorder %s103, %s104
      %p113 = scmp.eq.s32.totalorder %s30, 0
      %p114 = por %p112, %p113
      %p115 = scmp.ne.s32.totalorder %s103, %s104
      %p116 = scmp.eq.s32.totalorder %s31, 1
      %p117 = por %p115, %p116
      %p119 = scmp.ne.s32.totalorder %s104, %s118
      %p120 = scmp.eq.s32.totalorder %s31, 0
      %p121 = por %p119, %p120
      %s123 = sadd.s32 %s122, 1
      %p126 = scmp.eq.s32.totalorder %s25, 1
      %p127 = scmp.ne.s32.totalorder %s122, %s124
      %p128 = scmp.eq.s32.totalorder %s25, 0
      %p129 = por %p127, %p128
      %p130 = scmp.ne.s32.totalorder %s122, %s124
      %p131 = scmp.eq.s32.totalorder %s30, 1
      %p132 = por %p130, %p131
      %p133 = scmp.ne.s32.totalorder %s124, %s125
      %p134 = scmp.eq.s32.totalorder %s30, 0
      %p135 = por %p133, %p134
      %p136 = scmp.ne.s32.totalorder %s124, %s125
      %p137 = scmp.eq.s32.totalorder %s31, 1
      %p138 = por %p136, %p137
      %p140 = scmp.ne.s32.totalorder %s125, %s139
      %p141 = scmp.eq.s32.totalorder %s31, 0
      %p142 = por %p140, %p141
      %s144 = sadd.s32 %s143, 1
      %p147 = scmp.eq.s32.totalorder %s25, 1
      %p148 = scmp.ne.s32.totalorder %s143, %s145
      %p149 = scmp.eq.s32.totalorder %s25, 0
      %p150 = por %p148, %p149
      %p151 = scmp.ne.s32.totalorder %s143, %s145
      %p152 = scmp.eq.s32.totalorder %s30, 1
      %p153 = por %p151, %p152
      %p154 = scmp.ne.s32.totalorder %s145, %s146
      %p155 = scmp.eq.s32.totalorder %s30, 0
      %p156 = por %p154, %p155
      %p157 = scmp.ne.s32.totalorder %s145, %s146
      %p158 = scmp.eq.s32.totalorder %s31, 1
      %p159 = por %p157, %p158
      %p161 = scmp.ne.s32.totalorder %s146, %s160
      %p162 = scmp.eq.s32.totalorder %s31, 0
      %p163 = por %p161, %p162
      %s165 = sadd.s32 %s164, 1
      %p168 = scmp.eq.s32.totalorder %s25, 1
      %p169 = scmp.ne.s32.totalorder %s164, %s166
      %p170 = scmp.eq.s32.totalorder %s25, 0
      %p171 = por %p169, %p170
      %p172 = scmp.ne.s32.totalorder %s164, %s166
      %p173 = scmp.eq.s32.totalorder %s30, 1
      %p174 = por %p172, %p173
      %p175 = scmp.ne.s32.totalorder %s166, %s167
      %p176 = scmp.eq.s32.totalorder %s30, 0
      %p177 = por %p175, %p176
      %p178 = scmp.ne.s32.totalorder %s166, %s167
      %p179 = scmp.eq.s32.totalorder %s31, 1
      %p180 = por %p178, %p179
      %p182 = scmp.ne.s32.totalorder %s167, %s181
      %p183 = scmp.eq.s32.totalorder %s31, 0
      %p184 = por %p182, %p183
      %s186 = sadd.s32 %s185, 1
      %p189 = scmp.eq.s32.totalorder %s25, 1
      %p190 = scmp.ne.s32.totalorder %s185, %s187
      %p191 = scmp.eq.s32.totalorder %s25, 0
      %p192 = por %p190, %p191
      %p193 = scmp.ne.s32.totalorder %s185, %s187
      %p194 = scmp.eq.s32.totalorder %s30, 1
      %p195 = por %p193, %p194
      %p196 = scmp.ne.s32.totalorder %s187, %s188
      %p197 = scmp.eq.s32.totalorder %s30, 0
      %p198 = por %p196, %p197
      %p199 = scmp.ne.s32.totalorder %s187, %s188
      %p200 = scmp.eq.s32.totalorder %s31, 1
      %p201 = por %p199, %p200
      %p203 = scmp.ne.s32.totalorder %s188, %s202
      %p204 = scmp.eq.s32.totalorder %s31, 0
      %p205 = por %p203, %p204
      %s207 = sadd.s32 %s206, 1
      %p210 = scmp.eq.s32.totalorder %s25, 1
      %p211 = scmp.ne.s32.totalorder %s206, %s208
      %p212 = scmp.eq.s32.totalorder %s25, 0
      %p213 = por %p211, %p212
      %p214 = scmp.ne.s32.totalorder %s206, %s208
      %p215 = scmp.eq.s32.totalorder %s30, 1
      %p216 = por %p214, %p215
      %p217 = scmp.ne.s32.totalorder %s208, %s209
      %p218 = scmp.eq.s32.totalorder %s30, 0
      %p219 = por %p217, %p218
      %p220 = scmp.ne.s32.totalorder %s208, %s209
      %p221 = scmp.eq.s32.totalorder %s31, 1
      %p222 = por %p220, %p221
      %p224 = scmp.ne.s32.totalorder %s209, %s223
      %p225 = scmp.eq.s32.totalorder %s31, 0
      %p226 = por %p224, %p225
      %s227 = ssub.s32 %s25, %s32
      %p228 = scmp.eq.s32.totalorder %s227, 0
      %s230 = sadd.s32 %s229, 1
      %s231 = scalar_select %p228, %s229, %s230
      %p234 = pneg %p228
      %p235 = scmp.eq.s32.totalorder %s25, 1
      %p236 = por %p234, %p235
      %p237 = scmp.ne.s32.totalorder %s229, %s232
      %p238 = scmp.eq.s32.totalorder %s25, 0
      %p239 = por %p237, %p238
      %p240 = scmp.ne.s32.totalorder %s229, %s232
      %p241 = scmp.eq.s32.totalorder %s30, 1
      %p242 = por %p240, %p241
      %p243 = scmp.ne.s32.totalorder %s232, %s233
      %p244 = scmp.eq.s32.totalorder %s30, 0
      %p245 = por %p243, %p244
      %p246 = scmp.ne.s32.totalorder %s232, %s233
      %p247 = scmp.eq.s32.totalorder %s31, 1
      %p248 = por %p246, %p247
      %p250 = scmp.ne.s32.totalorder %s233, %s249
      %p251 = scmp.eq.s32.totalorder %s31, 0
      %p252 = por %p250, %p251
      %p253 = scmp.le.s32.totalorder 1, %s25
      %p254 = scmp.lt.s32.totalorder %s25, 3
      %p255 = pnand %p253, %p254
      %p256 = pneg %p255
      // Predicated region
      $region9: #{tpu_custom_call.1} parent=5 // pred_check
        _
      $region10: #{tpu_custom_call.1} parent=5 // pred_check_branch
        %258 = sbr.rel (%p255) target = $region12
      $region11: #{tpu_custom_call.1} parent=5 // pred_region
        %s259 = ssub.s32 %s25, 1
        // Predicated region
        $region13: #{tpu_custom_call.1} parent=11 // pred_check
          %p260 = pneg %p72
        $region14: #{tpu_custom_call.1} parent=11 // pred_check_branch
          %262 = sbr.rel (%p260) target = $region16
        $region15: #{tpu_custom_call.1} parent=11 // pred_region
          %s264 = ssub.s32 16, 16
          %265 = vsyncadd [#allocation8], %s264
          %s267 = sshll.u32 [#allocation7], 4
          %s268 = int_to_ptr.vmem [resolvable:$true] %s267
          %270 = dma.hbm_to_vmem [thread:$0]  %s1, 16, %s268, [#allocation8]
        $region16: #{tpu_custom_call.1} parent=11 // pred_fallthru
          _
        // Predicated region
        $region17: #{tpu_custom_call.1} parent=11 // pred_check
          %p271 = pneg %p93
        $region18: #{tpu_custom_call.1} parent=11 // pred_check_branch
          %273 = sbr.rel (%p271) target = $region20
        $region19: #{tpu_custom_call.1} parent=11 // pred_region
          %s275 = ssub.s32 16, 16
          %276 = vsyncadd [#allocation8], %s275
          %s278 = sshll.u32 [#allocation9], 4
          %s279 = int_to_ptr.vmem [resolvable:$true] %s278
          %281 = dma.hbm_to_vmem [thread:$0]  %s2, 16, %s279, [#allocation8]
        $region20: #{tpu_custom_call.1} parent=11 // pred_fallthru
          _
        // Predicated region
        $region21: #{tpu_custom_call.1} parent=11 // pred_check
          %p282 = pneg %p114
        $region22: #{tpu_custom_call.1} parent=11 // pred_check_branch
          %284 = sbr.rel (%p282) target = $region24
        $region23: #{tpu_custom_call.1} parent=11 // pred_region
          %s286 = ssub.s32 9216, 9216
          %287 = vsyncadd [#allocation11], %s286
          %s288 = sshll.u32 [#allocation10], 4
          %s289 = int_to_ptr.vmem [resolvable:$true] %s288
          %294 = dma.hbm_to_vmem [thread:$0]  %s3, 9216, %s289, [#allocation11], 64, 64, 4
        $region24: #{tpu_custom_call.1} parent=11 // pred_fallthru
          _
        // Predicated region
        $region25: #{tpu_custom_call.1} parent=11 // pred_check
          %p295 = pneg %p135
        $region26: #{tpu_custom_call.1} parent=11 // pred_check_branch
          %297 = sbr.rel (%p295) target = $region28
        $region27: #{tpu_custom_call.1} parent=11 // pred_region
          %s299 = ssub.s32 16, 16
          %300 = vsyncadd [#allocation11], %s299
          %s302 = sshll.u32 [#allocation12], 4
          %s303 = int_to_ptr.vmem [resolvable:$true] %s302
          %305 = dma.hbm_to_vmem [thread:$0]  %s4, 16, %s303, [#allocation11]
        $region28: #{tpu_custom_call.1} parent=11 // pred_fallthru
          _
        // Predicated region
        $region29: #{tpu_custom_call.1} parent=11 // pred_check
          %p306 = pneg %p156
        $region30: #{tpu_custom_call.1} parent=11 // pred_check_branch
          %308 = sbr.rel (%p306) target = $region32
        $region31: #{tpu_custom_call.1} parent=11 // pred_region
          %s310 = ssub.s32 16, 16
          %311 = vsyncadd [#allocation14], %s310
          %s313 = sshll.u32 [#allocation13], 4
          %s314 = int_to_ptr.vmem [resolvable:$true] %s313
          %316 = dma.hbm_to_vmem [thread:$0]  %s5, 16, %s314, [#allocation14]
        $region32: #{tpu_custom_call.1} parent=11 // pred_fallthru
          _
        // Predicated region
        $region33: #{tpu_custom_call.1} parent=11 // pred_check
          %p317 = pneg %p177
        $region34: #{tpu_custom_call.1} parent=11 // pred_check_branch
          %319 = sbr.rel (%p317) target = $region36
        $region35: #{tpu_custom_call.1} parent=11 // pred_region
          %s321 = ssub.s32 9216, 9216
          %322 = vsyncadd [#allocation14], %s321
          %s323 = sshll.u32 [#allocation15], 4
          %s324 = int_to_ptr.vmem [resolvable:$true] %s323
          %329 = dma.hbm_to_vmem [thread:$0]  %s6, 9216, %s324, [#allocation14], 64, 64, 4
        $region36: #{tpu_custom_call.1} parent=11 // pred_fallthru
          _
        // Predicated region
        $region37: #{tpu_custom_call.1} parent=11 // pred_check
          %p330 = pneg %p198
        $region38: #{tpu_custom_call.1} parent=11 // pred_check_branch
          %332 = sbr.rel (%p330) target = $region40
        $region39: #{tpu_custom_call.1} parent=11 // pred_region
          %s334 = ssub.s32 1024, 1024
          %335 = vsyncadd [#allocation17], %s334
          %s336 = sshll.u32 [#allocation16], 4
          %s337 = int_to_ptr.vmem [resolvable:$true] %s336
          %342 = dma.hbm_to_vmem [thread:$0]  %s7, 1024, %s337, [#allocation17], 64, 64, 4
        $region40: #{tpu_custom_call.1} parent=11 // pred_fallthru
          _
        // Predicated region
        $region41: #{tpu_custom_call.1} parent=11 // pred_check
          %p343 = pneg %p219
        $region42: #{tpu_custom_call.1} parent=11 // pred_check_branch
          %345 = sbr.rel (%p343) target = $region44
        $region43: #{tpu_custom_call.1} parent=11 // pred_region
          %s347 = ssub.s32 16, 16
          %348 = vsyncadd [#allocation17], %s347
          %s350 = sshll.u32 [#allocation18], 4
          %s351 = int_to_ptr.vmem [resolvable:$true] %s350
          %353 = dma.hbm_to_vmem [thread:$0]  %s8, 16, %s351, [#allocation17]
        $region44: #{tpu_custom_call.1} parent=11 // pred_fallthru
          _
      $region12: #{tpu_custom_call.1} parent=5 // pred_fallthru
        _
      %p354 = scmp.lt.s32.totalorder %s25, 2
      // Predicated region
      $region45: #{tpu_custom_call.1} parent=5 // pred_check
        %p355 = pneg %p354
      $region46: #{tpu_custom_call.1} parent=5 // pred_check_branch
        %357 = sbr.rel (%p355) target = $region48
      $region47: #{tpu_custom_call.1} parent=5 // pred_region
        // Predicated region
        $region49: #{tpu_custom_call.1} parent=47 // pred_check
          %p358 = pneg %p45
        $region50: #{tpu_custom_call.1} parent=47 // pred_check_branch
          %360 = sbr.rel (%p358) target = $region52
        $region51: #{tpu_custom_call.1} parent=47 // pred_region
          %s361 = sand.u32 %s35, 1
          %s362 = scalar_lea.sflag [#allocation5], %s361
          %s363 = sand.u32 %s35, 1
          %s364 = smul.addr %s363, 256
          %s365 = scalar_lea.vmem [#allocation4], %s364
          %s367 = ssub.s32 4096, 4096
          %368 = vsyncadd %s362, %s367
          %s369 = smul.addr %s25, 32
          %s370 = smul.addr %s369, 128
          %s371 = scalar_lea.hbm %s0, %s370
          %s372 = sshll.u32 %s365, 4
          %s373 = int_to_ptr.vmem [resolvable:$true] %s372
          %378 = dma.hbm_to_vmem [thread:$0]  %s371, 4096, %s373, %s362, 128, 128, 8
        $region52: #{tpu_custom_call.1} parent=47 // pred_fallthru
          _
      $region48: #{tpu_custom_call.1} parent=5 // pred_fallthru
        _
      %p379 = scmp.le.s32.totalorder 1, %s25
      %p380 = scmp.lt.s32.totalorder %s25, 3
      %p381 = pnand %p379, %p380
      %p382 = pneg %p381
      // Predicated region
      $region53: #{tpu_custom_call.1} parent=5 // pred_check
        _
      $region54: #{tpu_custom_call.1} parent=5 // pred_check_branch
        %384 = sbr.rel (%p381) target = $region56
      $region55: #{tpu_custom_call.1} parent=5 // pred_region
        %s385 = ssub.s32 %s25, 1
        %s386 = sand.u32 %s38, 1
        %s387 = scalar_lea.sflag [#allocation5], %s386
        %s388 = sand.u32 %s38, 1
        %s389 = smul.addr %s388, 256
        %s390 = scalar_lea.vmem [#allocation4], %s389
        // Predicated region
        $region57: #{tpu_custom_call.1} parent=55 // pred_check
          %p391 = pneg %p51
        $region58: #{tpu_custom_call.1} parent=55 // pred_check_branch
          %393 = sbr.rel (%p391) target = $region60
        $region59: #{tpu_custom_call.1} parent=55 // pred_region
          %394 = dma.done %s387, 4096
        $region60: #{tpu_custom_call.1} parent=55 // pred_fallthru
          _
        // Predicated region
        $region61: #{tpu_custom_call.1} parent=55 // pred_check
          %p395 = pneg %p72
        $region62: #{tpu_custom_call.1} parent=55 // pred_check_branch
          %397 = sbr.rel (%p395) target = $region64
        $region63: #{tpu_custom_call.1} parent=55 // pred_region
          %398 = dma.done [#allocation8], 16
        $region64: #{tpu_custom_call.1} parent=55 // pred_fallthru
          _
        // Predicated region
        $region65: #{tpu_custom_call.1} parent=55 // pred_check
          %p399 = pneg %p93
        $region66: #{tpu_custom_call.1} parent=55 // pred_check_branch
          %401 = sbr.rel (%p399) target = $region68
        $region67: #{tpu_custom_call.1} parent=55 // pred_region
          %402 = dma.done [#allocation8], 16
        $region68: #{tpu_custom_call.1} parent=55 // pred_fallthru
          _
        // Predicated region
        $region69: #{tpu_custom_call.1} parent=55 // pred_check
          %p403 = pneg %p114
        $region70: #{tpu_custom_call.1} parent=55 // pred_check_branch
          %405 = sbr.rel (%p403) target = $region72
        $region71: #{tpu_custom_call.1} parent=55 // pred_region
          %406 = dma.done [#allocation11], 9216
        $region72: #{tpu_custom_call.1} parent=55 // pred_fallthru
          _
        // Predicated region
        $region73: #{tpu_custom_call.1} parent=55 // pred_check
          %p407 = pneg %p135
        $region74: #{tpu_custom_call.1} parent=55 // pred_check_branch
          %409 = sbr.rel (%p407) target = $region76
        $region75: #{tpu_custom_call.1} parent=55 // pred_region
          %410 = dma.done [#allocation11], 16
        $region76: #{tpu_custom_call.1} parent=55 // pred_fallthru
          _
        // Predicated region
        $region77: #{tpu_custom_call.1} parent=55 // pred_check
          %p411 = pneg %p156
        $region78: #{tpu_custom_call.1} parent=55 // pred_check_branch
          %413 = sbr.rel (%p411) target = $region80
        $region79: #{tpu_custom_call.1} parent=55 // pred_region
          %414 = dma.done [#allocation14], 16
        $region80: #{tpu_custom_call.1} parent=55 // pred_fallthru
          _
        // Predicated region
        $region81: #{tpu_custom_call.1} parent=55 // pred_check
          %p415 = pneg %p177
        $region82: #{tpu_custom_call.1} parent=55 // pred_check_branch
          %417 = sbr.rel (%p415) target = $region84
        $region83: #{tpu_custom_call.1} parent=55 // pred_region
          %418 = dma.done [#allocation14], 9216
        $region84: #{tpu_custom_call.1} parent=55 // pred_fallthru
          _
        // Predicated region
        $region85: #{tpu_custom_call.1} parent=55 // pred_check
          %p419 = pneg %p198
        $region86: #{tpu_custom_call.1} parent=55 // pred_check_branch
          %421 = sbr.rel (%p419) target = $region88
        $region87: #{tpu_custom_call.1} parent=55 // pred_region
          %422 = dma.done [#allocation17], 1024
        $region88: #{tpu_custom_call.1} parent=55 // pred_fallthru
          _
        // Predicated region
        $region89: #{tpu_custom_call.1} parent=55 // pred_check
          %p423 = pneg %p219
        $region90: #{tpu_custom_call.1} parent=55 // pred_check_branch
          %425 = sbr.rel (%p423) target = $region92
        $region91: #{tpu_custom_call.1} parent=55 // pred_region
          %426 = dma.done [#allocation17], 16
        $region92: #{tpu_custom_call.1} parent=55 // pred_fallthru
          _
        %s427 = sand.u32 %s38, 1
        %s428 = scalar_lea.sflag [#allocation5], %s427
        %s429 = sand.u32 %s38, 1
        %s430 = smul.addr %s429, 256
        %s431 = scalar_lea.vmem [#allocation4], %s430
        %p432 = pneg %p51
        %p433 = pneg %p48
        %p434 = pneg %p72
        %p435 = pneg %p69
        %p436 = pneg %p93
        %p437 = pneg %p90
        %p438 = pneg %p114
        %p439 = pneg %p111
        %p440 = pneg %p135
        %p441 = pneg %p132
        %p442 = pneg %p156
        %p443 = pneg %p153
        %p444 = pneg %p177
        %p445 = pneg %p174
        %p446 = pneg %p198
        %p447 = pneg %p195
        %p448 = pneg %p219
        %p449 = pneg %p216
        %p450 = pneg %p245
        %p451 = pneg %p242
        %s452 = sand.u32 %s232, 1
        %s453 = scalar_lea.sflag [#allocation6], %s452
        %s454 = sand.u32 %s232, 1
        %s455 = smul.addr %s454, 64
        %s456 = scalar_lea.vmem [#allocation19], %s455
        %458 = vst [vmem:[#allocation2] sm:$0xff] 0.0
        %459 = vst [vmem:[#allocation2 + $0x8] sm:$0xff] 0.0
        %460 = vst [vmem:[#allocation2 + $0x10] sm:$0x3] 0.0
        %s461 = scalar_lea.vmem [#allocation2], 408
        %462 = vst [vmem:[%s461] sm:$0xff] 0.0
        %463 = vst [vmem:[%s461 + $0x8] sm:$0xff] 0.0
        %464 = vst [vmem:[%s461 + $0x10] sm:$0x3] 0.0
        %465 = vst [vmem:[#allocation2] sm:$0x1] 0.0
        %466 = vst [vmem:[#allocation2 + $0x18] sm:$0x1] 0.0
        %467 = vst [vmem:[#allocation2 + $0x30] sm:$0x1] 0.0
        %468 = vst [vmem:[#allocation2 + $0x48] sm:$0x1] 0.0
        %469 = vst [vmem:[#allocation2 + $0x60] sm:$0x1] 0.0
        %470 = vst [vmem:[#allocation2 + $0x78] sm:$0x1] 0.0
        %471 = vst [vmem:[#allocation2 + $0x90] sm:$0x1] 0.0
        %472 = vst [vmem:[#allocation2 + $0xa8] sm:$0x1] 0.0
        %473 = vst [vmem:[#allocation2 + $0xc0] sm:$0x1] 0.0
        %474 = vst [vmem:[#allocation2 + $0xd8] sm:$0x1] 0.0
        %475 = vst [vmem:[#allocation2 + $0xf0] sm:$0x1] 0.0
        %476 = vst [vmem:[#allocation2 + $0x108] sm:$0x1] 0.0
        %477 = vst [vmem:[#allocation2 + $0x120] sm:$0x1] 0.0
        %478 = vst [vmem:[#allocation2 + $0x138] sm:$0x1] 0.0
        %479 = vst [vmem:[#allocation2 + $0x150] sm:$0x1] 0.0
        %480 = vst [vmem:[#allocation2 + $0x168] sm:$0x1] 0.0
        %481 = vst [vmem:[#allocation2 + $0x180] sm:$0x1] 0.0
        %482 = vst [vmem:[#allocation2 + $0x198] sm:$0x1] 0.0
        %483 = vst [vmem:[#allocation2 + $0x11] sm:$0x1] 0.0
        %484 = vst [vmem:[#allocation2 + $0x29] sm:$0x1] 0.0
        %485 = vst [vmem:[#allocation2 + $0x41] sm:$0x1] 0.0
        %486 = vst [vmem:[#allocation2 + $0x59] sm:$0x1] 0.0
        %487 = vst [vmem:[#allocation2 + $0x71] sm:$0x1] 0.0
        %488 = vst [vmem:[#allocation2 + $0x89] sm:$0x1] 0.0
        %489 = vst [vmem:[#allocation2 + $0xa1] sm:$0x1] 0.0
        %490 = vst [vmem:[#allocation2 + $0xb9] sm:$0x1] 0.0
        %491 = vst [vmem:[#allocation2 + $0xd1] sm:$0x1] 0.0
        %492 = vst [vmem:[#allocation2 + $0xe9] sm:$0x1] 0.0
        %493 = vst [vmem:[#allocation2 + $0x101] sm:$0x1] 0.0
        %494 = vst [vmem:[#allocation2 + $0x119] sm:$0x1] 0.0
        %495 = vst [vmem:[#allocation2 + $0x131] sm:$0x1] 0.0
        %496 = vst [vmem:[#allocation2 + $0x149] sm:$0x1] 0.0
        %497 = vst [vmem:[#allocation2 + $0x161] sm:$0x1] 0.0
        %498 = vst [vmem:[#allocation2 + $0x179] sm:$0x1] 0.0
        %499 = vst [vmem:[#allocation2 + $0x191] sm:$0x1] 0.0
        %500 = vst [vmem:[#allocation2 + $0x1a9] sm:$0x1] 0.0
        %501 = vst [vmem:[#allocation3] sm:$0xff] 0.0
        %502 = vst [vmem:[#allocation3 + $0x8] sm:$0xff] 0.0
        %503 = vst [vmem:[#allocation3 + $0x10] sm:$0x3] 0.0
        %s504 = scalar_lea.vmem [#allocation3], 408
        %505 = vst [vmem:[%s504] sm:$0xff] 0.0
        %506 = vst [vmem:[%s504 + $0x8] sm:$0xff] 0.0
        %507 = vst [vmem:[%s504 + $0x10] sm:$0x3] 0.0
        %508 = vst [vmem:[#allocation3] sm:$0x1] 0.0
        %509 = vst [vmem:[#allocation3 + $0x18] sm:$0x1] 0.0
        %510 = vst [vmem:[#allocation3 + $0x30] sm:$0x1] 0.0
        %511 = vst [vmem:[#allocation3 + $0x48] sm:$0x1] 0.0
        %512 = vst [vmem:[#allocation3 + $0x60] sm:$0x1] 0.0
        %513 = vst [vmem:[#allocation3 + $0x78] sm:$0x1] 0.0
        %514 = vst [vmem:[#allocation3 + $0x90] sm:$0x1] 0.0
        %515 = vst [vmem:[#allocation3 + $0xa8] sm:$0x1] 0.0
        %516 = vst [vmem:[#allocation3 + $0xc0] sm:$0x1] 0.0
        %517 = vst [vmem:[#allocation3 + $0xd8] sm:$0x1] 0.0
        %518 = vst [vmem:[#allocation3 + $0xf0] sm:$0x1] 0.0
        %519 = vst [vmem:[#allocation3 + $0x108] sm:$0x1] 0.0
        %520 = vst [vmem:[#allocation3 + $0x120] sm:$0x1] 0.0
        %521 = vst [vmem:[#allocation3 + $0x138] sm:$0x1] 0.0
        %522 = vst [vmem:[#allocation3 + $0x150] sm:$0x1] 0.0
        %523 = vst [vmem:[#allocation3 + $0x168] sm:$0x1] 0.0
        %524 = vst [vmem:[#allocation3 + $0x180] sm:$0x1] 0.0
        %525 = vst [vmem:[#allocation3 + $0x198] sm:$0x1] 0.0
        %526 = vst [vmem:[#allocation3 + $0x11] sm:$0x1] 0.0
        %527 = vst [vmem:[#allocation3 + $0x29] sm:$0x1] 0.0
        %528 = vst [vmem:[#allocation3 + $0x41] sm:$0x1] 0.0
        %529 = vst [vmem:[#allocation3 + $0x59] sm:$0x1] 0.0
        %530 = vst [vmem:[#allocation3 + $0x71] sm:$0x1] 0.0
        %531 = vst [vmem:[#allocation3 + $0x89] sm:$0x1] 0.0
        %532 = vst [vmem:[#allocation3 + $0xa1] sm:$0x1] 0.0
        %533 = vst [vmem:[#allocation3 + $0xb9] sm:$0x1] 0.0
        %534 = vst [vmem:[#allocation3 + $0xd1] sm:$0x1] 0.0
        %535 = vst [vmem:[#allocation3 + $0xe9] sm:$0x1] 0.0
        %536 = vst [vmem:[#allocation3 + $0x101] sm:$0x1] 0.0
        %537 = vst [vmem:[#allocation3 + $0x119] sm:$0x1] 0.0
        %538 = vst [vmem:[#allocation3 + $0x131] sm:$0x1] 0.0
        %539 = vst [vmem:[#allocation3 + $0x149] sm:$0x1] 0.0
        %540 = vst [vmem:[#allocation3 + $0x161] sm:$0x1] 0.0
        %541 = vst [vmem:[#allocation3 + $0x179] sm:$0x1] 0.0
        %542 = vst [vmem:[#allocation3 + $0x191] sm:$0x1] 0.0
        %543 = vst [vmem:[#allocation3 + $0x1a9] sm:$0x1] 0.0
        %v544 = vld [vmem:[%s390] sm:$0xff]
        %v545 = vld [vmem:[%s390 + $0x8] sm:$0xff]
        %v546 = vld [vmem:[%s390 + $0x10] sm:$0xff]
        %v547 = vld [vmem:[%s390 + $0x18] sm:$0xff]
        %v548 = vld [vmem:[%s390 + $0x20] sm:$0xff]
        %v549 = vld [vmem:[%s390 + $0x28] sm:$0xff]
        %v550 = vld [vmem:[%s390 + $0x30] sm:$0xff]
        %v551 = vld [vmem:[%s390 + $0x38] sm:$0xff]
        %v552 = vld [vmem:[%s390 + $0x40] sm:$0xff]
        %v553 = vld [vmem:[%s390 + $0x48] sm:$0xff]
        %v554 = vld [vmem:[%s390 + $0x50] sm:$0xff]
        %v555 = vld [vmem:[%s390 + $0x58] sm:$0xff]
        %v556 = vld [vmem:[%s390 + $0x60] sm:$0xff]
        %v557 = vld [vmem:[%s390 + $0x68] sm:$0xff]
        %v558 = vld [vmem:[%s390 + $0x70] sm:$0xff]
        %v559 = vld [vmem:[%s390 + $0x78] sm:$0xff]
        %v560 = vld [vmem:[%s390 + $0x80] sm:$0xff]
        %v561 = vld [vmem:[%s390 + $0x88] sm:$0xff]
        %v562 = vld [vmem:[%s390 + $0x90] sm:$0xff]
        %v563 = vld [vmem:[%s390 + $0x98] sm:$0xff]
        %v564 = vld [vmem:[%s390 + $0xa0] sm:$0xff]
        %v565 = vld [vmem:[%s390 + $0xa8] sm:$0xff]
        %v566 = vld [vmem:[%s390 + $0xb0] sm:$0xff]
        %v567 = vld [vmem:[%s390 + $0xb8] sm:$0xff]
        %v568 = vld [vmem:[%s390 + $0xc0] sm:$0xff]
        %v569 = vld [vmem:[%s390 + $0xc8] sm:$0xff]
        %v570 = vld [vmem:[%s390 + $0xd0] sm:$0xff]
        %v571 = vld [vmem:[%s390 + $0xd8] sm:$0xff]
        %v572 = vld [vmem:[%s390 + $0xe0] sm:$0xff]
        %v573 = vld [vmem:[%s390 + $0xe8] sm:$0xff]
        %v574 = vld [vmem:[%s390 + $0xf0] sm:$0xff]
        %v575 = vld [vmem:[%s390 + $0xf8] sm:$0xff]
        %v576 = vld [vmem:[#allocation7] sm:$0x1]
        %v578 = vlaneseq
        %v579 = vshrl.u32 %v578, 7
        %v580 = vsub.s32 0, %v579
        %v581 = vrot.slane %v576, %v580
        %v583 = vmul.f32 %v544, %v581
        %v584 = vmul.f32 %v545, %v581
        %v585 = vmul.f32 %v546, %v581
        %v586 = vmul.f32 %v547, %v581
        %v587 = vmul.f32 %v548, %v581
        %v588 = vmul.f32 %v549, %v581
        %v589 = vmul.f32 %v550, %v581
        %v590 = vmul.f32 %v551, %v581
        %v591 = vmul.f32 %v552, %v581
        %v592 = vmul.f32 %v553, %v581
        %v593 = vmul.f32 %v554, %v581
        %v594 = vmul.f32 %v555, %v581
        %v595 = vmul.f32 %v556, %v581
        %v596 = vmul.f32 %v557, %v581
        %v597 = vmul.f32 %v558, %v581
        %v598 = vmul.f32 %v559, %v581
        %v599 = vmul.f32 %v560, %v581
        %v600 = vmul.f32 %v561, %v581
        %v601 = vmul.f32 %v562, %v581
        %v602 = vmul.f32 %v563, %v581
        %v603 = vmul.f32 %v564, %v581
        %v604 = vmul.f32 %v565, %v581
        %v605 = vmul.f32 %v566, %v581
        %v606 = vmul.f32 %v567, %v581
        %v607 = vmul.f32 %v568, %v581
        %v608 = vmul.f32 %v569, %v581
        %v609 = vmul.f32 %v570, %v581
        %v610 = vmul.f32 %v571, %v581
        %v611 = vmul.f32 %v572, %v581
        %v612 = vmul.f32 %v573, %v581
        %v613 = vmul.f32 %v574, %v581
        %v614 = vmul.f32 %v575, %v581
        %v615 = vld [vmem:[#allocation9] sm:$0x1]
        %v617 = vlaneseq
        %v618 = vshrl.u32 %v617, 7
        %v619 = vsub.s32 0, %v618
        %v620 = vrot.slane %v615, %v619
        %v622 = vadd.f32 %v583, %v620
        %v623 = vadd.f32 %v584, %v620
        %v624 = vadd.f32 %v585, %v620
        %v625 = vadd.f32 %v586, %v620
        %v626 = vadd.f32 %v587, %v620
        %v627 = vadd.f32 %v588, %v620
        %v628 = vadd.f32 %v589, %v620
        %v629 = vadd.f32 %v590, %v620
        %v630 = vadd.f32 %v591, %v620
        %v631 = vadd.f32 %v592, %v620
        %v632 = vadd.f32 %v593, %v620
        %v633 = vadd.f32 %v594, %v620
        %v634 = vadd.f32 %v595, %v620
        %v635 = vadd.f32 %v596, %v620
        %v636 = vadd.f32 %v597, %v620
        %v637 = vadd.f32 %v598, %v620
        %v638 = vadd.f32 %v599, %v620
        %v639 = vadd.f32 %v600, %v620
        %v640 = vadd.f32 %v601, %v620
        %v641 = vadd.f32 %v602, %v620
        %v642 = vadd.f32 %v603, %v620
        %v643 = vadd.f32 %v604, %v620
        %v644 = vadd.f32 %v605, %v620
        %v645 = vadd.f32 %v606, %v620
        %v646 = vadd.f32 %v607, %v620
        %v647 = vadd.f32 %v608, %v620
        %v648 = vadd.f32 %v609, %v620
        %v649 = vadd.f32 %v610, %v620
        %v650 = vadd.f32 %v611, %v620
        %v651 = vadd.f32 %v612, %v620
        %v652 = vadd.f32 %v613, %v620
        %v653 = vadd.f32 %v614, %v620
        %v654 = vmax.f32 %v622, 0.0
        %v655 = vmax.f32 %v623, 0.0
        %v656 = vmax.f32 %v624, 0.0
        %v657 = vmax.f32 %v625, 0.0
        %v658 = vmax.f32 %v626, 0.0
        %v659 = vmax.f32 %v627, 0.0
        %v660 = vmax.f32 %v628, 0.0
        %v661 = vmax.f32 %v629, 0.0
        %v662 = vmax.f32 %v630, 0.0
        %v663 = vmax.f32 %v631, 0.0
        %v664 = vmax.f32 %v632, 0.0
        %v665 = vmax.f32 %v633, 0.0
        %v666 = vmax.f32 %v634, 0.0
        %v667 = vmax.f32 %v635, 0.0
        %v668 = vmax.f32 %v636, 0.0
        %v669 = vmax.f32 %v637, 0.0
        %v670 = vmax.f32 %v638, 0.0
        %v671 = vmax.f32 %v639, 0.0
        %v672 = vmax.f32 %v640, 0.0
        %v673 = vmax.f32 %v641, 0.0
        %v674 = vmax.f32 %v642, 0.0
        %v675 = vmax.f32 %v643, 0.0
        %v676 = vmax.f32 %v644, 0.0
        %v677 = vmax.f32 %v645, 0.0
        %v678 = vmax.f32 %v646, 0.0
        %v679 = vmax.f32 %v647, 0.0
        %v680 = vmax.f32 %v648, 0.0
        %v681 = vmax.f32 %v649, 0.0
        %v682 = vmax.f32 %v650, 0.0
        %v683 = vmax.f32 %v651, 0.0
        %v684 = vmax.f32 %v652, 0.0
        %v685 = vmax.f32 %v653, 0.0
        %s686 = scalar_lea.vmem [#allocation2], 24
        %687 = vst [vmem:[%s686 + $0x1] sm:$0xff] %v654
        %688 = vst [vmem:[%s686 + $0x9] sm:$0xff] %v655
        %689 = vst [vmem:[%s686 + $0x19] sm:$0xff] %v656
        %690 = vst [vmem:[%s686 + $0x21] sm:$0xff] %v657
        %691 = vst [vmem:[%s686 + $0x31] sm:$0xff] %v658
        %692 = vst [vmem:[%s686 + $0x39] sm:$0xff] %v659
        %693 = vst [vmem:[%s686 + $0x49] sm:$0xff] %v660
        %694 = vst [vmem:[%s686 + $0x51] sm:$0xff] %v661
        %695 = vst [vmem:[%s686 + $0x61] sm:$0xff] %v662
        %696 = vst [vmem:[%s686 + $0x69] sm:$0xff] %v663
        %697 = vst [vmem:[%s686 + $0x79] sm:$0xff] %v664
        %698 = vst [vmem:[%s686 + $0x81] sm:$0xff] %v665
        %699 = vst [vmem:[%s686 + $0x91] sm:$0xff] %v666
        %700 = vst [vmem:[%s686 + $0x99] sm:$0xff] %v667
        %701 = vst [vmem:[%s686 + $0xa9] sm:$0xff] %v668
        %702 = vst [vmem:[%s686 + $0xb1] sm:$0xff] %v669
        %703 = vst [vmem:[%s686 + $0xc1] sm:$0xff] %v670
        %704 = vst [vmem:[%s686 + $0xc9] sm:$0xff] %v671
        %705 = vst [vmem:[%s686 + $0xd9] sm:$0xff] %v672
        %706 = vst [vmem:[%s686 + $0xe1] sm:$0xff] %v673
        %707 = vst [vmem:[%s686 + $0xf1] sm:$0xff] %v674
        %708 = vst [vmem:[%s686 + $0xf9] sm:$0xff] %v675
        %709 = vst [vmem:[%s686 + $0x109] sm:$0xff] %v676
        %710 = vst [vmem:[%s686 + $0x111] sm:$0xff] %v677
        %711 = vst [vmem:[%s686 + $0x121] sm:$0xff] %v678
        %712 = vst [vmem:[%s686 + $0x129] sm:$0xff] %v679
        %713 = vst [vmem:[%s686 + $0x139] sm:$0xff] %v680
        %714 = vst [vmem:[%s686 + $0x141] sm:$0xff] %v681
        %715 = vst [vmem:[%s686 + $0x151] sm:$0xff] %v682
        %716 = vst [vmem:[%s686 + $0x159] sm:$0xff] %v683
        %717 = vst [vmem:[%s686 + $0x169] sm:$0xff] %v684
        %718 = vst [vmem:[%s686 + $0x171] sm:$0xff] %v685
        %v719 = vld [vmem:[#allocation2] sm:$0xff]
        %v720 = vld [vmem:[#allocation2 + $0x8] sm:$0xff]
        %v721 = vld [vmem:[#allocation2 + $0x10] sm:$0x3]
        %v722 = vld [vmem:[#allocation2 + $0x18] sm:$0xff]
        %v723 = vld [vmem:[#allocation2 + $0x20] sm:$0xff]
        %v724 = vld [vmem:[#allocation2 + $0x28] sm:$0x3]
        %v725 = vld [vmem:[#allocation2 + $0x30] sm:$0xff]
        %v726 = vld [vmem:[#allocation2 + $0x38] sm:$0xff]
        %v727 = vld [vmem:[#allocation2 + $0x40] sm:$0x3]
        %v728 = vld [vmem:[#allocation2 + $0x48] sm:$0xff]
        %v729 = vld [vmem:[#allocation2 + $0x50] sm:$0xff]
        %v730 = vld [vmem:[#allocation2 + $0x58] sm:$0x3]
        %v731 = vld [vmem:[#allocation2 + $0x60] sm:$0xff]
        %v732 = vld [vmem:[#allocation2 + $0x68] sm:$0xff]
        %v733 = vld [vmem:[#allocation2 + $0x70] sm:$0x3]
        %v734 = vld [vmem:[#allocation2 + $0x78] sm:$0xff]
        %v735 = vld [vmem:[#allocation2 + $0x80] sm:$0xff]
        %v736 = vld [vmem:[#allocation2 + $0x88] sm:$0x3]
        %v737 = vld [vmem:[#allocation2 + $0x90] sm:$0xff]
        %v738 = vld [vmem:[#allocation2 + $0x98] sm:$0xff]
        %v739 = vld [vmem:[#allocation2 + $0xa0] sm:$0x3]
        %v740 = vld [vmem:[#allocation2 + $0xa8] sm:$0xff]
        %v741 = vld [vmem:[#allocation2 + $0xb0] sm:$0xff]
        %v742 = vld [vmem:[#allocation2 + $0xb8] sm:$0x3]
        %v743 = vld [vmem:[#allocation2 + $0xc0] sm:$0xff]
        %v744 = vld [vmem:[#allocation2 + $0xc8] sm:$0xff]
        %v745 = vld [vmem:[#allocation2 + $0xd0] sm:$0x3]
        %v746 = vld [vmem:[#allocation2 + $0xd8] sm:$0xff]
        %v747 = vld [vmem:[#allocation2 + $0xe0] sm:$0xff]
        %v748 = vld [vmem:[#allocation2 + $0xe8] sm:$0x3]
        %v749 = vld [vmem:[#allocation2 + $0xf0] sm:$0xff]
        %v750 = vld [vmem:[#allocation2 + $0xf8] sm:$0xff]
        %v751 = vld [vmem:[#allocation2 + $0x100] sm:$0x3]
        %v752 = vld [vmem:[#allocation2 + $0x108] sm:$0xff]
        %v753 = vld [vmem:[#allocation2 + $0x110] sm:$0xff]
        %v754 = vld [vmem:[#allocation2 + $0x118] sm:$0x3]
        %v755 = vld [vmem:[#allocation2 + $0x120] sm:$0xff]
        %v756 = vld [vmem:[#allocation2 + $0x128] sm:$0xff]
        %v757 = vld [vmem:[#allocation2 + $0x130] sm:$0x3]
        %v758 = vld [vmem:[#allocation2 + $0x138] sm:$0xff]
        %v759 = vld [vmem:[#allocation2 + $0x140] sm:$0xff]
        %v760 = vld [vmem:[#allocation2 + $0x148] sm:$0x3]
        %v761 = vld [vmem:[#allocation2 + $0x150] sm:$0xff]
        %v762 = vld [vmem:[#allocation2 + $0x158] sm:$0xff]
        %v763 = vld [vmem:[#allocation2 + $0x160] sm:$0x3]
        %v764 = vld [vmem:[#allocation2 + $0x168] sm:$0xff]
        %v765 = vld [vmem:[#allocation2 + $0x170] sm:$0xff]
        %v766 = vld [vmem:[#allocation2 + $0x178] sm:$0x3]
        %vm815 = vcmask 1046528
        %v816 = vrot.slane %v719, 1
        %v817 = vrot.slane %v720, 1
        %v818 = vsel %vm815, %v816, %v817
        %v819 = vrot.slane %v721, 1
        %v820 = vsel %vm815, %v817, %v819
        %v821 = vrot.slane %v722, 1
        %v822 = vrot.slane %v723, 1
        %v823 = vsel %vm815, %v821, %v822
        %v824 = vrot.slane %v724, 1
        %v825 = vsel %vm815, %v822, %v824
        %v826 = vrot.slane %v725, 1
        %v827 = vrot.slane %v726, 1
        %v828 = vsel %vm815, %v826, %v827
        %v829 = vrot.slane %v727, 1
        %v830 = vsel %vm815, %v827, %v829
        %v831 = vrot.slane %v728, 1
        %v832 = vrot.slane %v729, 1
        %v833 = vsel %vm815, %v831, %v832
        %v834 = vrot.slane %v730, 1
        %v835 = vsel %vm815, %v832, %v834
        %v836 = vrot.slane %v731, 1
        %v837 = vrot.slane %v732, 1
        %v838 = vsel %vm815, %v836, %v837
        %v839 = vrot.slane %v733, 1
        %v840 = vsel %vm815, %v837, %v839
        %v841 = vrot.slane %v734, 1
        %v842 = vrot.slane %v735, 1
        %v843 = vsel %vm815, %v841, %v842
        %v844 = vrot.slane %v736, 1
        %v845 = vsel %vm815, %v842, %v844
        %v846 = vrot.slane %v737, 1
        %v847 = vrot.slane %v738, 1
        %v848 = vsel %vm815, %v846, %v847
        %v849 = vrot.slane %v739, 1
        %v850 = vsel %vm815, %v847, %v849
        %v851 = vrot.slane %v740, 1
        %v852 = vrot.slane %v741, 1
        %v853 = vsel %vm815, %v851, %v852
        %v854 = vrot.slane %v742, 1
        %v855 = vsel %vm815, %v852, %v854
        %v856 = vrot.slane %v743, 1
        %v857 = vrot.slane %v744, 1
        %v858 = vsel %vm815, %v856, %v857
        %v859 = vrot.slane %v745, 1
        %v860 = vsel %vm815, %v857, %v859
        %v861 = vrot.slane %v746, 1
        %v862 = vrot.slane %v747, 1
        %v863 = vsel %vm815, %v861, %v862
        %v864 = vrot.slane %v748, 1
        %v865 = vsel %vm815, %v862, %v864
        %v866 = vrot.slane %v749, 1
        %v867 = vrot.slane %v750, 1
        %v868 = vsel %vm815, %v866, %v867
        %v869 = vrot.slane %v751, 1
        %v870 = vsel %vm815, %v867, %v869
        %v871 = vrot.slane %v752, 1
        %v872 = vrot.slane %v753, 1
        %v873 = vsel %vm815, %v871, %v872
        %v874 = vrot.slane %v754, 1
        %v875 = vsel %vm815, %v872, %v874
        %v876 = vrot.slane %v755, 1
        %v877 = vrot.slane %v756, 1
        %v878 = vsel %vm815, %v876, %v877
        %v879 = vrot.slane %v757, 1
        %v880 = vsel %vm815, %v877, %v879
        %v881 = vrot.slane %v758, 1
        %v882 = vrot.slane %v759, 1
        %v883 = vsel %vm815, %v881, %v882
        %v884 = vrot.slane %v760, 1
        %v885 = vsel %vm815, %v882, %v884
        %v886 = vrot.slane %v761, 1
        %v887 = vrot.slane %v762, 1
        %v888 = vsel %vm815, %v886, %v887
        %v889 = vrot.slane %v763, 1
        %v890 = vsel %vm815, %v887, %v889
        %v891 = vrot.slane %v764, 1
        %v892 = vrot.slane %v765, 1
        %v893 = vsel %vm815, %v891, %v892
        %v894 = vrot.slane %v766, 1
        %v895 = vsel %vm815, %v892, %v894
        %vm928 = vcmask 1045504
        %v929 = vrot.slane %v719, 2
        %v930 = vrot.slane %v720, 2
        %v931 = vsel %vm928, %v929, %v930
        %v932 = vrot.slane %v721, 2
        %v933 = vsel %vm928, %v930, %v932
        %v934 = vrot.slane %v722, 2
        %v935 = vrot.slane %v723, 2
        %v936 = vsel %vm928, %v934, %v935
        %v937 = vrot.slane %v724, 2
        %v938 = vsel %vm928, %v935, %v937
        %v939 = vrot.slane %v725, 2
        %v940 = vrot.slane %v726, 2
        %v941 = vsel %vm928, %v939, %v940
        %v942 = vrot.slane %v727, 2
        %v943 = vsel %vm928, %v940, %v942
        %v944 = vrot.slane %v728, 2
        %v945 = vrot.slane %v729, 2
        %v946 = vsel %vm928, %v944, %v945
        %v947 = vrot.slane %v730, 2
        %v948 = vsel %vm928, %v945, %v947
        %v949 = vrot.slane %v731, 2
        %v950 = vrot.slane %v732, 2
        %v951 = vsel %vm928, %v949, %v950
        %v952 = vrot.slane %v733, 2
        %v953 = vsel %vm928, %v950, %v952
        %v954 = vrot.slane %v734, 2
        %v955 = vrot.slane %v735, 2
        %v956 = vsel %vm928, %v954, %v955
        %v957 = vrot.slane %v736, 2
        %v958 = vsel %vm928, %v955, %v957
        %v959 = vrot.slane %v737, 2
        %v960 = vrot.slane %v738, 2
        %v961 = vsel %vm928, %v959, %v960
        %v962 = vrot.slane %v739, 2
        %v963 = vsel %vm928, %v960, %v962
        %v964 = vrot.slane %v740, 2
        %v965 = vrot.slane %v741, 2
        %v966 = vsel %vm928, %v964, %v965
        %v967 = vrot.slane %v742, 2
        %v968 = vsel %vm928, %v965, %v967
        %v969 = vrot.slane %v743, 2
        %v970 = vrot.slane %v744, 2
        %v971 = vsel %vm928, %v969, %v970
        %v972 = vrot.slane %v745, 2
        %v973 = vsel %vm928, %v970, %v972
        %v974 = vrot.slane %v746, 2
        %v975 = vrot.slane %v747, 2
        %v976 = vsel %vm928, %v974, %v975
        %v977 = vrot.slane %v748, 2
        %v978 = vsel %vm928, %v975, %v977
        %v979 = vrot.slane %v749, 2
        %v980 = vrot.slane %v750, 2
        %v981 = vsel %vm928, %v979, %v980
        %v982 = vrot.slane %v751, 2
        %v983 = vsel %vm928, %v980, %v982
        %v984 = vrot.slane %v752, 2
        %v985 = vrot.slane %v753, 2
        %v986 = vsel %vm928, %v984, %v985
        %v987 = vrot.slane %v754, 2
        %v988 = vsel %vm928, %v985, %v987
        %v989 = vrot.slane %v755, 2
        %v990 = vrot.slane %v756, 2
        %v991 = vsel %vm928, %v989, %v990
        %v992 = vrot.slane %v757, 2
        %v993 = vsel %vm928, %v990, %v992
        %v994 = vrot.slane %v758, 2
        %v995 = vrot.slane %v759, 2
        %v996 = vsel %vm928, %v994, %v995
        %v997 = vrot.slane %v760, 2
        %v998 = vsel %vm928, %v995, %v997
        %v999 = vrot.slane %v761, 2
        %v1000 = vrot.slane %v762, 2
        %v1001 = vsel %vm928, %v999, %v1000
        %v1002 = vrot.slane %v763, 2
        %v1003 = vsel %vm928, %v1000, %v1002
        %v1004 = vrot.slane %v764, 2
        %v1005 = vrot.slane %v765, 2
        %v1006 = vsel %vm928, %v1004, %v1005
        %v1007 = vrot.slane %v766, 2
        %v1008 = vsel %vm928, %v1005, %v1007
        %v1041 = vld [vmem:[#allocation10] sm:$0xf]
        %v1042 = vld [vmem:[#allocation10 + $0x4] sm:$0xf]
        %v1043 = vld [vmem:[#allocation10 + $0x8] sm:$0xf]
        %v1044 = vld [vmem:[#allocation10 + $0xc] sm:$0xf]
        %v1045 = vld [vmem:[#allocation10 + $0x10] sm:$0xf]
        %v1046 = vld [vmem:[#allocation10 + $0x14] sm:$0xf]
        %v1047 = vld [vmem:[#allocation10 + $0x18] sm:$0xf]
        %v1048 = vld [vmem:[#allocation10 + $0x1c] sm:$0xf]
        %v1049 = vld [vmem:[#allocation10 + $0x20] sm:$0xf]
        %v1050 = vld [vmem:[#allocation10 + $0x24] sm:$0xf]
        %v1051 = vld [vmem:[#allocation10 + $0x28] sm:$0xf]
        %v1052 = vld [vmem:[#allocation10 + $0x2c] sm:$0xf]
        %v1053 = vld [vmem:[#allocation10 + $0x30] sm:$0xf]
        %v1054 = vld [vmem:[#allocation10 + $0x34] sm:$0xf]
        %v1055 = vld [vmem:[#allocation10 + $0x38] sm:$0xf]
        %v1056 = vld [vmem:[#allocation10 + $0x3c] sm:$0xf]
        %v1057 = vld [vmem:[#allocation10 + $0x40] sm:$0xf]
        %v1058 = vld [vmem:[#allocation10 + $0x44] sm:$0xf]
        %v1059 = vld [vmem:[#allocation10 + $0x48] sm:$0xf]
        %v1060 = vld [vmem:[#allocation10 + $0x4c] sm:$0xf]
        %v1061 = vld [vmem:[#allocation10 + $0x50] sm:$0xf]
        %v1062 = vld [vmem:[#allocation10 + $0x54] sm:$0xf]
        %v1063 = vld [vmem:[#allocation10 + $0x58] sm:$0xf]
        %v1064 = vld [vmem:[#allocation10 + $0x5c] sm:$0xf]
        %v1065 = vld [vmem:[#allocation10 + $0x60] sm:$0xf]
        %v1066 = vld [vmem:[#allocation10 + $0x64] sm:$0xf]
        %v1067 = vld [vmem:[#allocation10 + $0x68] sm:$0xf]
        %v1068 = vld [vmem:[#allocation10 + $0x6c] sm:$0xf]
        %v1069 = vld [vmem:[#allocation10 + $0x70] sm:$0xf]
        %v1070 = vld [vmem:[#allocation10 + $0x74] sm:$0xf]
        %v1071 = vld [vmem:[#allocation10 + $0x78] sm:$0xf]
        %v1072 = vld [vmem:[#allocation10 + $0x7c] sm:$0xf]
        %v1073 = vld [vmem:[#allocation10 + $0x80] sm:$0xf]
        %v1074 = vld [vmem:[#allocation10 + $0x84] sm:$0xf]
        %v1075 = vld [vmem:[#allocation10 + $0x88] sm:$0xf]
        %v1076 = vld [vmem:[#allocation10 + $0x8c] sm:$0xf]
        %v1077 = vld [vmem:[#allocation10 + $0x90] sm:$0xf]
        %v1078 = vld [vmem:[#allocation10 + $0x94] sm:$0xf]
        %v1079 = vld [vmem:[#allocation10 + $0x98] sm:$0xf]
        %v1080 = vld [vmem:[#allocation10 + $0x9c] sm:$0xf]
        %v1081 = vld [vmem:[#allocation10 + $0xa0] sm:$0xf]
        %v1082 = vld [vmem:[#allocation10 + $0xa4] sm:$0xf]
        %v1083 = vld [vmem:[#allocation10 + $0xa8] sm:$0xf]
        %v1084 = vld [vmem:[#allocation10 + $0xac] sm:$0xf]
        %v1085 = vld [vmem:[#allocation10 + $0xb0] sm:$0xf]
        %v1086 = vld [vmem:[#allocation10 + $0xb4] sm:$0xf]
        %v1087 = vld [vmem:[#allocation10 + $0xb8] sm:$0xf]
        %v1088 = vld [vmem:[#allocation10 + $0xbc] sm:$0xf]
        %v1089 = vpack.c.bf16 %v720, %v719
        %v1090 = vpack.c.bf16 %v820, %v818
        %v1091 = vpack.c.bf16 %v933, %v931
        %v1092 = vpack.c.bf16 %v723, %v722
        %v1093 = vpack.c.bf16 %v825, %v823
        %v1094 = vpack.c.bf16 %v938, %v936
        %v1095 = vpack.c.bf16 %v726, %v725
        %v1096 = vpack.c.bf16 %v830, %v828
        %v1097 = vpack.c.bf16 %v943, %v941
        %v1098 = vpack.c.bf16 %v729, %v728
        %v1099 = vpack.c.bf16 %v835, %v833
        %v1100 = vpack.c.bf16 %v948, %v946
        %v1101 = vpack.c.bf16 %v732, %v731
        %v1102 = vpack.c.bf16 %v840, %v838
        %v1103 = vpack.c.bf16 %v953, %v951
        %v1104 = vpack.c.bf16 %v735, %v734
        %v1105 = vpack.c.bf16 %v845, %v843
        %v1106 = vpack.c.bf16 %v958, %v956
        %v1107 = vpack.c.bf16 %v738, %v737
        %v1108 = vpack.c.bf16 %v850, %v848
        %v1109 = vpack.c.bf16 %v963, %v961
        %v1110 = vpack.c.bf16 %v741, %v740
        %v1111 = vpack.c.bf16 %v855, %v853
        %v1112 = vpack.c.bf16 %v968, %v966
        %v1113 = vpack.c.bf16 %v744, %v743
        %v1114 = vpack.c.bf16 %v860, %v858
        %v1115 = vpack.c.bf16 %v973, %v971
        %v1116 = vpack.c.bf16 %v747, %v746
        %v1117 = vpack.c.bf16 %v865, %v863
        %v1118 = vpack.c.bf16 %v978, %v976
        %v1119 = vpack.c.bf16 %v750, %v749
        %v1120 = vpack.c.bf16 %v870, %v868
        %v1121 = vpack.c.bf16 %v983, %v981
        %v1122 = vpack.c.bf16 %v753, %v752
        %v1123 = vpack.c.bf16 %v875, %v873
        %v1124 = vpack.c.bf16 %v988, %v986
        %v1125 = vpack.c.bf16 %v756, %v755
        %v1126 = vpack.c.bf16 %v880, %v878
        %v1127 = vpack.c.bf16 %v993, %v991
        %v1128 = vpack.c.bf16 %v759, %v758
        %v1129 = vpack.c.bf16 %v885, %v883
        %v1130 = vpack.c.bf16 %v998, %v996
        %v1131 = vpack.c.bf16 %v762, %v761
        %v1132 = vpack.c.bf16 %v890, %v888
        %v1133 = vpack.c.bf16 %v1003, %v1001
        %v1134 = vpack.c.bf16 %v765, %v764
        %v1135 = vpack.c.bf16 %v895, %v893
        %v1136 = vpack.c.bf16 %v1008, %v1006
        %v1137 = vld [vmem:[%s686] sm:$0xff]
        %v1138 = vld [vmem:[%s686 + $0x8] sm:$0xff]
        %v1139 = vld [vmem:[%s686 + $0x10] sm:$0x3]
        %v1140 = vld [vmem:[%s686 + $0x18] sm:$0xff]
        %v1141 = vld [vmem:[%s686 + $0x20] sm:$0xff]
        %v1142 = vld [vmem:[%s686 + $0x28] sm:$0x3]
        %v1143 = vld [vmem:[%s686 + $0x30] sm:$0xff]
        %v1144 = vld [vmem:[%s686 + $0x38] sm:$0xff]
        %v1145 = vld [vmem:[%s686 + $0x40] sm:$0x3]
        %v1146 = vld [vmem:[%s686 + $0x48] sm:$0xff]
        %v1147 = vld [vmem:[%s686 + $0x50] sm:$0xff]
        %v1148 = vld [vmem:[%s686 + $0x58] sm:$0x3]
        %v1149 = vld [vmem:[%s686 + $0x60] sm:$0xff]
        %v1150 = vld [vmem:[%s686 + $0x68] sm:$0xff]
        %v1151 = vld [vmem:[%s686 + $0x70] sm:$0x3]
        %v1152 = vld [vmem:[%s686 + $0x78] sm:$0xff]
        %v1153 = vld [vmem:[%s686 + $0x80] sm:$0xff]
        %v1154 = vld [vmem:[%s686 + $0x88] sm:$0x3]
        %v1155 = vld [vmem:[%s686 + $0x90] sm:$0xff]
        %v1156 = vld [vmem:[%s686 + $0x98] sm:$0xff]
        %v1157 = vld [vmem:[%s686 + $0xa0] sm:$0x3]
        %v1158 = vld [vmem:[%s686 + $0xa8] sm:$0xff]
        %v1159 = vld [vmem:[%s686 + $0xb0] sm:$0xff]
        %v1160 = vld [vmem:[%s686 + $0xb8] sm:$0x3]
        %v1161 = vld [vmem:[%s686 + $0xc0] sm:$0xff]
        %v1162 = vld [vmem:[%s686 + $0xc8] sm:$0xff]
        %v1163 = vld [vmem:[%s686 + $0xd0] sm:$0x3]
        %v1164 = vld [vmem:[%s686 + $0xd8] sm:$0xff]
        %v1165 = vld [vmem:[%s686 + $0xe0] sm:$0xff]
        %v1166 = vld [vmem:[%s686 + $0xe8] sm:$0x3]
        %v1167 = vld [vmem:[%s686 + $0xf0] sm:$0xff]
        %v1168 = vld [vmem:[%s686 + $0xf8] sm:$0xff]
        %v1169 = vld [vmem:[%s686 + $0x100] sm:$0x3]
        %v1170 = vld [vmem:[%s686 + $0x108] sm:$0xff]
        %v1171 = vld [vmem:[%s686 + $0x110] sm:$0xff]
        %v1172 = vld [vmem:[%s686 + $0x118] sm:$0x3]
        %v1173 = vld [vmem:[%s686 + $0x120] sm:$0xff]
        %v1174 = vld [vmem:[%s686 + $0x128] sm:$0xff]
        %v1175 = vld [vmem:[%s686 + $0x130] sm:$0x3]
        %v1176 = vld [vmem:[%s686 + $0x138] sm:$0xff]
        %v1177 = vld [vmem:[%s686 + $0x140] sm:$0xff]
        %v1178 = vld [vmem:[%s686 + $0x148] sm:$0x3]
        %v1179 = vld [vmem:[%s686 + $0x150] sm:$0xff]
        %v1180 = vld [vmem:[%s686 + $0x158] sm:$0xff]
        %v1181 = vld [vmem:[%s686 + $0x160] sm:$0x3]
        %v1182 = vld [vmem:[%s686 + $0x168] sm:$0xff]
        %v1183 = vld [vmem:[%s686 + $0x170] sm:$0xff]
        %v1184 = vld [vmem:[%s686 + $0x178] sm:$0x3]
        %v1233 = vrot.slane %v1137, 1
        %v1234 = vrot.slane %v1138, 1
        %v1235 = vsel %vm815, %v1233, %v1234
        %v1236 = vrot.slane %v1139, 1
        %v1237 = vsel %vm815, %v1234, %v1236
        %v1238 = vrot.slane %v1140, 1
        %v1239 = vrot.slane %v1141, 1
        %v1240 = vsel %vm815, %v1238, %v1239
        %v1241 = vrot.slane %v1142, 1
        %v1242 = vsel %vm815, %v1239, %v1241
        %v1243 = vrot.slane %v1143, 1
        %v1244 = vrot.slane %v1144, 1
        %v1245 = vsel %vm815, %v1243, %v1244
        %v1246 = vrot.slane %v1145, 1
        %v1247 = vsel %vm815, %v1244, %v1246
        %v1248 = vrot.slane %v1146, 1
        %v1249 = vrot.slane %v1147, 1
        %v1250 = vsel %vm815, %v1248, %v1249
        %v1251 = vrot.slane %v1148, 1
        %v1252 = vsel %vm815, %v1249, %v1251
        %v1253 = vrot.slane %v1149, 1
        %v1254 = vrot.slane %v1150, 1
        %v1255 = vsel %vm815, %v1253, %v1254
        %v1256 = vrot.slane %v1151, 1
        %v1257 = vsel %vm815, %v1254, %v1256
        %v1258 = vrot.slane %v1152, 1
        %v1259 = vrot.slane %v1153, 1
        %v1260 = vsel %vm815, %v1258, %v1259
        %v1261 = vrot.slane %v1154, 1
        %v1262 = vsel %vm815, %v1259, %v1261
        %v1263 = vrot.slane %v1155, 1
        %v1264 = vrot.slane %v1156, 1
        %v1265 = vsel %vm815, %v1263, %v1264
        %v1266 = vrot.slane %v1157, 1
        %v1267 = vsel %vm815, %v1264, %v1266
        %v1268 = vrot.slane %v1158, 1
        %v1269 = vrot.slane %v1159, 1
        %v1270 = vsel %vm815, %v1268, %v1269
        %v1271 = vrot.slane %v1160, 1
        %v1272 = vsel %vm815, %v1269, %v1271
        %v1273 = vrot.slane %v1161, 1
        %v1274 = vrot.slane %v1162, 1
        %v1275 = vsel %vm815, %v1273, %v1274
        %v1276 = vrot.slane %v1163, 1
        %v1277 = vsel %vm815, %v1274, %v1276
        %v1278 = vrot.slane %v1164, 1
        %v1279 = vrot.slane %v1165, 1
        %v1280 = vsel %vm815, %v1278, %v1279
        %v1281 = vrot.slane %v1166, 1
        %v1282 = vsel %vm815, %v1279, %v1281
        %v1283 = vrot.slane %v1167, 1
        %v1284 = vrot.slane %v1168, 1
        %v1285 = vsel %vm815, %v1283, %v1284
        %v1286 = vrot.slane %v1169, 1
        %v1287 = vsel %vm815, %v1284, %v1286
        %v1288 = vrot.slane %v1170, 1
        %v1289 = vrot.slane %v1171, 1
        %v1290 = vsel %vm815, %v1288, %v1289
        %v1291 = vrot.slane %v1172, 1
        %v1292 = vsel %vm815, %v1289, %v1291
        %v1293 = vrot.slane %v1173, 1
        %v1294 = vrot.slane %v1174, 1
        %v1295 = vsel %vm815, %v1293, %v1294
        %v1296 = vrot.slane %v1175, 1
        %v1297 = vsel %vm815, %v1294, %v1296
        %v1298 = vrot.slane %v1176, 1
        %v1299 = vrot.slane %v1177, 1
        %v1300 = vsel %vm815, %v1298, %v1299
        %v1301 = vrot.slane %v1178, 1
        %v1302 = vsel %vm815, %v1299, %v1301
        %v1303 = vrot.slane %v1179, 1
        %v1304 = vrot.slane %v1180, 1
        %v1305 = vsel %vm815, %v1303, %v1304
        %v1306 = vrot.slane %v1181, 1
        %v1307 = vsel %vm815, %v1304, %v1306
        %v1308 = vrot.slane %v1182, 1
        %v1309 = vrot.slane %v1183, 1
        %v1310 = vsel %vm815, %v1308, %v1309
        %v1311 = vrot.slane %v1184, 1
        %v1312 = vsel %vm815, %v1309, %v1311
        %v1345 = vrot.slane %v1137, 2
        %v1346 = vrot.slane %v1138, 2
        %v1347 = vsel %vm928, %v1345, %v1346
        %v1348 = vrot.slane %v1139, 2
        %v1349 = vsel %vm928, %v1346, %v1348
        %v1350 = vrot.slane %v1140, 2
        %v1351 = vrot.slane %v1141, 2
        %v1352 = vsel %vm928, %v1350, %v1351
        %v1353 = vrot.slane %v1142, 2
        %v1354 = vsel %vm928, %v1351, %v1353
        %v1355 = vrot.slane %v1143, 2
        %v1356 = vrot.slane %v1144, 2
        %v1357 = vsel %vm928, %v1355, %v1356
        %v1358 = vrot.slane %v1145, 2
        %v1359 = vsel %vm928, %v1356, %v1358
        %v1360 = vrot.slane %v1146, 2
        %v1361 = vrot.slane %v1147, 2
        %v1362 = vsel %vm928, %v1360, %v1361
        %v1363 = vrot.slane %v1148, 2
        %v1364 = vsel %vm928, %v1361, %v1363
        %v1365 = vrot.slane %v1149, 2
        %v1366 = vrot.slane %v1150, 2
        %v1367 = vsel %vm928, %v1365, %v1366
        %v1368 = vrot.slane %v1151, 2
        %v1369 = vsel %vm928, %v1366, %v1368
        %v1370 = vrot.slane %v1152, 2
        %v1371 = vrot.slane %v1153, 2
        %v1372 = vsel %vm928, %v1370, %v1371
        %v1373 = vrot.slane %v1154, 2
        %v1374 = vsel %vm928, %v1371, %v1373
        %v1375 = vrot.slane %v1155, 2
        %v1376 = vrot.slane %v1156, 2
        %v1377 = vsel %vm928, %v1375, %v1376
        %v1378 = vrot.slane %v1157, 2
        %v1379 = vsel %vm928, %v1376, %v1378
        %v1380 = vrot.slane %v1158, 2
        %v1381 = vrot.slane %v1159, 2
        %v1382 = vsel %vm928, %v1380, %v1381
        %v1383 = vrot.slane %v1160, 2
        %v1384 = vsel %vm928, %v1381, %v1383
        %v1385 = vrot.slane %v1161, 2
        %v1386 = vrot.slane %v1162, 2
        %v1387 = vsel %vm928, %v1385, %v1386
        %v1388 = vrot.slane %v1163, 2
        %v1389 = vsel %vm928, %v1386, %v1388
        %v1390 = vrot.slane %v1164, 2
        %v1391 = vrot.slane %v1165, 2
        %v1392 = vsel %vm928, %v1390, %v1391
        %v1393 = vrot.slane %v1166, 2
        %v1394 = vsel %vm928, %v1391, %v1393
        %v1395 = vrot.slane %v1167, 2
        %v1396 = vrot.slane %v1168, 2
        %v1397 = vsel %vm928, %v1395, %v1396
        %v1398 = vrot.slane %v1169, 2
        %v1399 = vsel %vm928, %v1396, %v1398
        %v1400 = vrot.slane %v1170, 2
        %v1401 = vrot.slane %v1171, 2
        %v1402 = vsel %vm928, %v1400, %v1401
        %v1403 = vrot.slane %v1172, 2
        %v1404 = vsel %vm928, %v1401, %v1403
        %v1405 = vrot.slane %v1173, 2
        %v1406 = vrot.slane %v1174, 2
        %v1407 = vsel %vm928, %v1405, %v1406
        %v1408 = vrot.slane %v1175, 2
        %v1409 = vsel %vm928, %v1406, %v1408
        %v1410 = vrot.slane %v1176, 2
        %v1411 = vrot.slane %v1177, 2
        %v1412 = vsel %vm928, %v1410, %v1411
        %v1413 = vrot.slane %v1178, 2
        %v1414 = vsel %vm928, %v1411, %v1413
        %v1415 = vrot.slane %v1179, 2
        %v1416 = vrot.slane %v1180, 2
        %v1417 = vsel %vm928, %v1415, %v1416
        %v1418 = vrot.slane %v1181, 2
        %v1419 = vsel %vm928, %v1416, %v1418
        %v1420 = vrot.slane %v1182, 2
        %v1421 = vrot.slane %v1183, 2
        %v1422 = vsel %vm928, %v1420, %v1421
        %v1423 = vrot.slane %v1184, 2
        %v1424 = vsel %vm928, %v1421, %v1423
        %s1457 = scalar_lea.vmem [#allocation10], 192
        %v1458 = vld [vmem:[%s1457] sm:$0xf]
        %v1459 = vld [vmem:[%s1457 + $0x4] sm:$0xf]
        %v1460 = vld [vmem:[%s1457 + $0x8] sm:$0xf]
        %v1461 = vld [vmem:[%s1457 + $0xc] sm:$0xf]
        %v1462 = vld [vmem:[%s1457 + $0x10] sm:$0xf]
        %v1463 = vld [vmem:[%s1457 + $0x14] sm:$0xf]
        %v1464 = vld [vmem:[%s1457 + $0x18] sm:$0xf]
        %v1465 = vld [vmem:[%s1457 + $0x1c] sm:$0xf]
        %v1466 = vld [vmem:[%s1457 + $0x20] sm:$0xf]
        %v1467 = vld [vmem:[%s1457 + $0x24] sm:$0xf]
        %v1468 = vld [vmem:[%s1457 + $0x28] sm:$0xf]
        %v1469 = vld [vmem:[%s1457 + $0x2c] sm:$0xf]
        %v1470 = vld [vmem:[%s1457 + $0x30] sm:$0xf]
        %v1471 = vld [vmem:[%s1457 + $0x34] sm:$0xf]
        %v1472 = vld [vmem:[%s1457 + $0x38] sm:$0xf]
        %v1473 = vld [vmem:[%s1457 + $0x3c] sm:$0xf]
        %v1474 = vld [vmem:[%s1457 + $0x40] sm:$0xf]
        %v1475 = vld [vmem:[%s1457 + $0x44] sm:$0xf]
        %v1476 = vld [vmem:[%s1457 + $0x48] sm:$0xf]
        %v1477 = vld [vmem:[%s1457 + $0x4c] sm:$0xf]
        %v1478 = vld [vmem:[%s1457 + $0x50] sm:$0xf]
        %v1479 = vld [vmem:[%s1457 + $0x54] sm:$0xf]
        %v1480 = vld [vmem:[%s1457 + $0x58] sm:$0xf]
        %v1481 = vld [vmem:[%s1457 + $0x5c] sm:$0xf]
        %v1482 = vld [vmem:[%s1457 + $0x60] sm:$0xf]
        %v1483 = vld [vmem:[%s1457 + $0x64] sm:$0xf]
        %v1484 = vld [vmem:[%s1457 + $0x68] sm:$0xf]
        %v1485 = vld [vmem:[%s1457 + $0x6c] sm:$0xf]
        %v1486 = vld [vmem:[%s1457 + $0x70] sm:$0xf]
        %v1487 = vld [vmem:[%s1457 + $0x74] sm:$0xf]
        %v1488 = vld [vmem:[%s1457 + $0x78] sm:$0xf]
        %v1489 = vld [vmem:[%s1457 + $0x7c] sm:$0xf]
        %v1490 = vld [vmem:[%s1457 + $0x80] sm:$0xf]
        %v1491 = vld [vmem:[%s1457 + $0x84] sm:$0xf]
        %v1492 = vld [vmem:[%s1457 + $0x88] sm:$0xf]
        %v1493 = vld [vmem:[%s1457 + $0x8c] sm:$0xf]
        %v1494 = vld [vmem:[%s1457 + $0x90] sm:$0xf]
        %v1495 = vld [vmem:[%s1457 + $0x94] sm:$0xf]
        %v1496 = vld [vmem:[%s1457 + $0x98] sm:$0xf]
        %v1497 = vld [vmem:[%s1457 + $0x9c] sm:$0xf]
        %v1498 = vld [vmem:[%s1457 + $0xa0] sm:$0xf]
        %v1499 = vld [vmem:[%s1457 + $0xa4] sm:$0xf]
        %v1500 = vld [vmem:[%s1457 + $0xa8] sm:$0xf]
        %v1501 = vld [vmem:[%s1457 + $0xac] sm:$0xf]
        %v1502 = vld [vmem:[%s1457 + $0xb0] sm:$0xf]
        %v1503 = vld [vmem:[%s1457 + $0xb4] sm:$0xf]
        %v1504 = vld [vmem:[%s1457 + $0xb8] sm:$0xf]
        %v1505 = vld [vmem:[%s1457 + $0xbc] sm:$0xf]
        %v1506 = vpack.c.bf16 %v1138, %v1137
        %v1507 = vpack.c.bf16 %v1237, %v1235
        %v1508 = vpack.c.bf16 %v1349, %v1347
        %v1509 = vpack.c.bf16 %v1141, %v1140
        %v1510 = vpack.c.bf16 %v1242, %v1240
        %v1511 = vpack.c.bf16 %v1354, %v1352
        %v1512 = vpack.c.bf16 %v1144, %v1143
        %v1513 = vpack.c.bf16 %v1247, %v1245
        %v1514 = vpack.c.bf16 %v1359, %v1357
        %v1515 = vpack.c.bf16 %v1147, %v1146
        %v1516 = vpack.c.bf16 %v1252, %v1250
        %v1517 = vpack.c.bf16 %v1364, %v1362
        %v1518 = vpack.c.bf16 %v1150, %v1149
        %v1519 = vpack.c.bf16 %v1257, %v1255
        %v1520 = vpack.c.bf16 %v1369, %v1367
        %v1521 = vpack.c.bf16 %v1153, %v1152
        %v1522 = vpack.c.bf16 %v1262, %v1260
        %v1523 = vpack.c.bf16 %v1374, %v1372
        %v1524 = vpack.c.bf16 %v1156, %v1155
        %v1525 = vpack.c.bf16 %v1267, %v1265
        %v1526 = vpack.c.bf16 %v1379, %v1377
        %v1527 = vpack.c.bf16 %v1159, %v1158
        %v1528 = vpack.c.bf16 %v1272, %v1270
        %v1529 = vpack.c.bf16 %v1384, %v1382
        %v1530 = vpack.c.bf16 %v1162, %v1161
        %v1531 = vpack.c.bf16 %v1277, %v1275
        %v1532 = vpack.c.bf16 %v1389, %v1387
        %v1533 = vpack.c.bf16 %v1165, %v1164
        %v1534 = vpack.c.bf16 %v1282, %v1280
        %v1535 = vpack.c.bf16 %v1394, %v1392
        %v1536 = vpack.c.bf16 %v1168, %v1167
        %v1537 = vpack.c.bf16 %v1287, %v1285
        %v1538 = vpack.c.bf16 %v1399, %v1397
        %v1539 = vpack.c.bf16 %v1171, %v1170
        %v1540 = vpack.c.bf16 %v1292, %v1290
        %v1541 = vpack.c.bf16 %v1404, %v1402
        %v1542 = vpack.c.bf16 %v1174, %v1173
        %v1543 = vpack.c.bf16 %v1297, %v1295
        %v1544 = vpack.c.bf16 %v1409, %v1407
        %v1545 = vpack.c.bf16 %v1177, %v1176
        %v1546 = vpack.c.bf16 %v1302, %v1300
        %v1547 = vpack.c.bf16 %v1414, %v1412
        %v1548 = vpack.c.bf16 %v1180, %v1179
        %v1549 = vpack.c.bf16 %v1307, %v1305
        %v1550 = vpack.c.bf16 %v1419, %v1417
        %v1551 = vpack.c.bf16 %v1183, %v1182
        %v1552 = vpack.c.bf16 %v1312, %v1310
        %v1553 = vpack.c.bf16 %v1424, %v1422
        %v1602 = vunpack.c.l.b16 %v1458
        %v1603 = vunpack.c.l.b16 %v1459
        %v1604 = vunpack.c.l.b16 %v1460
        %v1605 = vunpack.c.l.b16 %v1461
        %v1606 = vunpack.c.l.b16 %v1462
        %v1607 = vunpack.c.l.b16 %v1463
        %v1608 = vunpack.c.l.b16 %v1464
        %v1609 = vunpack.c.l.b16 %v1465
        %v1610 = vunpack.c.l.b16 %v1466
        %v1611 = vunpack.c.l.b16 %v1467
        %v1612 = vunpack.c.l.b16 %v1468
        %v1613 = vunpack.c.l.b16 %v1469
        %v1614 = vunpack.c.l.b16 %v1470
        %v1615 = vunpack.c.l.b16 %v1471
        %v1616 = vunpack.c.l.b16 %v1472
        %v1617 = vunpack.c.l.b16 %v1473
        %v1618 = vunpack.c.l.b16 %v1474
        %v1619 = vunpack.c.l.b16 %v1475
        %v1620 = vunpack.c.l.b16 %v1476
        %v1621 = vunpack.c.l.b16 %v1477
        %v1622 = vunpack.c.l.b16 %v1478
        %v1623 = vunpack.c.l.b16 %v1479
        %v1624 = vunpack.c.l.b16 %v1480
        %v1625 = vunpack.c.l.b16 %v1481
        %v1626 = vunpack.c.l.b16 %v1482
        %v1627 = vunpack.c.l.b16 %v1483
        %v1628 = vunpack.c.l.b16 %v1484
        %v1629 = vunpack.c.l.b16 %v1485
        %v1630 = vunpack.c.l.b16 %v1486
        %v1631 = vunpack.c.l.b16 %v1487
        %v1632 = vunpack.c.l.b16 %v1488
        %v1633 = vunpack.c.l.b16 %v1489
        %v1634 = vunpack.c.l.b16 %v1490
        %v1635 = vunpack.c.l.b16 %v1491
        %v1636 = vunpack.c.l.b16 %v1492
        %v1637 = vunpack.c.l.b16 %v1493
        %v1638 = vunpack.c.l.b16 %v1494
        %v1639 = vunpack.c.l.b16 %v1495
        %v1640 = vunpack.c.l.b16 %v1496
        %v1641 = vunpack.c.l.b16 %v1497
        %v1642 = vunpack.c.l.b16 %v1498
        %v1643 = vunpack.c.l.b16 %v1499
        %v1644 = vunpack.c.l.b16 %v1500
        %v1645 = vunpack.c.l.b16 %v1501
        %v1646 = vunpack.c.l.b16 %v1502
        %v1647 = vunpack.c.l.b16 %v1503
        %v1648 = vunpack.c.l.b16 %v1504
        %v1649 = vunpack.c.l.b16 %v1505
        %v1650 = vpack.c.b16 %v1603, %v1602
        %v1651 = vpack.c.b16 %v1605, %v1604
        %v1652 = vpack.c.b16 %v1607, %v1606
        %v1653 = vpack.c.b16 %v1609, %v1608
        %v1654 = vpack.c.b16 %v1611, %v1610
        %v1655 = vpack.c.b16 %v1613, %v1612
        %v1656 = vpack.c.b16 %v1615, %v1614
        %v1657 = vpack.c.b16 %v1617, %v1616
        %v1658 = vpack.c.b16 %v1619, %v1618
        %v1659 = vpack.c.b16 %v1621, %v1620
        %v1660 = vpack.c.b16 %v1623, %v1622
        %v1661 = vpack.c.b16 %v1625, %v1624
        %v1662 = vpack.c.b16 %v1627, %v1626
        %v1663 = vpack.c.b16 %v1629, %v1628
        %v1664 = vpack.c.b16 %v1631, %v1630
        %v1665 = vpack.c.b16 %v1633, %v1632
        %v1666 = vpack.c.b16 %v1635, %v1634
        %v1667 = vpack.c.b16 %v1637, %v1636
        %v1668 = vpack.c.b16 %v1639, %v1638
        %v1669 = vpack.c.b16 %v1641, %v1640
        %v1670 = vpack.c.b16 %v1643, %v1642
        %v1671 = vpack.c.b16 %v1645, %v1644
        %v1672 = vpack.c.b16 %v1647, %v1646
        %v1673 = vpack.c.b16 %v1649, %v1648
        %1698 = vmatprep.subr.bf16.mxu0 0
        %1699 = vmatpush1.bf16.msra.mxu0 %v1650
        %1700 = vmatprep.subr.bf16.mxu0 0
        %1701 = vmatpush1.bf16.msra.mxu0 %v1651
        %1702 = vmatprep.subr.bf16.mxu0 0
        %1703 = vmatpush1.bf16.msra.mxu0 %v1652
        %1704 = vmatprep.subr.bf16.mxu0 0
        %1705 = vmatpush1.bf16.msra.mxu0 %v1653
        %1706 = vmatprep.subr.bf16.mxu0 0
        %1707 = vmatpush1.bf16.msra.mxu0 %v1654
        %1708 = vmatprep.subr.bf16.mxu0 0
        %1709 = vmatpush1.bf16.msra.mxu0 %v1655
        %1710 = vmatprep.subr.bf16.mxu0 0
        %1711 = vmatpush1.bf16.msra.mxu0 %v1656
        %1712 = vmatprep.subr.bf16.mxu0 0
        %1713 = vmatpush1.bf16.msra.mxu0 %v1657
        %1714 = vmatprep.subr.bf16.mxu0 0
        %1715 = vmatpush1.bf16.msra.mxu0 %v1658
        %1716 = vmatprep.subr.bf16.mxu0 0
        %1717 = vmatpush1.bf16.msra.mxu0 %v1659
        %1718 = vmatprep.subr.bf16.mxu0 0
        %1719 = vmatpush1.bf16.msra.mxu0 %v1660
        %1720 = vmatprep.subr.bf16.mxu0 0
        %1721 = vmatpush1.bf16.msra.mxu0 %v1661
        %1722 = vmatprep.subr.bf16.mxu0 0
        %1723 = vmatpush1.bf16.msra.mxu0 %v1662
        %1724 = vmatprep.subr.bf16.mxu0 0
        %1725 = vmatpush1.bf16.msra.mxu0 %v1663
        %1726 = vmatprep.subr.bf16.mxu0 0
        %1727 = vmatpush1.bf16.msra.mxu0 %v1664
        %1728 = vmatprep.subr.bf16.mxu0 0
        %1729 = vmatpush1.bf16.msra.mxu0 %v1665
        %1730 = vmatprep.mubr.bf16.mxu0 %v1507
        %1731 = vmatmul.mubr.bf16.gmra.mrb[0].mxu0 %v1506
        %v1732 = vpop.f32.mrb[0].mxu0
        %v1733 = vadd.f32 0.0, %v1732
        %v1734 = vpop.f32.mrb[0].mxu0
        %v1735 = vpop.f32.mrb[0].mxu0
        %v1736 = vadd.f32 0.0, %v1735
        %v1737 = vpop.f32.mrb[0].mxu0
        %1738 = vmatprep.mubr.bf16.mxu0 %v1510
        %1739 = vmatmul.mubr.bf16.gmra.mrb[0].mxu0 %v1509
        %v1740 = vpop.f32.mrb[0].mxu0
        %v1741 = vadd.f32 0.0, %v1740
        %v1742 = vpop.f32.mrb[0].mxu0
        %v1743 = vpop.f32.mrb[0].mxu0
        %v1744 = vadd.f32 0.0, %v1743
        %v1745 = vpop.f32.mrb[0].mxu0
        %1746 = vmatprep.mubr.bf16.mxu0 %v1513
        %1747 = vmatmul.mubr.bf16.gmra.mrb[0].mxu0 %v1512
        %v1748 = vpop.f32.mrb[0].mxu0
        %v1749 = vadd.f32 0.0, %v1748
        %v1750 = vpop.f32.mrb[0].mxu0
        %v1751 = vpop.f32.mrb[0].mxu0
        %v1752 = vadd.f32 0.0, %v1751
        %v1753 = vpop.f32.mrb[0].mxu0
        %1754 = vmatprep.mubr.bf16.mxu0 %v1516
        %1755 = vmatmul.mubr.bf16.gmra.mrb[0].mxu0 %v1515
        %v1756 = vpop.f32.mrb[0].mxu0
        %v1757 = vadd.f32 0.0, %v1756
        %v1758 = vpop.f32.mrb[0].mxu0
        %v1759 = vpop.f32.mrb[0].mxu0
        %v1760 = vadd.f32 0.0, %v1759
        %v1761 = vpop.f32.mrb[0].mxu0
        %1762 = vmatprep.mubr.bf16.mxu0 %v1519
        %1763 = vmatmul.mubr.bf16.gmra.mrb[0].mxu0 %v1518
        %v1764 = vpop.f32.mrb[0].mxu0
        %v1765 = vadd.f32 0.0, %v1764
        %v1766 = vpop.f32.mrb[0].mxu0
        %v1767 = vpop.f32.mrb[0].mxu0
        %v1768 = vadd.f32 0.0, %v1767
        %v1769 = vpop.f32.mrb[0].mxu0
        %1770 = vmatprep.mubr.bf16.mxu0 %v1522
        %1771 = vmatmul.mubr.bf16.gmra.mrb[0].mxu0 %v1521
        %v1772 = vpop.f32.mrb[0].mxu0
        %v1773 = vadd.f32 0.0, %v1772
        %v1774 = vpop.f32.mrb[0].mxu0
        %v1775 = vpop.f32.mrb[0].mxu0
        %v1776 = vadd.f32 0.0, %v1775
        %v1777 = vpop.f32.mrb[0].mxu0
        %1778 = vmatprep.mubr.bf16.mxu0 %v1525
        %1779 = vmatmul.mubr.bf16.gmra.mrb[0].mxu0 %v1524
        %v1780 = vpop.f32.mrb[0].mxu0
        %v1781 = vadd.f32 0.0, %v1780
        %v1782 = vpop.f32.mrb[0].mxu0
        %v1783 = vpop.f32.mrb[0].mxu0
        %v1784 = vadd.f32 0.0, %v1783
        %v1785 = vpop.f32.mrb[0].mxu0
        %1786 = vmatprep.mubr.bf16.mxu0 %v1528
        %1787 = vmatmul.mubr.bf16.gmra.mrb[0].mxu0 %v1527
        %v1788 = vpop.f32.mrb[0].mxu0
        %v1789 = vadd.f32 0.0, %v1788
        %v1790 = vpop.f32.mrb[0].mxu0
        %v1791 = vpop.f32.mrb[0].mxu0
        %v1792 = vadd.f32 0.0, %v1791
        %v1793 = vpop.f32.mrb[0].mxu0
        %1794 = vmatprep.mubr.bf16.mxu0 %v1531
        %1795 = vmatmul.mubr.bf16.gmra.mrb[0].mxu0 %v1530
        %v1796 = vpop.f32.mrb[0].mxu0
        %v1797 = vadd.f32 0.0, %v1796
        %v1798 = vpop.f32.mrb[0].mxu0
        %v1799 = vpop.f32.mrb[0].mxu0
        %v1800 = vadd.f32 0.0, %v1799
        %v1801 = vpop.f32.mrb[0].mxu0
        %1802 = vmatprep.mubr.bf16.mxu0 %v1534
        %1803 = vmatmul.mubr.bf16.gmra.mrb[0].mxu0 %v1533
        %v1804 = vpop.f32.mrb[0].mxu0
        %v1805 = vadd.f32 0.0, %v1804
        %v1806 = vpop.f32.mrb[0].mxu0
        %v1807 = vpop.f32.mrb[0].mxu0
        %v1808 = vadd.f32 0.0, %v1807
        %v1809 = vpop.f32.mrb[0].mxu0
        %1810 = vmatprep.mubr.bf16.mxu0 %v1537
        %1811 = vmatmul.mubr.bf16.gmra.mrb[0].mxu0 %v1536
        %v1812 = vpop.f32.mrb[0].mxu0
        %v1813 = vadd.f32 0.0, %v1812
        %v1814 = vpop.f32.mrb[0].mxu0
        %v1815 = vpop.f32.mrb[0].mxu0
        %v1816 = vadd.f32 0.0, %v1815
        %v1817 = vpop.f32.mrb[0].mxu0
        %1818 = vmatprep.mubr.bf16.mxu0 %v1540
        %1819 = vmatmul.mubr.bf16.gmra.mrb[0].mxu0 %v1539
        %v1820 = vpop.f32.mrb[0].mxu0
        %v1821 = vadd.f32 0.0, %v1820
        %v1822 = vpop.f32.mrb[0].mxu0
        %v1823 = vpop.f32.mrb[0].mxu0
        %v1824 = vadd.f32 0.0, %v1823
        %v1825 = vpop.f32.mrb[0].mxu0
        %1826 = vmatprep.mubr.bf16.mxu0 %v1543
        %1827 = vmatmul.mubr.bf16.gmra.mrb[0].mxu0 %v1542
        %v1828 = vpop.f32.mrb[0].mxu0
        %v1829 = vadd.f32 0.0, %v1828
        %v1830 = vpop.f32.mrb[0].mxu0
        %v1831 = vpop.f32.mrb[0].mxu0
        %v1832 = vadd.f32 0.0, %v1831
        %v1833 = vpop.f32.mrb[0].mxu0
        %1834 = vmatprep.mubr.bf16.mxu0 %v1546
        %1835 = vmatmul.mubr.bf16.gmra.mrb[0].mxu0 %v1545
        %v1836 = vpop.f32.mrb[0].mxu0
        %v1837 = vadd.f32 0.0, %v1836
        %v1838 = vpop.f32.mrb[0].mxu0
        %v1839 = vpop.f32.mrb[0].mxu0
        %v1840 = vadd.f32 0.0, %v1839
        %v1841 = vpop.f32.mrb[0].mxu0
        %1842 = vmatprep.mubr.bf16.mxu0 %v1549
        %1843 = vmatmul.mubr.bf16.gmra.mrb[0].mxu0 %v1548
        %v1844 = vpop.f32.mrb[0].mxu0
        %v1845 = vadd.f32 0.0, %v1844
        %v1846 = vpop.f32.mrb[0].mxu0
        %v1847 = vpop.f32.mrb[0].mxu0
        %v1848 = vadd.f32 0.0, %v1847
        %v1849 = vpop.f32.mrb[0].mxu0
        %1850 = vmatprep.mubr.bf16.mxu0 %v1552
        %1851 = vmatmul.mubr.bf16.gmra.mrb[0].mxu0 %v1551
        %v1852 = vpop.f32.mrb[0].mxu0
        %v1853 = vadd.f32 0.0, %v1852
        %v1854 = vpop.f32.mrb[0].mxu0
        %v1855 = vpop.f32.mrb[0].mxu0
        %v1856 = vadd.f32 0.0, %v1855
        %v1857 = vpop.f32.mrb[0].mxu0
        %1858 = vdwg.mxu0
        %1859 = vmatprep.subr.bf16.mxu0 0
        %1860 = vmatpush1.bf16.msra.mxu0 %v1666
        %1861 = vmatprep.subr.bf16.mxu0 0
        %1862 = vmatpush1.bf16.msra.mxu0 %v1667
        %1863 = vmatprep.subr.bf16.mxu0 0
        %1864 = vmatpush1.bf16.msra.mxu0 %v1668
        %1865 = vmatprep.subr.bf16.mxu0 0
        %1866 = vmatpush1.bf16.msra.mxu0 %v1669
        %1867 = vmatprep.subr.bf16.mxu0 0
        %1868 = vmatpush1.bf16.msra.mxu0 %v1670
        %1869 = vmatprep.subr.bf16.mxu0 0
        %1870 = vmatpush1.bf16.msra.mxu0 %v1671
        %1871 = vmatprep.subr.bf16.mxu0 0
        %1872 = vmatpush1.bf16.msra.mxu0 %v1672
        %1873 = vmatprep.subr.bf16.mxu0 0
        %1874 = vmatpush1.bf16.msra.mxu0 %v1673
        %1875 = vmatprep.subr.bf16.mxu0 0
        %1876 = vmatpush1.bf16.msra.mxu0 0
        %1877 = vmatprep.subr.bf16.mxu0 0
        %1878 = vmatpush1.bf16.msra.mxu0 0
        %1879 = vmatprep.subr.bf16.mxu0 0
        %1880 = vmatpush1.bf16.msra.mxu0 0
        %1881 = vmatprep.subr.bf16.mxu0 0
        %1882 = vmatpush1.bf16.msra.mxu0 0
        %1883 = vmatprep.subr.bf16.mxu0 0
        %1884 = vmatpush1.bf16.msra.mxu0 0
        %1885 = vmatprep.subr.bf16.mxu0 0
        %1886 = vmatpush1.bf16.msra.mxu0 0
        %1887 = vmatprep.subr.bf16.mxu0 0
        %1888 = vmatpush1.bf16.msra.mxu0 0
        %1889 = vmatprep.subr.bf16.mxu0 0
        %1890 = vmatpush1.bf16.msra.mxu0 0
        %1891 = vmatprep.mubr.bf16.mxu0 0
        %1892 = vmatmul.mubr.bf16.gmra.mrb[0].mxu0 %v1508
        %v1893 = vpop.f32.mrb[0].mxu0
        %v1894 = vadd.f32 %v1733, %v1893
        %v1895 = vpop.f32.mrb[0].mxu0
        %v1896 = vpop.f32.mrb[0].mxu0
        %v1897 = vadd.f32 %v1736, %v1896
        %v1898 = vpop.f32.mrb[0].mxu0
        %1899 = vmatprep.mubr.bf16.mxu0 0
        %1900 = vmatmul.mubr.bf16.gmra.mrb[0].mxu0 %v1511
        %v1901 = vpop.f32.mrb[0].mxu0
        %v1902 = vadd.f32 %v1741, %v1901
        %v1903 = vpop.f32.mrb[0].mxu0
        %v1904 = vpop.f32.mrb[0].mxu0
        %v1905 = vadd.f32 %v1744, %v1904
        %v1906 = vpop.f32.mrb[0].mxu0
        %1907 = vmatprep.mubr.bf16.mxu0 0
        %1908 = vmatmul.mubr.bf16.gmra.mrb[0].mxu0 %v1514
        %v1909 = vpop.f32.mrb[0].mxu0
        %v1910 = vadd.f32 %v1749, %v1909
        %v1911 = vpop.f32.mrb[0].mxu0
        %v1912 = vpop.f32.mrb[0].mxu0
        %v1913 = vadd.f32 %v1752, %v1912
        %v1914 = vpop.f32.mrb[0].mxu0
        %1915 = vmatprep.mubr.bf16.mxu0 0
        %1916 = vmatmul.mubr.bf16.gmra.mrb[0].mxu0 %v1517
        %v1917 = vpop.f32.mrb[0].mxu0
        %v1918 = vadd.f32 %v1757, %v1917
        %v1919 = vpop.f32.mrb[0].mxu0
        %v1920 = vpop.f32.mrb[0].mxu0
        %v1921 = vadd.f32 %v1760, %v1920
        %v1922 = vpop.f32.mrb[0].mxu0
        %1923 = vmatprep.mubr.bf16.mxu0 0
        %1924 = vmatmul.mubr.bf16.gmra.mrb[0].mxu0 %v1520
        %v1925 = vpop.f32.mrb[0].mxu0
        %v1926 = vadd.f32 %v1765, %v1925
        %v1927 = vpop.f32.mrb[0].mxu0
        %v1928 = vpop.f32.mrb[0].mxu0
        %v1929 = vadd.f32 %v1768, %v1928
        %v1930 = vpop.f32.mrb[0].mxu0
        %1931 = vmatprep.mubr.bf16.mxu0 0
        %1932 = vmatmul.mubr.bf16.gmra.mrb[0].mxu0 %v1523
        %v1933 = vpop.f32.mrb[0].mxu0
        %v1934 = vadd.f32 %v1773, %v1933
        %v1935 = vpop.f32.mrb[0].mxu0
        %v1936 = vpop.f32.mrb[0].mxu0
        %v1937 = vadd.f32 %v1776, %v1936
        %v1938 = vpop.f32.mrb[0].mxu0
        %1939 = vmatprep.mubr.bf16.mxu0 0
        %1940 = vmatmul.mubr.bf16.gmra.mrb[0].mxu0 %v1526
        %v1941 = vpop.f32.mrb[0].mxu0
        %v1942 = vadd.f32 %v1781, %v1941
        %v1943 = vpop.f32.mrb[0].mxu0
        %v1944 = vpop.f32.mrb[0].mxu0
        %v1945 = vadd.f32 %v1784, %v1944
        %v1946 = vpop.f32.mrb[0].mxu0
        %1947 = vmatprep.mubr.bf16.mxu0 0
        %1948 = vmatmul.mubr.bf16.gmra.mrb[0].mxu0 %v1529
        %v1949 = vpop.f32.mrb[0].mxu0
        %v1950 = vadd.f32 %v1789, %v1949
        %v1951 = vpop.f32.mrb[0].mxu0
        %v1952 = vpop.f32.mrb[0].mxu0
        %v1953 = vadd.f32 %v1792, %v1952
        %v1954 = vpop.f32.mrb[0].mxu0
        %1955 = vmatprep.mubr.bf16.mxu0 0
        %1956 = vmatmul.mubr.bf16.gmra.mrb[0].mxu0 %v1532
        %v1957 = vpop.f32.mrb[0].mxu0
        %v1958 = vadd.f32 %v1797, %v1957
        %v1959 = vpop.f32.mrb[0].mxu0
        %v1960 = vpop.f32.mrb[0].mxu0
        %v1961 = vadd.f32 %v1800, %v1960
        %v1962 = vpop.f32.mrb[0].mxu0
        %1963 = vmatprep.mubr.bf16.mxu0 0
        %1964 = vmatmul.mubr.bf16.gmra.mrb[0].mxu0 %v1535
        %v1965 = vpop.f32.mrb[0].mxu0
        %v1966 = vadd.f32 %v1805, %v1965
        %v1967 = vpop.f32.mrb[0].mxu0
        %v1968 = vpop.f32.mrb[0].mxu0
        %v1969 = vadd.f32 %v1808, %v1968
        %v1970 = vpop.f32.mrb[0].mxu0
        %1971 = vmatprep.mubr.bf16.mxu0 0
        %1972 = vmatmul.mubr.bf16.gmra.mrb[0].mxu0 %v1538
        %v1973 = vpop.f32.mrb[0].mxu0
        %v1974 = vadd.f32 %v1813, %v1973
        %v1975 = vpop.f32.mrb[0].mxu0
        %v1976 = vpop.f32.mrb[0].mxu0
        %v1977 = vadd.f32 %v1816, %v1976
        %v1978 = vpop.f32.mrb[0].mxu0
        %1979 = vmatprep.mubr.bf16.mxu0 0
        %1980 = vmatmul.mubr.bf16.gmra.mrb[0].mxu0 %v1541
        %v1981 = vpop.f32.mrb[0].mxu0
        %v1982 = vadd.f32 %v1821, %v1981
        %v1983 = vpop.f32.mrb[0].mxu0
        %v1984 = vpop.f32.mrb[0].mxu0
        %v1985 = vadd.f32 %v1824, %v1984
        %v1986 = vpop.f32.mrb[0].mxu0
        %1987 = vmatprep.mubr.bf16.mxu0 0
        %1988 = vmatmul.mubr.bf16.gmra.mrb[0].mxu0 %v1544
        %v1989 = vpop.f32.mrb[0].mxu0
        %v1990 = vadd.f32 %v1829, %v1989
        %v1991 = vpop.f32.mrb[0].mxu0
        %v1992 = vpop.f32.mrb[0].mxu0
        %v1993 = vadd.f32 %v1832, %v1992
        %v1994 = vpop.f32.mrb[0].mxu0
        %1995 = vmatprep.mubr.bf16.mxu0 0
        %1996 = vmatmul.mubr.bf16.gmra.mrb[0].mxu0 %v1547
        %v1997 = vpop.f32.mrb[0].mxu0
        %v1998 = vadd.f32 %v1837, %v1997
        %v1999 = vpop.f32.mrb[0].mxu0
        %v2000 = vpop.f32.mrb[0].mxu0
        %v2001 = vadd.f32 %v1840, %v2000
        %v2002 = vpop.f32.mrb[0].mxu0
        %2003 = vmatprep.mubr.bf16.mxu0 0
        %2004 = vmatmul.mubr.bf16.gmra.mrb[0].mxu0 %v1550
        %v2005 = vpop.f32.mrb[0].mxu0
        %v2006 = vadd.f32 %v1845, %v2005
        %v2007 = vpop.f32.mrb[0].mxu0
        %v2008 = vpop.f32.mrb[0].mxu0
        %v2009 = vadd.f32 %v1848, %v2008
        %v2010 = vpop.f32.mrb[0].mxu0
        %2011 = vmatprep.mubr.bf16.mxu0 0
        %2012 = vmatmul.mubr.bf16.gmra.mrb[0].mxu0 %v1553
        %v2013 = vpop.f32.mrb[0].mxu0
        %v2014 = vadd.f32 %v1853, %v2013
        %v2015 = vpop.f32.mrb[0].mxu0
        %v2016 = vpop.f32.mrb[0].mxu0
        %v2017 = vadd.f32 %v1856, %v2016
        %v2018 = vpop.f32.mrb[0].mxu0
        %2019 = vdwg.mxu0
        %v2068 = vunpack.c.l.b16 %v1041
        %v2069 = vunpack.c.l.b16 %v1042
        %v2070 = vunpack.c.l.b16 %v1043
        %v2071 = vunpack.c.l.b16 %v1044
        %v2072 = vunpack.c.l.b16 %v1045
        %v2073 = vunpack.c.l.b16 %v1046
        %v2074 = vunpack.c.l.b16 %v1047
        %v2075 = vunpack.c.l.b16 %v1048
        %v2076 = vunpack.c.l.b16 %v1049
        %v2077 = vunpack.c.l.b16 %v1050
        %v2078 = vunpack.c.l.b16 %v1051
        %v2079 = vunpack.c.l.b16 %v1052
        %v2080 = vunpack.c.l.b16 %v1053
        %v2081 = vunpack.c.l.b16 %v1054
        %v2082 = vunpack.c.l.b16 %v1055
        %v2083 = vunpack.c.l.b16 %v1056
        %v2084 = vunpack.c.l.b16 %v1057
        %v2085 = vunpack.c.l.b16 %v1058
        %v2086 = vunpack.c.l.b16 %v1059
        %v2087 = vunpack.c.l.b16 %v1060
        %v2088 = vunpack.c.l.b16 %v1061
        %v2089 = vunpack.c.l.b16 %v1062
        %v2090 = vunpack.c.l.b16 %v1063
        %v2091 = vunpack.c.l.b16 %v1064
        %v2092 = vunpack.c.l.b16 %v1065
        %v2093 = vunpack.c.l.b16 %v1066
        %v2094 = vunpack.c.l.b16 %v1067
        %v2095 = vunpack.c.l.b16 %v1068
        %v2096 = vunpack.c.l.b16 %v1069
        %v2097 = vunpack.c.l.b16 %v1070
        %v2098 = vunpack.c.l.b16 %v1071
        %v2099 = vunpack.c.l.b16 %v1072
        %v2100 = vunpack.c.l.b16 %v1073
        %v2101 = vunpack.c.l.b16 %v1074
        %v2102 = vunpack.c.l.b16 %v1075
        %v2103 = vunpack.c.l.b16 %v1076
        %v2104 = vunpack.c.l.b16 %v1077
        %v2105 = vunpack.c.l.b16 %v1078
        %v2106 = vunpack.c.l.b16 %v1079
        %v2107 = vunpack.c.l.b16 %v1080
        %v2108 = vunpack.c.l.b16 %v1081
        %v2109 = vunpack.c.l.b16 %v1082
        %v2110 = vunpack.c.l.b16 %v1083
        %v2111 = vunpack.c.l.b16 %v1084
        %v2112 = vunpack.c.l.b16 %v1085
        %v2113 = vunpack.c.l.b16 %v1086
        %v2114 = vunpack.c.l.b16 %v1087
        %v2115 = vunpack.c.l.b16 %v1088
        %v2116 = vpack.c.b16 %v2069, %v2068
        %v2117 = vpack.c.b16 %v2071, %v2070
        %v2118 = vpack.c.b16 %v2073, %v2072
        %v2119 = vpack.c.b16 %v2075, %v2074
        %v2120 = vpack.c.b16 %v2077, %v2076
        %v2121 = vpack.c.b16 %v2079, %v2078
        %v2122 = vpack.c.b16 %v2081, %v2080
        %v2123 = vpack.c.b16 %v2083, %v2082
        %v2124 = vpack.c.b16 %v2085, %v2084
        %v2125 = vpack.c.b16 %v2087, %v2086
        %v2126 = vpack.c.b16 %v2089, %v2088
        %v2127 = vpack.c.b16 %v2091, %v2090
        %v2128 = vpack.c.b16 %v2093, %v2092
        %v2129 = vpack.c.b16 %v2095, %v2094
        %v2130 = vpack.c.b16 %v2097, %v2096
        %v2131 = vpack.c.b16 %v2099, %v2098
        %v2132 = vpack.c.b16 %v2101, %v2100
        %v2133 = vpack.c.b16 %v2103, %v2102
        %v2134 = vpack.c.b16 %v2105, %v2104
        %v2135 = vpack.c.b16 %v2107, %v2106
        %v2136 = vpack.c.b16 %v2109, %v2108
        %v2137 = vpack.c.b16 %v2111, %v2110
        %v2138 = vpack.c.b16 %v2113, %v2112
        %v2139 = vpack.c.b16 %v2115, %v2114
        %2164 = vmatprep.subr.bf16.mxu0 0
        %2165 = vmatpush1.bf16.msra.mxu0 %v2116
        %2166 = vmatprep.subr.bf16.mxu0 0
        %2167 = vmatpush1.bf16.msra.mxu0 %v2117
        %2168 = vmatprep.subr.bf16.mxu0 0
        %2169 = vmatpush1.bf16.msra.mxu0 %v2118
        %2170 = vmatprep.subr.bf16.mxu0 0
        %2171 = vmatpush1.bf16.msra.mxu0 %v2119
        %2172 = vmatprep.subr.bf16.mxu0 0
        %2173 = vmatpush1.bf16.msra.mxu0 %v2120
        %2174 = vmatprep.subr.bf16.mxu0 0
        %2175 = vmatpush1.bf16.msra.mxu0 %v2121
        %2176 = vmatprep.subr.bf16.mxu0 0
        %2177 = vmatpush1.bf16.msra.mxu0 %v2122
        %2178 = vmatprep.subr.bf16.mxu0 0
        %2179 = vmatpush1.bf16.msra.mxu0 %v2123
        %2180 = vmatprep.subr.bf16.mxu0 0
        %2181 = vmatpush1.bf16.msra.mxu0 %v2124
        %2182 = vmatprep.subr.bf16.mxu0 0
        %2183 = vmatpush1.bf16.msra.mxu0 %v2125
        %2184 = vmatprep.subr.bf16.mxu0 0
        %2185 = vmatpush1.bf16.msra.mxu0 %v2126
        %2186 = vmatprep.subr.bf16.mxu0 0
        %2187 = vmatpush1.bf16.msra.mxu0 %v2127
        %2188 = vmatprep.subr.bf16.mxu0 0
        %2189 = vmatpush1.bf16.msra.mxu0 %v2128
        %2190 = vmatprep.subr.bf16.mxu0 0
        %2191 = vmatpush1.bf16.msra.mxu0 %v2129
        %2192 = vmatprep.subr.bf16.mxu0 0
        %2193 = vmatpush1.bf16.msra.mxu0 %v2130
        %2194 = vmatprep.subr.bf16.mxu0 0
        %2195 = vmatpush1.bf16.msra.mxu0 %v2131
        %2196 = vmatprep.mubr.bf16.mxu0 %v1090
        %2197 = vmatmul.mubr.bf16.gmra.mrb[0].mxu0 %v1089
        %v2198 = vpop.f32.mrb[0].mxu0
        %v2199 = vadd.f32 %v1894, %v2198
        %v2200 = vpop.f32.mrb[0].mxu0
        %v2201 = vpop.f32.mrb[0].mxu0
        %v2202 = vadd.f32 %v1897, %v2201
        %v2203 = vpop.f32.mrb[0].mxu0
        %2204 = vmatprep.mubr.bf16.mxu0 %v1093
        %2205 = vmatmul.mubr.bf16.gmra.mrb[0].mxu0 %v1092
        %v2206 = vpop.f32.mrb[0].mxu0
        %v2207 = vadd.f32 %v1902, %v2206
        %v2208 = vpop.f32.mrb[0].mxu0
        %v2209 = vpop.f32.mrb[0].mxu0
        %v2210 = vadd.f32 %v1905, %v2209
        %v2211 = vpop.f32.mrb[0].mxu0
        %2212 = vmatprep.mubr.bf16.mxu0 %v1096
        %2213 = vmatmul.mubr.bf16.gmra.mrb[0].mxu0 %v1095
        %v2214 = vpop.f32.mrb[0].mxu0
        %v2215 = vadd.f32 %v1910, %v2214
        %v2216 = vpop.f32.mrb[0].mxu0
        %v2217 = vpop.f32.mrb[0].mxu0
        %v2218 = vadd.f32 %v1913, %v2217
        %v2219 = vpop.f32.mrb[0].mxu0
        %2220 = vmatprep.mubr.bf16.mxu0 %v1099
        %2221 = vmatmul.mubr.bf16.gmra.mrb[0].mxu0 %v1098
        %v2222 = vpop.f32.mrb[0].mxu0
        %v2223 = vadd.f32 %v1918, %v2222
        %v2224 = vpop.f32.mrb[0].mxu0
        %v2225 = vpop.f32.mrb[0].mxu0
        %v2226 = vadd.f32 %v1921, %v2225
        %v2227 = vpop.f32.mrb[0].mxu0
        %2228 = vmatprep.mubr.bf16.mxu0 %v1102
        %2229 = vmatmul.mubr.bf16.gmra.mrb[0].mxu0 %v1101
        %v2230 = vpop.f32.mrb[0].mxu0
        %v2231 = vadd.f32 %v1926, %v2230
        %v2232 = vpop.f32.mrb[0].mxu0
        %v2233 = vpop.f32.mrb[0].mxu0
        %v2234 = vadd.f32 %v1929, %v2233
        %v2235 = vpop.f32.mrb[0].mxu0
        %2236 = vmatprep.mubr.bf16.mxu0 %v1105
        %2237 = vmatmul.mubr.bf16.gmra.mrb[0].mxu0 %v1104
        %v2238 = vpop.f32.mrb[0].mxu0
        %v2239 = vadd.f32 %v1934, %v2238
        %v2240 = vpop.f32.mrb[0].mxu0
        %v2241 = vpop.f32.mrb[0].mxu0
        %v2242 = vadd.f32 %v1937, %v2241
        %v2243 = vpop.f32.mrb[0].mxu0
        %2244 = vmatprep.mubr.bf16.mxu0 %v1108
        %2245 = vmatmul.mubr.bf16.gmra.mrb[0].mxu0 %v1107
        %v2246 = vpop.f32.mrb[0].mxu0
        %v2247 = vadd.f32 %v1942, %v2246
        %v2248 = vpop.f32.mrb[0].mxu0
        %v2249 = vpop.f32.mrb[0].mxu0
        %v2250 = vadd.f32 %v1945, %v2249
        %v2251 = vpop.f32.mrb[0].mxu0
        %2252 = vmatprep.mubr.bf16.mxu0 %v1111
        %2253 = vmatmul.mubr.bf16.gmra.mrb[0].mxu0 %v1110
        %v2254 = vpop.f32.mrb[0].mxu0
        %v2255 = vadd.f32 %v1950, %v2254
        %v2256 = vpop.f32.mrb[0].mxu0
        %v2257 = vpop.f32.mrb[0].mxu0
        %v2258 = vadd.f32 %v1953, %v2257
        %v2259 = vpop.f32.mrb[0].mxu0
        %2260 = vmatprep.mubr.bf16.mxu0 %v1114
        %2261 = vmatmul.mubr.bf16.gmra.mrb[0].mxu0 %v1113
        %v2262 = vpop.f32.mrb[0].mxu0
        %v2263 = vadd.f32 %v1958, %v2262
        %v2264 = vpop.f32.mrb[0].mxu0
        %v2265 = vpop.f32.mrb[0].mxu0
        %v2266 = vadd.f32 %v1961, %v2265
        %v2267 = vpop.f32.mrb[0].mxu0
        %2268 = vmatprep.mubr.bf16.mxu0 %v1117
        %2269 = vmatmul.mubr.bf16.gmra.mrb[0].mxu0 %v1116
        %v2270 = vpop.f32.mrb[0].mxu0
        %v2271 = vadd.f32 %v1966, %v2270
        %v2272 = vpop.f32.mrb[0].mxu0
        %v2273 = vpop.f32.mrb[0].mxu0
        %v2274 = vadd.f32 %v1969, %v2273
        %v2275 = vpop.f32.mrb[0].mxu0
        %2276 = vmatprep.mubr.bf16.mxu0 %v1120
        %2277 = vmatmul.mubr.bf16.gmra.mrb[0].mxu0 %v1119
        %v2278 = vpop.f32.mrb[0].mxu0
        %v2279 = vadd.f32 %v1974, %v2278
        %v2280 = vpop.f32.mrb[0].mxu0
        %v2281 = vpop.f32.mrb[0].mxu0
        %v2282 = vadd.f32 %v1977, %v2281
        %v2283 = vpop.f32.mrb[0].mxu0
        %2284 = vmatprep.mubr.bf16.mxu0 %v1123
        %2285 = vmatmul.mubr.bf16.gmra.mrb[0].mxu0 %v1122
        %v2286 = vpop.f32.mrb[0].mxu0
        %v2287 = vadd.f32 %v1982, %v2286
        %v2288 = vpop.f32.mrb[0].mxu0
        %v2289 = vpop.f32.mrb[0].mxu0
        %v2290 = vadd.f32 %v1985, %v2289
        %v2291 = vpop.f32.mrb[0].mxu0
        %2292 = vmatprep.mubr.bf16.mxu0 %v1126
        %2293 = vmatmul.mubr.bf16.gmra.mrb[0].mxu0 %v1125
        %v2294 = vpop.f32.mrb[0].mxu0
        %v2295 = vadd.f32 %v1990, %v2294
        %v2296 = vpop.f32.mrb[0].mxu0
        %v2297 = vpop.f32.mrb[0].mxu0
        %v2298 = vadd.f32 %v1993, %v2297
        %v2299 = vpop.f32.mrb[0].mxu0
        %2300 = vmatprep.mubr.bf16.mxu0 %v1129
        %2301 = vmatmul.mubr.bf16.gmra.mrb[0].mxu0 %v1128
        %v2302 = vpop.f32.mrb[0].mxu0
        %v2303 = vadd.f32 %v1998, %v2302
        %v2304 = vpop.f32.mrb[0].mxu0
        %v2305 = vpop.f32.mrb[0].mxu0
        %v2306 = vadd.f32 %v2001, %v2305
        %v2307 = vpop.f32.mrb[0].mxu0
        %2308 = vmatprep.mubr.bf16.mxu0 %v1132
        %2309 = vmatmul.mubr.bf16.gmra.mrb[0].mxu0 %v1131
        %v2310 = vpop.f32.mrb[0].mxu0
        %v2311 = vadd.f32 %v2006, %v2310
        %v2312 = vpop.f32.mrb[0].mxu0
        %v2313 = vpop.f32.mrb[0].mxu0
        %v2314 = vadd.f32 %v2009, %v2313
        %v2315 = vpop.f32.mrb[0].mxu0
        %2316 = vmatprep.mubr.bf16.mxu0 %v1135
        %2317 = vmatmul.mubr.bf16.gmra.mrb[0].mxu0 %v1134
        %v2318 = vpop.f32.mrb[0].mxu0
        %v2319 = vadd.f32 %v2014, %v2318
        %v2320 = vpop.f32.mrb[0].mxu0
        %v2321 = vpop.f32.mrb[0].mxu0
        %v2322 = vadd.f32 %v2017, %v2321
        %v2323 = vpop.f32.mrb[0].mxu0
        %2324 = vdwg.mxu0
        %2325 = vmatprep.subr.bf16.mxu0 0
        %2326 = vmatpush1.bf16.msra.mxu0 %v2132
        %2327 = vmatprep.subr.bf16.mxu0 0
        %2328 = vmatpush1.bf16.msra.mxu0 %v2133
        %2329 = vmatprep.subr.bf16.mxu0 0
        %2330 = vmatpush1.bf16.msra.mxu0 %v2134
        %2331 = vmatprep.subr.bf16.mxu0 0
        %2332 = vmatpush1.bf16.msra.mxu0 %v2135
        %2333 = vmatprep.subr.bf16.mxu0 0
        %2334 = vmatpush1.bf16.msra.mxu0 %v2136
        %2335 = vmatprep.subr.bf16.mxu0 0
        %2336 = vmatpush1.bf16.msra.mxu0 %v2137
        %2337 = vmatprep.subr.bf16.mxu0 0
        %2338 = vmatpush1.bf16.msra.mxu0 %v2138
        %2339 = vmatprep.subr.bf16.mxu0 0
        %2340 = vmatpush1.bf16.msra.mxu0 %v2139
        %2341 = vmatprep.subr.bf16.mxu0 0
        %2342 = vmatpush1.bf16.msra.mxu0 0
        %2343 = vmatprep.subr.bf16.mxu0 0
        %2344 = vmatpush1.bf16.msra.mxu0 0
        %2345 = vmatprep.subr.bf16.mxu0 0
        %2346 = vmatpush1.bf16.msra.mxu0 0
        %2347 = vmatprep.subr.bf16.mxu0 0
        %2348 = vmatpush1.bf16.msra.mxu0 0
        %2349 = vmatprep.subr.bf16.mxu0 0
        %2350 = vmatpush1.bf16.msra.mxu0 0
        %2351 = vmatprep.subr.bf16.mxu0 0
        %2352 = vmatpush1.bf16.msra.mxu0 0
        %2353 = vmatprep.subr.bf16.mxu0 0
        %2354 = vmatpush1.bf16.msra.mxu0 0
        %2355 = vmatprep.subr.bf16.mxu0 0
        %2356 = vmatpush1.bf16.msra.mxu0 0
        %2357 = vmatprep.mubr.bf16.mxu0 0
        %2358 = vmatmul.mubr.bf16.gmra.mrb[0].mxu0 %v1091
        %v2359 = vpop.f32.mrb[0].mxu0
        %v2360 = vadd.f32 %v2199, %v2359
        %v2361 = vpop.f32.mrb[0].mxu0
        %v2362 = vpop.f32.mrb[0].mxu0
        %v2363 = vadd.f32 %v2202, %v2362
        %v2364 = vpop.f32.mrb[0].mxu0
        %2365 = vmatprep.mubr.bf16.mxu0 0
        %2366 = vmatmul.mubr.bf16.gmra.mrb[0].mxu0 %v1094
        %v2367 = vpop.f32.mrb[0].mxu0
        %v2368 = vadd.f32 %v2207, %v2367
        %v2369 = vpop.f32.mrb[0].mxu0
        %v2370 = vpop.f32.mrb[0].mxu0
        %v2371 = vadd.f32 %v2210, %v2370
        %v2372 = vpop.f32.mrb[0].mxu0
        %2373 = vmatprep.mubr.bf16.mxu0 0
        %2374 = vmatmul.mubr.bf16.gmra.mrb[0].mxu0 %v1097
        %v2375 = vpop.f32.mrb[0].mxu0
        %v2376 = vadd.f32 %v2215, %v2375
        %v2377 = vpop.f32.mrb[0].mxu0
        %v2378 = vpop.f32.mrb[0].mxu0
        %v2379 = vadd.f32 %v2218, %v2378
        %v2380 = vpop.f32.mrb[0].mxu0
        %2381 = vmatprep.mubr.bf16.mxu0 0
        %2382 = vmatmul.mubr.bf16.gmra.mrb[0].mxu0 %v1100
        %v2383 = vpop.f32.mrb[0].mxu0
        %v2384 = vadd.f32 %v2223, %v2383
        %v2385 = vpop.f32.mrb[0].mxu0
        %v2386 = vpop.f32.mrb[0].mxu0
        %v2387 = vadd.f32 %v2226, %v2386
        %v2388 = vpop.f32.mrb[0].mxu0
        %2389 = vmatprep.mubr.bf16.mxu0 0
        %2390 = vmatmul.mubr.bf16.gmra.mrb[0].mxu0 %v1103
        %v2391 = vpop.f32.mrb[0].mxu0
        %v2392 = vadd.f32 %v2231, %v2391
        %v2393 = vpop.f32.mrb[0].mxu0
        %v2394 = vpop.f32.mrb[0].mxu0
        %v2395 = vadd.f32 %v2234, %v2394
        %v2396 = vpop.f32.mrb[0].mxu0
        %2397 = vmatprep.mubr.bf16.mxu0 0
        %2398 = vmatmul.mubr.bf16.gmra.mrb[0].mxu0 %v1106
        %v2399 = vpop.f32.mrb[0].mxu0
        %v2400 = vadd.f32 %v2239, %v2399
        %v2401 = vpop.f32.mrb[0].mxu0
        %v2402 = vpop.f32.mrb[0].mxu0
        %v2403 = vadd.f32 %v2242, %v2402
        %v2404 = vpop.f32.mrb[0].mxu0
        %2405 = vmatprep.mubr.bf16.mxu0 0
        %2406 = vmatmul.mubr.bf16.gmra.mrb[0].mxu0 %v1109
        %v2407 = vpop.f32.mrb[0].mxu0
        %v2408 = vadd.f32 %v2247, %v2407
        %v2409 = vpop.f32.mrb[0].mxu0
        %v2410 = vpop.f32.mrb[0].mxu0
        %v2411 = vadd.f32 %v2250, %v2410
        %v2412 = vpop.f32.mrb[0].mxu0
        %2413 = vmatprep.mubr.bf16.mxu0 0
        %2414 = vmatmul.mubr.bf16.gmra.mrb[0].mxu0 %v1112
        %v2415 = vpop.f32.mrb[0].mxu0
        %v2416 = vadd.f32 %v2255, %v2415
        %v2417 = vpop.f32.mrb[0].mxu0
        %v2418 = vpop.f32.mrb[0].mxu0
        %v2419 = vadd.f32 %v2258, %v2418
        %v2420 = vpop.f32.mrb[0].mxu0
        %2421 = vmatprep.mubr.bf16.mxu0 0
        %2422 = vmatmul.mubr.bf16.gmra.mrb[0].mxu0 %v1115
        %v2423 = vpop.f32.mrb[0].mxu0
        %v2424 = vadd.f32 %v2263, %v2423
        %v2425 = vpop.f32.mrb[0].mxu0
        %v2426 = vpop.f32.mrb[0].mxu0
        %v2427 = vadd.f32 %v2266, %v2426
        %v2428 = vpop.f32.mrb[0].mxu0
        %2429 = vmatprep.mubr.bf16.mxu0 0
        %2430 = vmatmul.mubr.bf16.gmra.mrb[0].mxu0 %v1118
        %v2431 = vpop.f32.mrb[0].mxu0
        %v2432 = vadd.f32 %v2271, %v2431
        %v2433 = vpop.f32.mrb[0].mxu0
        %v2434 = vpop.f32.mrb[0].mxu0
        %v2435 = vadd.f32 %v2274, %v2434
        %v2436 = vpop.f32.mrb[0].mxu0
        %2437 = vmatprep.mubr.bf16.mxu0 0
        %2438 = vmatmul.mubr.bf16.gmra.mrb[0].mxu0 %v1121
        %v2439 = vpop.f32.mrb[0].mxu0
        %v2440 = vadd.f32 %v2279, %v2439
        %v2441 = vpop.f32.mrb[0].mxu0
        %v2442 = vpop.f32.mrb[0].mxu0
        %v2443 = vadd.f32 %v2282, %v2442
        %v2444 = vpop.f32.mrb[0].mxu0
        %2445 = vmatprep.mubr.bf16.mxu0 0
        %2446 = vmatmul.mubr.bf16.gmra.mrb[0].mxu0 %v1124
        %v2447 = vpop.f32.mrb[0].mxu0
        %v2448 = vadd.f32 %v2287, %v2447
        %v2449 = vpop.f32.mrb[0].mxu0
        %v2450 = vpop.f32.mrb[0].mxu0
        %v2451 = vadd.f32 %v2290, %v2450
        %v2452 = vpop.f32.mrb[0].mxu0
        %2453 = vmatprep.mubr.bf16.mxu0 0
        %2454 = vmatmul.mubr.bf16.gmra.mrb[0].mxu0 %v1127
        %v2455 = vpop.f32.mrb[0].mxu0
        %v2456 = vadd.f32 %v2295, %v2455
        %v2457 = vpop.f32.mrb[0].mxu0
        %v2458 = vpop.f32.mrb[0].mxu0
        %v2459 = vadd.f32 %v2298, %v2458
        %v2460 = vpop.f32.mrb[0].mxu0
        %2461 = vmatprep.mubr.bf16.mxu0 0
        %2462 = vmatmul.mubr.bf16.gmra.mrb[0].mxu0 %v1130
        %v2463 = vpop.f32.mrb[0].mxu0
        %v2464 = vadd.f32 %v2303, %v2463
        %v2465 = vpop.f32.mrb[0].mxu0
        %v2466 = vpop.f32.mrb[0].mxu0
        %v2467 = vadd.f32 %v2306, %v2466
        %v2468 = vpop.f32.mrb[0].mxu0
        %2469 = vmatprep.mubr.bf16.mxu0 0
        %2470 = vmatmul.mubr.bf16.gmra.mrb[0].mxu0 %v1133
        %v2471 = vpop.f32.mrb[0].mxu0
        %v2472 = vadd.f32 %v2311, %v2471
        %v2473 = vpop.f32.mrb[0].mxu0
        %v2474 = vpop.f32.mrb[0].mxu0
        %v2475 = vadd.f32 %v2314, %v2474
        %v2476 = vpop.f32.mrb[0].mxu0
        %2477 = vmatprep.mubr.bf16.mxu0 0
        %2478 = vmatmul.mubr.bf16.gmra.mrb[0].mxu0 %v1136
        %v2479 = vpop.f32.mrb[0].mxu0
        %v2480 = vadd.f32 %v2319, %v2479
        %v2481 = vpop.f32.mrb[0].mxu0
        %v2482 = vpop.f32.mrb[0].mxu0
        %v2483 = vadd.f32 %v2322, %v2482
        %v2484 = vpop.f32.mrb[0].mxu0
        %2485 = vdwg.mxu0
        %s2486 = scalar_lea.vmem [#allocation2], 48
        %v2487 = vld [vmem:[%s2486] sm:$0xff]
        %v2488 = vld [vmem:[%s2486 + $0x8] sm:$0xff]
        %v2489 = vld [vmem:[%s2486 + $0x10] sm:$0x3]
        %v2490 = vld [vmem:[%s2486 + $0x18] sm:$0xff]
        %v2491 = vld [vmem:[%s2486 + $0x20] sm:$0xff]
        %v2492 = vld [vmem:[%s2486 + $0x28] sm:$0x3]
        %v2493 = vld [vmem:[%s2486 + $0x30] sm:$0xff]
        %v2494 = vld [vmem:[%s2486 + $0x38] sm:$0xff]
        %v2495 = vld [vmem:[%s2486 + $0x40] sm:$0x3]
        %v2496 = vld [vmem:[%s2486 + $0x48] sm:$0xff]
        %v2497 = vld [vmem:[%s2486 + $0x50] sm:$0xff]
        %v2498 = vld [vmem:[%s2486 + $0x58] sm:$0x3]
        %v2499 = vld [vmem:[%s2486 + $0x60] sm:$0xff]
        %v2500 = vld [vmem:[%s2486 + $0x68] sm:$0xff]
        %v2501 = vld [vmem:[%s2486 + $0x70] sm:$0x3]
        %v2502 = vld [vmem:[%s2486 + $0x78] sm:$0xff]
        %v2503 = vld [vmem:[%s2486 + $0x80] sm:$0xff]
        %v2504 = vld [vmem:[%s2486 + $0x88] sm:$0x3]
        %v2505 = vld [vmem:[%s2486 + $0x90] sm:$0xff]
        %v2506 = vld [vmem:[%s2486 + $0x98] sm:$0xff]
        %v2507 = vld [vmem:[%s2486 + $0xa0] sm:$0x3]
        %v2508 = vld [vmem:[%s2486 + $0xa8] sm:$0xff]
        %v2509 = vld [vmem:[%s2486 + $0xb0] sm:$0xff]
        %v2510 = vld [vmem:[%s2486 + $0xb8] sm:$0x3]
        %v2511 = vld [vmem:[%s2486 + $0xc0] sm:$0xff]
        %v2512 = vld [vmem:[%s2486 + $0xc8] sm:$0xff]
        %v2513 = vld [vmem:[%s2486 + $0xd0] sm:$0x3]
        %v2514 = vld [vmem:[%s2486 + $0xd8] sm:$0xff]
        %v2515 = vld [vmem:[%s2486 + $0xe0] sm:$0xff]
        %v2516 = vld [vmem:[%s2486 + $0xe8] sm:$0x3]
        %v2517 = vld [vmem:[%s2486 + $0xf0] sm:$0xff]
        %v2518 = vld [vmem:[%s2486 + $0xf8] sm:$0xff]
        %v2519 = vld [vmem:[%s2486 + $0x100] sm:$0x3]
        %v2520 = vld [vmem:[%s2486 + $0x108] sm:$0xff]
        %v2521 = vld [vmem:[%s2486 + $0x110] sm:$0xff]
        %v2522 = vld [vmem:[%s2486 + $0x118] sm:$0x3]
        %v2523 = vld [vmem:[%s2486 + $0x120] sm:$0xff]
        %v2524 = vld [vmem:[%s2486 + $0x128] sm:$0xff]
        %v2525 = vld [vmem:[%s2486 + $0x130] sm:$0x3]
        %v2526 = vld [vmem:[%s2486 + $0x138] sm:$0xff]
        %v2527 = vld [vmem:[%s2486 + $0x140] sm:$0xff]
        %v2528 = vld [vmem:[%s2486 + $0x148] sm:$0x3]
        %v2529 = vld [vmem:[%s2486 + $0x150] sm:$0xff]
        %v2530 = vld [vmem:[%s2486 + $0x158] sm:$0xff]
        %v2531 = vld [vmem:[%s2486 + $0x160] sm:$0x3]
        %v2532 = vld [vmem:[%s2486 + $0x168] sm:$0xff]
        %v2533 = vld [vmem:[%s2486 + $0x170] sm:$0xff]
        %v2534 = vld [vmem:[%s2486 + $0x178] sm:$0x3]
        %v2583 = vrot.slane %v2487, 1
        %v2584 = vrot.slane %v2488, 1
        %v2585 = vsel %vm815, %v2583, %v2584
        %v2586 = vrot.slane %v2489, 1
        %v2587 = vsel %vm815, %v2584, %v2586
        %v2588 = vrot.slane %v2490, 1
        %v2589 = vrot.slane %v2491, 1
        %v2590 = vsel %vm815, %v2588, %v2589
        %v2591 = vrot.slane %v2492, 1
        %v2592 = vsel %vm815, %v2589, %v2591
        %v2593 = vrot.slane %v2493, 1
        %v2594 = vrot.slane %v2494, 1
        %v2595 = vsel %vm815, %v2593, %v2594
        %v2596 = vrot.slane %v2495, 1
        %v2597 = vsel %vm815, %v2594, %v2596
        %v2598 = vrot.slane %v2496, 1
        %v2599 = vrot.slane %v2497, 1
        %v2600 = vsel %vm815, %v2598, %v2599
        %v2601 = vrot.slane %v2498, 1
        %v2602 = vsel %vm815, %v2599, %v2601
        %v2603 = vrot.slane %v2499, 1
        %v2604 = vrot.slane %v2500, 1
        %v2605 = vsel %vm815, %v2603, %v2604
        %v2606 = vrot.slane %v2501, 1
        %v2607 = vsel %vm815, %v2604, %v2606
        %v2608 = vrot.slane %v2502, 1
        %v2609 = vrot.slane %v2503, 1
        %v2610 = vsel %vm815, %v2608, %v2609
        %v2611 = vrot.slane %v2504, 1
        %v2612 = vsel %vm815, %v2609, %v2611
        %v2613 = vrot.slane %v2505, 1
        %v2614 = vrot.slane %v2506, 1
        %v2615 = vsel %vm815, %v2613, %v2614
        %v2616 = vrot.slane %v2507, 1
        %v2617 = vsel %vm815, %v2614, %v2616
        %v2618 = vrot.slane %v2508, 1
        %v2619 = vrot.slane %v2509, 1
        %v2620 = vsel %vm815, %v2618, %v2619
        %v2621 = vrot.slane %v2510, 1
        %v2622 = vsel %vm815, %v2619, %v2621
        %v2623 = vrot.slane %v2511, 1
        %v2624 = vrot.slane %v2512, 1
        %v2625 = vsel %vm815, %v2623, %v2624
        %v2626 = vrot.slane %v2513, 1
        %v2627 = vsel %vm815, %v2624, %v2626
        %v2628 = vrot.slane %v2514, 1
        %v2629 = vrot.slane %v2515, 1
        %v2630 = vsel %vm815, %v2628, %v2629
        %v2631 = vrot.slane %v2516, 1
        %v2632 = vsel %vm815, %v2629, %v2631
        %v2633 = vrot.slane %v2517, 1
        %v2634 = vrot.slane %v2518, 1
        %v2635 = vsel %vm815, %v2633, %v2634
        %v2636 = vrot.slane %v2519, 1
        %v2637 = vsel %vm815, %v2634, %v2636
        %v2638 = vrot.slane %v2520, 1
        %v2639 = vrot.slane %v2521, 1
        %v2640 = vsel %vm815, %v2638, %v2639
        %v2641 = vrot.slane %v2522, 1
        %v2642 = vsel %vm815, %v2639, %v2641
        %v2643 = vrot.slane %v2523, 1
        %v2644 = vrot.slane %v2524, 1
        %v2645 = vsel %vm815, %v2643, %v2644
        %v2646 = vrot.slane %v2525, 1
        %v2647 = vsel %vm815, %v2644, %v2646
        %v2648 = vrot.slane %v2526, 1
        %v2649 = vrot.slane %v2527, 1
        %v2650 = vsel %vm815, %v2648, %v2649
        %v2651 = vrot.slane %v2528, 1
        %v2652 = vsel %vm815, %v2649, %v2651
        %v2653 = vrot.slane %v2529, 1
        %v2654 = vrot.slane %v2530, 1
        %v2655 = vsel %vm815, %v2653, %v2654
        %v2656 = vrot.slane %v2531, 1
        %v2657 = vsel %vm815, %v2654, %v2656
        %v2658 = vrot.slane %v2532, 1
        %v2659 = vrot.slane %v2533, 1
        %v2660 = vsel %vm815, %v2658, %v2659
        %v2661 = vrot.slane %v2534, 1
        %v2662 = vsel %vm815, %v2659, %v2661
        %v2695 = vrot.slane %v2487, 2
        %v2696 = vrot.slane %v2488, 2
        %v2697 = vsel %vm928, %v2695, %v2696
        %v2698 = vrot.slane %v2489, 2
        %v2699 = vsel %vm928, %v2696, %v2698
        %v2700 = vrot.slane %v2490, 2
        %v2701 = vrot.slane %v2491, 2
        %v2702 = vsel %vm928, %v2700, %v2701
        %v2703 = vrot.slane %v2492, 2
        %v2704 = vsel %vm928, %v2701, %v2703
        %v2705 = vrot.slane %v2493, 2
        %v2706 = vrot.slane %v2494, 2
        %v2707 = vsel %vm928, %v2705, %v2706
        %v2708 = vrot.slane %v2495, 2
        %v2709 = vsel %vm928, %v2706, %v2708
        %v2710 = vrot.slane %v2496, 2
        %v2711 = vrot.slane %v2497, 2
        %v2712 = vsel %vm928, %v2710, %v2711
        %v2713 = vrot.slane %v2498, 2
        %v2714 = vsel %vm928, %v2711, %v2713
        %v2715 = vrot.slane %v2499, 2
        %v2716 = vrot.slane %v2500, 2
        %v2717 = vsel %vm928, %v2715, %v2716
        %v2718 = vrot.slane %v2501, 2
        %v2719 = vsel %vm928, %v2716, %v2718
        %v2720 = vrot.slane %v2502, 2
        %v2721 = vrot.slane %v2503, 2
        %v2722 = vsel %vm928, %v2720, %v2721
        %v2723 = vrot.slane %v2504, 2
        %v2724 = vsel %vm928, %v2721, %v2723
        %v2725 = vrot.slane %v2505, 2
        %v2726 = vrot.slane %v2506, 2
        %v2727 = vsel %vm928, %v2725, %v2726
        %v2728 = vrot.slane %v2507, 2
        %v2729 = vsel %vm928, %v2726, %v2728
        %v2730 = vrot.slane %v2508, 2
        %v2731 = vrot.slane %v2509, 2
        %v2732 = vsel %vm928, %v2730, %v2731
        %v2733 = vrot.slane %v2510, 2
        %v2734 = vsel %vm928, %v2731, %v2733
        %v2735 = vrot.slane %v2511, 2
        %v2736 = vrot.slane %v2512, 2
        %v2737 = vsel %vm928, %v2735, %v2736
        %v2738 = vrot.slane %v2513, 2
        %v2739 = vsel %vm928, %v2736, %v2738
        %v2740 = vrot.slane %v2514, 2
        %v2741 = vrot.slane %v2515, 2
        %v2742 = vsel %vm928, %v2740, %v2741
        %v2743 = vrot.slane %v2516, 2
        %v2744 = vsel %vm928, %v2741, %v2743
        %v2745 = vrot.slane %v2517, 2
        %v2746 = vrot.slane %v2518, 2
        %v2747 = vsel %vm928, %v2745, %v2746
        %v2748 = vrot.slane %v2519, 2
        %v2749 = vsel %vm928, %v2746, %v2748
        %v2750 = vrot.slane %v2520, 2
        %v2751 = vrot.slane %v2521, 2
        %v2752 = vsel %vm928, %v2750, %v2751
        %v2753 = vrot.slane %v2522, 2
        %v2754 = vsel %vm928, %v2751, %v2753
        %v2755 = vrot.slane %v2523, 2
        %v2756 = vrot.slane %v2524, 2
        %v2757 = vsel %vm928, %v2755, %v2756
        %v2758 = vrot.slane %v2525, 2
        %v2759 = vsel %vm928, %v2756, %v2758
        %v2760 = vrot.slane %v2526, 2
        %v2761 = vrot.slane %v2527, 2
        %v2762 = vsel %vm928, %v2760, %v2761
        %v2763 = vrot.slane %v2528, 2
        %v2764 = vsel %vm928, %v2761, %v2763
        %v2765 = vrot.slane %v2529, 2
        %v2766 = vrot.slane %v2530, 2
        %v2767 = vsel %vm928, %v2765, %v2766
        %v2768 = vrot.slane %v2531, 2
        %v2769 = vsel %vm928, %v2766, %v2768
        %v2770 = vrot.slane %v2532, 2
        %v2771 = vrot.slane %v2533, 2
        %v2772 = vsel %vm928, %v2770, %v2771
        %v2773 = vrot.slane %v2534, 2
        %v2774 = vsel %vm928, %v2771, %v2773
        %s2807 = scalar_lea.vmem [#allocation10], 384
        %v2808 = vld [vmem:[%s2807] sm:$0xf]
        %v2809 = vld [vmem:[%s2807 + $0x4] sm:$0xf]
        %v2810 = vld [vmem:[%s2807 + $0x8] sm:$0xf]
        %v2811 = vld [vmem:[%s2807 + $0xc] sm:$0xf]
        %v2812 = vld [vmem:[%s2807 + $0x10] sm:$0xf]
        %v2813 = vld [vmem:[%s2807 + $0x14] sm:$0xf]
        %v2814 = vld [vmem:[%s2807 + $0x18] sm:$0xf]
        %v2815 = vld [vmem:[%s2807 + $0x1c] sm:$0xf]
        %v2816 = vld [vmem:[%s2807 + $0x20] sm:$0xf]
        %v2817 = vld [vmem:[%s2807 + $0x24] sm:$0xf]
        %v2818 = vld [vmem:[%s2807 + $0x28] sm:$0xf]
        %v2819 = vld [vmem:[%s2807 + $0x2c] sm:$0xf]
        %v2820 = vld [vmem:[%s2807 + $0x30] sm:$0xf]
        %v2821 = vld [vmem:[%s2807 + $0x34] sm:$0xf]
        %v2822 = vld [vmem:[%s2807 + $0x38] sm:$0xf]
        %v2823 = vld [vmem:[%s2807 + $0x3c] sm:$0xf]
        %v2824 = vld [vmem:[%s2807 + $0x40] sm:$0xf]
        %v2825 = vld [vmem:[%s2807 + $0x44] sm:$0xf]
        %v2826 = vld [vmem:[%s2807 + $0x48] sm:$0xf]
        %v2827 = vld [vmem:[%s2807 + $0x4c] sm:$0xf]
        %v2828 = vld [vmem:[%s2807 + $0x50] sm:$0xf]
        %v2829 = vld [vmem:[%s2807 + $0x54] sm:$0xf]
        %v2830 = vld [vmem:[%s2807 + $0x58] sm:$0xf]
        %v2831 = vld [vmem:[%s2807 + $0x5c] sm:$0xf]
        %v2832 = vld [vmem:[%s2807 + $0x60] sm:$0xf]
        %v2833 = vld [vmem:[%s2807 + $0x64] sm:$0xf]
        %v2834 = vld [vmem:[%s2807 + $0x68] sm:$0xf]
        %v2835 = vld [vmem:[%s2807 + $0x6c] sm:$0xf]
        %v2836 = vld [vmem:[%s2807 + $0x70] sm:$0xf]
        %v2837 = vld [vmem:[%s2807 + $0x74] sm:$0xf]
        %v2838 = vld [vmem:[%s2807 + $0x78] sm:$0xf]
        %v2839 = vld [vmem:[%s2807 + $0x7c] sm:$0xf]
        %v2840 = vld [vmem:[%s2807 + $0x80] sm:$0xf]
        %v2841 = vld [vmem:[%s2807 + $0x84] sm:$0xf]
        %v2842 = vld [vmem:[%s2807 + $0x88] sm:$0xf]
        %v2843 = vld [vmem:[%s2807 + $0x8c] sm:$0xf]
        %v2844 = vld [vmem:[%s2807 + $0x90] sm:$0xf]
        %v2845 = vld [vmem:[%s2807 + $0x94] sm:$0xf]
        %v2846 = vld [vmem:[%s2807 + $0x98] sm:$0xf]
        %v2847 = vld [vmem:[%s2807 + $0x9c] sm:$0xf]
        %v2848 = vld [vmem:[%s2807 + $0xa0] sm:$0xf]
        %v2849 = vld [vmem:[%s2807 + $0xa4] sm:$0xf]
        %v2850 = vld [vmem:[%s2807 + $0xa8] sm:$0xf]
        %v2851 = vld [vmem:[%s2807 + $0xac] sm:$0xf]
        %v2852 = vld [vmem:[%s2807 + $0xb0] sm:$0xf]
        %v2853 = vld [vmem:[%s2807 + $0xb4] sm:$0xf]
        %v2854 = vld [vmem:[%s2807 + $0xb8] sm:$0xf]
        %v2855 = vld [vmem:[%s2807 + $0xbc] sm:$0xf]
        %v2856 = vpack.c.bf16 %v2488, %v2487
        %v2857 = vpack.c.bf16 %v2587, %v2585
        %v2858 = vpack.c.bf16 %v2699, %v2697
        %v2859 = vpack.c.bf16 %v2491, %v2490
        %v2860 = vpack.c.bf16 %v2592, %v2590
        %v2861 = vpack.c.bf16 %v2704, %v2702
        %v2862 = vpack.c.bf16 %v2494, %v2493
        %v2863 = vpack.c.bf16 %v2597, %v2595
        %v2864 = vpack.c.bf16 %v2709, %v2707
        %v2865 = vpack.c.bf16 %v2497, %v2496
        %v2866 = vpack.c.bf16 %v2602, %v2600
        %v2867 = vpack.c.bf16 %v2714, %v2712
        %v2868 = vpack.c.bf16 %v2500, %v2499
        %v2869 = vpack.c.bf16 %v2607, %v2605
        %v2870 = vpack.c.bf16 %v2719, %v2717
        %v2871 = vpack.c.bf16 %v2503, %v2502
        %v2872 = vpack.c.bf16 %v2612, %v2610
        %v2873 = vpack.c.bf16 %v2724, %v2722
        %v2874 = vpack.c.bf16 %v2506, %v2505
        %v2875 = vpack.c.bf16 %v2617, %v2615
        %v2876 = vpack.c.bf16 %v2729, %v2727
        %v2877 = vpack.c.bf16 %v2509, %v2508
        %v2878 = vpack.c.bf16 %v2622, %v2620
        %v2879 = vpack.c.bf16 %v2734, %v2732
        %v2880 = vpack.c.bf16 %v2512, %v2511
        %v2881 = vpack.c.bf16 %v2627, %v2625
        %v2882 = vpack.c.bf16 %v2739, %v2737
        %v2883 = vpack.c.bf16 %v2515, %v2514
        %v2884 = vpack.c.bf16 %v2632, %v2630
        %v2885 = vpack.c.bf16 %v2744, %v2742
        %v2886 = vpack.c.bf16 %v2518, %v2517
        %v2887 = vpack.c.bf16 %v2637, %v2635
        %v2888 = vpack.c.bf16 %v2749, %v2747
        %v2889 = vpack.c.bf16 %v2521, %v2520
        %v2890 = vpack.c.bf16 %v2642, %v2640
        %v2891 = vpack.c.bf16 %v2754, %v2752
        %v2892 = vpack.c.bf16 %v2524, %v2523
        %v2893 = vpack.c.bf16 %v2647, %v2645
        %v2894 = vpack.c.bf16 %v2759, %v2757
        %v2895 = vpack.c.bf16 %v2527, %v2526
        %v2896 = vpack.c.bf16 %v2652, %v2650
        %v2897 = vpack.c.bf16 %v2764, %v2762
        %v2898 = vpack.c.bf16 %v2530, %v2529
        %v2899 = vpack.c.bf16 %v2657, %v2655
        %v2900 = vpack.c.bf16 %v2769, %v2767
        %v2901 = vpack.c.bf16 %v2533, %v2532
        %v2902 = vpack.c.bf16 %v2662, %v2660
        %v2903 = vpack.c.bf16 %v2774, %v2772
        %v2952 = vunpack.c.l.b16 %v2808
        %v2953 = vunpack.c.l.b16 %v2809
        %v2954 = vunpack.c.l.b16 %v2810
        %v2955 = vunpack.c.l.b16 %v2811
        %v2956 = vunpack.c.l.b16 %v2812
        %v2957 = vunpack.c.l.b16 %v2813
        %v2958 = vunpack.c.l.b16 %v2814
        %v2959 = vunpack.c.l.b16 %v2815
        %v2960 = vunpack.c.l.b16 %v2816
        %v2961 = vunpack.c.l.b16 %v2817
        %v2962 = vunpack.c.l.b16 %v2818
        %v2963 = vunpack.c.l.b16 %v2819
        %v2964 = vunpack.c.l.b16 %v2820
        %v2965 = vunpack.c.l.b16 %v2821
        %v2966 = vunpack.c.l.b16 %v2822
        %v2967 = vunpack.c.l.b16 %v2823
        %v2968 = vunpack.c.l.b16 %v2824
        %v2969 = vunpack.c.l.b16 %v2825
        %v2970 = vunpack.c.l.b16 %v2826
        %v2971 = vunpack.c.l.b16 %v2827
        %v2972 = vunpack.c.l.b16 %v2828
        %v2973 = vunpack.c.l.b16 %v2829
        %v2974 = vunpack.c.l.b16 %v2830
        %v2975 = vunpack.c.l.b16 %v2831
        %v2976 = vunpack.c.l.b16 %v2832
        %v2977 = vunpack.c.l.b16 %v2833
        %v2978 = vunpack.c.l.b16 %v2834
        %v2979 = vunpack.c.l.b16 %v2835
        %v2980 = vunpack.c.l.b16 %v2836
        %v2981 = vunpack.c.l.b16 %v2837
        %v2982 = vunpack.c.l.b16 %v2838
        %v2983 = vunpack.c.l.b16 %v2839
        %v2984 = vunpack.c.l.b16 %v2840
        %v2985 = vunpack.c.l.b16 %v2841
        %v2986 = vunpack.c.l.b16 %v2842
        %v2987 = vunpack.c.l.b16 %v2843
        %v2988 = vunpack.c.l.b16 %v2844
        %v2989 = vunpack.c.l.b16 %v2845
        %v2990 = vunpack.c.l.b16 %v2846
        %v2991 = vunpack.c.l.b16 %v2847
        %v2992 = vunpack.c.l.b16 %v2848
        %v2993 = vunpack.c.l.b16 %v2849
        %v2994 = vunpack.c.l.b16 %v2850
        %v2995 = vunpack.c.l.b16 %v2851
        %v2996 = vunpack.c.l.b16 %v2852
        %v2997 = vunpack.c.l.b16 %v2853
        %v2998 = vunpack.c.l.b16 %v2854
        %v2999 = vunpack.c.l.b16 %v2855
        %v3000 = vpack.c.b16 %v2953, %v2952
        %v3001 = vpack.c.b16 %v2955, %v2954
        %v3002 = vpack.c.b16 %v2957, %v2956
        %v3003 = vpack.c.b16 %v2959, %v2958
        %v3004 = vpack.c.b16 %v2961, %v2960
        %v3005 = vpack.c.b16 %v2963, %v2962
        %v3006 = vpack.c.b16 %v2965, %v2964
        %v3007 = vpack.c.b16 %v2967, %v2966
        %v3008 = vpack.c.b16 %v2969, %v2968
        %v3009 = vpack.c.b16 %v2971, %v2970
        %v3010 = vpack.c.b16 %v2973, %v2972
        %v3011 = vpack.c.b16 %v2975, %v2974
        %v3012 = vpack.c.b16 %v2977, %v2976
        %v3013 = vpack.c.b16 %v2979, %v2978
        %v3014 = vpack.c.b16 %v2981, %v2980
        %v3015 = vpack.c.b16 %v2983, %v2982
        %v3016 = vpack.c.b16 %v2985, %v2984
        %v3017 = vpack.c.b16 %v2987, %v2986
        %v3018 = vpack.c.b16 %v2989, %v2988
        %v3019 = vpack.c.b16 %v2991, %v2990
        %v3020 = vpack.c.b16 %v2993, %v2992
        %v3021 = vpack.c.b16 %v2995, %v2994
        %v3022 = vpack.c.b16 %v2997, %v2996
        %v3023 = vpack.c.b16 %v2999, %v2998
        %3048 = vmatprep.subr.bf16.mxu0 0
        %3049 = vmatpush1.bf16.msra.mxu0 %v3000
        %3050 = vmatprep.subr.bf16.mxu0 0
        %3051 = vmatpush1.bf16.msra.mxu0 %v3001
        %3052 = vmatprep.subr.bf16.mxu0 0
        %3053 = vmatpush1.bf16.msra.mxu0 %v3002
        %3054 = vmatprep.subr.bf16.mxu0 0
        %3055 = vmatpush1.bf16.msra.mxu0 %v3003
        %3056 = vmatprep.subr.bf16.mxu0 0
        %3057 = vmatpush1.bf16.msra.mxu0 %v3004
        %3058 = vmatprep.subr.bf16.mxu0 0
        %3059 = vmatpush1.bf16.msra.mxu0 %v3005
        %3060 = vmatprep.subr.bf16.mxu0 0
        %3061 = vmatpush1.bf16.msra.mxu0 %v3006
        %3062 = vmatprep.subr.bf16.mxu0 0
        %3063 = vmatpush1.bf16.msra.mxu0 %v3007
        %3064 = vmatprep.subr.bf16.mxu0 0
        %3065 = vmatpush1.bf16.msra.mxu0 %v3008
        %3066 = vmatprep.subr.bf16.mxu0 0
        %3067 = vmatpush1.bf16.msra.mxu0 %v3009
        %3068 = vmatprep.subr.bf16.mxu0 0
        %3069 = vmatpush1.bf16.msra.mxu0 %v3010
        %3070 = vmatprep.subr.bf16.mxu0 0
        %3071 = vmatpush1.bf16.msra.mxu0 %v3011
        %3072 = vmatprep.subr.bf16.mxu0 0
        %3073 = vmatpush1.bf16.msra.mxu0 %v3012
        %3074 = vmatprep.subr.bf16.mxu0 0
        %3075 = vmatpush1.bf16.msra.mxu0 %v3013
        %3076 = vmatprep.subr.bf16.mxu0 0
        %3077 = vmatpush1.bf16.msra.mxu0 %v3014
        %3078 = vmatprep.subr.bf16.mxu0 0
        %3079 = vmatpush1.bf16.msra.mxu0 %v3015
        %3080 = vmatprep.mubr.bf16.mxu0 %v2857
        %3081 = vmatmul.mubr.bf16.gmra.mrb[0].mxu0 %v2856
        %v3082 = vpop.f32.mrb[0].mxu0
        %v3083 = vadd.f32 0.0, %v3082
        %v3084 = vpop.f32.mrb[0].mxu0
        %v3085 = vpop.f32.mrb[0].mxu0
        %v3086 = vadd.f32 0.0, %v3085
        %v3087 = vpop.f32.mrb[0].mxu0
        %3088 = vmatprep.mubr.bf16.mxu0 %v2860
        %3089 = vmatmul.mubr.bf16.gmra.mrb[0].mxu0 %v2859
        %v3090 = vpop.f32.mrb[0].mxu0
        %v3091 = vadd.f32 0.0, %v3090
        %v3092 = vpop.f32.mrb[0].mxu0
        %v3093 = vpop.f32.mrb[0].mxu0
        %v3094 = vadd.f32 0.0, %v3093
        %v3095 = vpop.f32.mrb[0].mxu0
        %3096 = vmatprep.mubr.bf16.mxu0 %v2863
        %3097 = vmatmul.mubr.bf16.gmra.mrb[0].mxu0 %v2862
        %v3098 = vpop.f32.mrb[0].mxu0
        %v3099 = vadd.f32 0.0, %v3098
        %v3100 = vpop.f32.mrb[0].mxu0
        %v3101 = vpop.f32.mrb[0].mxu0
        %v3102 = vadd.f32 0.0, %v3101
        %v3103 = vpop.f32.mrb[0].mxu0
        %3104 = vmatprep.mubr.bf16.mxu0 %v2866
        %3105 = vmatmul.mubr.bf16.gmra.mrb[0].mxu0 %v2865
        %v3106 = vpop.f32.mrb[0].mxu0
        %v3107 = vadd.f32 0.0, %v3106
        %v3108 = vpop.f32.mrb[0].mxu0
        %v3109 = vpop.f32.mrb[0].mxu0
        %v3110 = vadd.f32 0.0, %v3109
        %v3111 = vpop.f32.mrb[0].mxu0
        %3112 = vmatprep.mubr.bf16.mxu0 %v2869
        %3113 = vmatmul.mubr.bf16.gmra.mrb[0].mxu0 %v2868
        %v3114 = vpop.f32.mrb[0].mxu0
        %v3115 = vadd.f32 0.0, %v3114
        %v3116 = vpop.f32.mrb[0].mxu0
        %v3117 = vpop.f32.mrb[0].mxu0
        %v3118 = vadd.f32 0.0, %v3117
        %v3119 = vpop.f32.mrb[0].mxu0
        %3120 = vmatprep.mubr.bf16.mxu0 %v2872
        %3121 = vmatmul.mubr.bf16.gmra.mrb[0].mxu0 %v2871
        %v3122 = vpop.f32.mrb[0].mxu0
        %v3123 = vadd.f32 0.0, %v3122
        %v3124 = vpop.f32.mrb[0].mxu0
        %v3125 = vpop.f32.mrb[0].mxu0
        %v3126 = vadd.f32 0.0, %v3125
        %v3127 = vpop.f32.mrb[0].mxu0
        %3128 = vmatprep.mubr.bf16.mxu0 %v2875
        %3129 = vmatmul.mubr.bf16.gmra.mrb[0].mxu0 %v2874
        %v3130 = vpop.f32.mrb[0].mxu0
        %v3131 = vadd.f32 0.0, %v3130
        %v3132 = vpop.f32.mrb[0].mxu0
        %v3133 = vpop.f32.mrb[0].mxu0
        %v3134 = vadd.f32 0.0, %v3133
        %v3135 = vpop.f32.mrb[0].mxu0
        %3136 = vmatprep.mubr.bf16.mxu0 %v2878
        %3137 = vmatmul.mubr.bf16.gmra.mrb[0].mxu0 %v2877
        %v3138 = vpop.f32.mrb[0].mxu0
        %v3139 = vadd.f32 0.0, %v3138
        %v3140 = vpop.f32.mrb[0].mxu0
        %v3141 = vpop.f32.mrb[0].mxu0
        %v3142 = vadd.f32 0.0, %v3141
        %v3143 = vpop.f32.mrb[0].mxu0
        %3144 = vmatprep.mubr.bf16.mxu0 %v2881
        %3145 = vmatmul.mubr.bf16.gmra.mrb[0].mxu0 %v2880
        %v3146 = vpop.f32.mrb[0].mxu0
        %v3147 = vadd.f32 0.0, %v3146
        %v3148 = vpop.f32.mrb[0].mxu0
        %v3149 = vpop.f32.mrb[0].mxu0
        %v3150 = vadd.f32 0.0, %v3149
        %v3151 = vpop.f32.mrb[0].mxu0
        %3152 = vmatprep.mubr.bf16.mxu0 %v2884
        %3153 = vmatmul.mubr.bf16.gmra.mrb[0].mxu0 %v2883
        %v3154 = vpop.f32.mrb[0].mxu0
        %v3155 = vadd.f32 0.0, %v3154
        %v3156 = vpop.f32.mrb[0].mxu0
        %v3157 = vpop.f32.mrb[0].mxu0
        %v3158 = vadd.f32 0.0, %v3157
        %v3159 = vpop.f32.mrb[0].mxu0
        %3160 = vmatprep.mubr.bf16.mxu0 %v2887
        %3161 = vmatmul.mubr.bf16.gmra.mrb[0].mxu0 %v2886
        %v3162 = vpop.f32.mrb[0].mxu0
        %v3163 = vadd.f32 0.0, %v3162
        %v3164 = vpop.f32.mrb[0].mxu0
        %v3165 = vpop.f32.mrb[0].mxu0
        %v3166 = vadd.f32 0.0, %v3165
        %v3167 = vpop.f32.mrb[0].mxu0
        %3168 = vmatprep.mubr.bf16.mxu0 %v2890
        %3169 = vmatmul.mubr.bf16.gmra.mrb[0].mxu0 %v2889
        %v3170 = vpop.f32.mrb[0].mxu0
        %v3171 = vadd.f32 0.0, %v3170
        %v3172 = vpop.f32.mrb[0].mxu0
        %v3173 = vpop.f32.mrb[0].mxu0
        %v3174 = vadd.f32 0.0, %v3173
        %v3175 = vpop.f32.mrb[0].mxu0
        %3176 = vmatprep.mubr.bf16.mxu0 %v2893
        %3177 = vmatmul.mubr.bf16.gmra.mrb[0].mxu0 %v2892
        %v3178 = vpop.f32.mrb[0].mxu0
        %v3179 = vadd.f32 0.0, %v3178
        %v3180 = vpop.f32.mrb[0].mxu0
        %v3181 = vpop.f32.mrb[0].mxu0
        %v3182 = vadd.f32 0.0, %v3181
        %v3183 = vpop.f32.mrb[0].mxu0
        %3184 = vmatprep.mubr.bf16.mxu0 %v2896
        %3185 = vmatmul.mubr.bf16.gmra.mrb[0].mxu0 %v2895
        %v3186 = vpop.f32.mrb[0].mxu0
        %v3187 = vadd.f32 0.0, %v3186
        %v3188 = vpop.f32.mrb[0].mxu0
        %v3189 = vpop.f32.mrb[0].mxu0
        %v3190 = vadd.f32 0.0, %v3189
        %v3191 = vpop.f32.mrb[0].mxu0
        %3192 = vmatprep.mubr.bf16.mxu0 %v2899
        %3193 = vmatmul.mubr.bf16.gmra.mrb[0].mxu0 %v2898
        %v3194 = vpop.f32.mrb[0].mxu0
        %v3195 = vadd.f32 0.0, %v3194
        %v3196 = vpop.f32.mrb[0].mxu0
        %v3197 = vpop.f32.mrb[0].mxu0
        %v3198 = vadd.f32 0.0, %v3197
        %v3199 = vpop.f32.mrb[0].mxu0
        %3200 = vmatprep.mubr.bf16.mxu0 %v2902
        %3201 = vmatmul.mubr.bf16.gmra.mrb[0].mxu0 %v2901
        %v3202 = vpop.f32.mrb[0].mxu0
        %v3203 = vadd.f32 0.0, %v3202
        %v3204 = vpop.f32.mrb[0].mxu0
        %v3205 = vpop.f32.mrb[0].mxu0
        %v3206 = vadd.f32 0.0, %v3205
        %v3207 = vpop.f32.mrb[0].mxu0
        %3208 = vdwg.mxu0
        %3209 = vmatprep.subr.bf16.mxu0 0
        %3210 = vmatpush1.bf16.msra.mxu0 %v3016
        %3211 = vmatprep.subr.bf16.mxu0 0
        %3212 = vmatpush1.bf16.msra.mxu0 %v3017
        %3213 = vmatprep.subr.bf16.mxu0 0
        %3214 = vmatpush1.bf16.msra.mxu0 %v3018
        %3215 = vmatprep.subr.bf16.mxu0 0
        %3216 = vmatpush1.bf16.msra.mxu0 %v3019
        %3217 = vmatprep.subr.bf16.mxu0 0
        %3218 = vmatpush1.bf16.msra.mxu0 %v3020
        %3219 = vmatprep.subr.bf16.mxu0 0
        %3220 = vmatpush1.bf16.msra.mxu0 %v3021
        %3221 = vmatprep.subr.bf16.mxu0 0
        %3222 = vmatpush1.bf16.msra.mxu0 %v3022
        %3223 = vmatprep.subr.bf16.mxu0 0
        %3224 = vmatpush1.bf16.msra.mxu0 %v3023
        %3225 = vmatprep.subr.bf16.mxu0 0
        %3226 = vmatpush1.bf16.msra.mxu0 0
        %3227 = vmatprep.subr.bf16.mxu0 0
        %3228 = vmatpush1.bf16.msra.mxu0 0
        %3229 = vmatprep.subr.bf16.mxu0 0
        %3230 = vmatpush1.bf16.msra.mxu0 0
        %3231 = vmatprep.subr.bf16.mxu0 0
        %3232 = vmatpush1.bf16.msra.mxu0 0
        %3233 = vmatprep.subr.bf16.mxu0 0
        %3234 = vmatpush1.bf16.msra.mxu0 0
        %3235 = vmatprep.subr.bf16.mxu0 0
        %3236 = vmatpush1.bf16.msra.mxu0 0
        %3237 = vmatprep.subr.bf16.mxu0 0
        %3238 = vmatpush1.bf16.msra.mxu0 0
        %3239 = vmatprep.subr.bf16.mxu0 0
        %3240 = vmatpush1.bf16.msra.mxu0 0
        %3241 = vmatprep.mubr.bf16.mxu0 0
        %3242 = vmatmul.mubr.bf16.gmra.mrb[0].mxu0 %v2858
        %v3243 = vpop.f32.mrb[0].mxu0
        %v3244 = vadd.f32 %v3083, %v3243
        %v3245 = vpop.f32.mrb[0].mxu0
        %v3246 = vpop.f32.mrb[0].mxu0
        %v3247 = vadd.f32 %v3086, %v3246
        %v3248 = vpop.f32.mrb[0].mxu0
        %3249 = vmatprep.mubr.bf16.mxu0 0
        %3250 = vmatmul.mubr.bf16.gmra.mrb[0].mxu0 %v2861
        %v3251 = vpop.f32.mrb[0].mxu0
        %v3252 = vadd.f32 %v3091, %v3251
        %v3253 = vpop.f32.mrb[0].mxu0
        %v3254 = vpop.f32.mrb[0].mxu0
        %v3255 = vadd.f32 %v3094, %v3254
        %v3256 = vpop.f32.mrb[0].mxu0
        %3257 = vmatprep.mubr.bf16.mxu0 0
        %3258 = vmatmul.mubr.bf16.gmra.mrb[0].mxu0 %v2864
        %v3259 = vpop.f32.mrb[0].mxu0
        %v3260 = vadd.f32 %v3099, %v3259
        %v3261 = vpop.f32.mrb[0].mxu0
        %v3262 = vpop.f32.mrb[0].mxu0
        %v3263 = vadd.f32 %v3102, %v3262
        %v3264 = vpop.f32.mrb[0].mxu0
        %3265 = vmatprep.mubr.bf16.mxu0 0
        %3266 = vmatmul.mubr.bf16.gmra.mrb[0].mxu0 %v2867
        %v3267 = vpop.f32.mrb[0].mxu0
        %v3268 = vadd.f32 %v3107, %v3267
        %v3269 = vpop.f32.mrb[0].mxu0
        %v3270 = vpop.f32.mrb[0].mxu0
        %v3271 = vadd.f32 %v3110, %v3270
        %v3272 = vpop.f32.mrb[0].mxu0
        %3273 = vmatprep.mubr.bf16.mxu0 0
        %3274 = vmatmul.mubr.bf16.gmra.mrb[0].mxu0 %v2870
        %v3275 = vpop.f32.mrb[0].mxu0
        %v3276 = vadd.f32 %v3115, %v3275
        %v3277 = vpop.f32.mrb[0].mxu0
        %v3278 = vpop.f32.mrb[0].mxu0
        %v3279 = vadd.f32 %v3118, %v3278
        %v3280 = vpop.f32.mrb[0].mxu0
        %3281 = vmatprep.mubr.bf16.mxu0 0
        %3282 = vmatmul.mubr.bf16.gmra.mrb[0].mxu0 %v2873
        %v3283 = vpop.f32.mrb[0].mxu0
        %v3284 = vadd.f32 %v3123, %v3283
        %v3285 = vpop.f32.mrb[0].mxu0
        %v3286 = vpop.f32.mrb[0].mxu0
        %v3287 = vadd.f32 %v3126, %v3286
        %v3288 = vpop.f32.mrb[0].mxu0
        %3289 = vmatprep.mubr.bf16.mxu0 0
        %3290 = vmatmul.mubr.bf16.gmra.mrb[0].mxu0 %v2876
        %v3291 = vpop.f32.mrb[0].mxu0
        %v3292 = vadd.f32 %v3131, %v3291
        %v3293 = vpop.f32.mrb[0].mxu0
        %v3294 = vpop.f32.mrb[0].mxu0
        %v3295 = vadd.f32 %v3134, %v3294
        %v3296 = vpop.f32.mrb[0].mxu0
        %3297 = vmatprep.mubr.bf16.mxu0 0
        %3298 = vmatmul.mubr.bf16.gmra.mrb[0].mxu0 %v2879
        %v3299 = vpop.f32.mrb[0].mxu0
        %v3300 = vadd.f32 %v3139, %v3299
        %v3301 = vpop.f32.mrb[0].mxu0
        %v3302 = vpop.f32.mrb[0].mxu0
        %v3303 = vadd.f32 %v3142, %v3302
        %v3304 = vpop.f32.mrb[0].mxu0
        %3305 = vmatprep.mubr.bf16.mxu0 0
        %3306 = vmatmul.mubr.bf16.gmra.mrb[0].mxu0 %v2882
        %v3307 = vpop.f32.mrb[0].mxu0
        %v3308 = vadd.f32 %v3147, %v3307
        %v3309 = vpop.f32.mrb[0].mxu0
        %v3310 = vpop.f32.mrb[0].mxu0
        %v3311 = vadd.f32 %v3150, %v3310
        %v3312 = vpop.f32.mrb[0].mxu0
        %3313 = vmatprep.mubr.bf16.mxu0 0
        %3314 = vmatmul.mubr.bf16.gmra.mrb[0].mxu0 %v2885
        %v3315 = vpop.f32.mrb[0].mxu0
        %v3316 = vadd.f32 %v3155, %v3315
        %v3317 = vpop.f32.mrb[0].mxu0
        %v3318 = vpop.f32.mrb[0].mxu0
        %v3319 = vadd.f32 %v3158, %v3318
        %v3320 = vpop.f32.mrb[0].mxu0
        %3321 = vmatprep.mubr.bf16.mxu0 0
        %3322 = vmatmul.mubr.bf16.gmra.mrb[0].mxu0 %v2888
        %v3323 = vpop.f32.mrb[0].mxu0
        %v3324 = vadd.f32 %v3163, %v3323
        %v3325 = vpop.f32.mrb[0].mxu0
        %v3326 = vpop.f32.mrb[0].mxu0
        %v3327 = vadd.f32 %v3166, %v3326
        %v3328 = vpop.f32.mrb[0].mxu0
        %3329 = vmatprep.mubr.bf16.mxu0 0
        %3330 = vmatmul.mubr.bf16.gmra.mrb[0].mxu0 %v2891
        %v3331 = vpop.f32.mrb[0].mxu0
        %v3332 = vadd.f32 %v3171, %v3331
        %v3333 = vpop.f32.mrb[0].mxu0
        %v3334 = vpop.f32.mrb[0].mxu0
        %v3335 = vadd.f32 %v3174, %v3334
        %v3336 = vpop.f32.mrb[0].mxu0
        %3337 = vmatprep.mubr.bf16.mxu0 0
        %3338 = vmatmul.mubr.bf16.gmra.mrb[0].mxu0 %v2894
        %v3339 = vpop.f32.mrb[0].mxu0
        %v3340 = vadd.f32 %v3179, %v3339
        %v3341 = vpop.f32.mrb[0].mxu0
        %v3342 = vpop.f32.mrb[0].mxu0
        %v3343 = vadd.f32 %v3182, %v3342
        %v3344 = vpop.f32.mrb[0].mxu0
        %3345 = vmatprep.mubr.bf16.mxu0 0
        %3346 = vmatmul.mubr.bf16.gmra.mrb[0].mxu0 %v2897
        %v3347 = vpop.f32.mrb[0].mxu0
        %v3348 = vadd.f32 %v3187, %v3347
        %v3349 = vpop.f32.mrb[0].mxu0
        %v3350 = vpop.f32.mrb[0].mxu0
        %v3351 = vadd.f32 %v3190, %v3350
        %v3352 = vpop.f32.mrb[0].mxu0
        %3353 = vmatprep.mubr.bf16.mxu0 0
        %3354 = vmatmul.mubr.bf16.gmra.mrb[0].mxu0 %v2900
        %v3355 = vpop.f32.mrb[0].mxu0
        %v3356 = vadd.f32 %v3195, %v3355
        %v3357 = vpop.f32.mrb[0].mxu0
        %v3358 = vpop.f32.mrb[0].mxu0
        %v3359 = vadd.f32 %v3198, %v3358
        %v3360 = vpop.f32.mrb[0].mxu0
        %3361 = vmatprep.mubr.bf16.mxu0 0
        %3362 = vmatmul.mubr.bf16.gmra.mrb[0].mxu0 %v2903
        %v3363 = vpop.f32.mrb[0].mxu0
        %v3364 = vadd.f32 %v3203, %v3363
        %v3365 = vpop.f32.mrb[0].mxu0
        %v3366 = vpop.f32.mrb[0].mxu0
        %v3367 = vadd.f32 %v3206, %v3366
        %v3368 = vpop.f32.mrb[0].mxu0
        %3369 = vdwg.mxu0
        %v3370 = vadd.f32 %v2360, %v3244
        %v3371 = vadd.f32 %v2363, %v3247
        %v3372 = vadd.f32 %v2368, %v3252
        %v3373 = vadd.f32 %v2371, %v3255
        %v3374 = vadd.f32 %v2376, %v3260
        %v3375 = vadd.f32 %v2379, %v3263
        %v3376 = vadd.f32 %v2384, %v3268
        %v3377 = vadd.f32 %v2387, %v3271
        %v3378 = vadd.f32 %v2392, %v3276
        %v3379 = vadd.f32 %v2395, %v3279
        %v3380 = vadd.f32 %v2400, %v3284
        %v3381 = vadd.f32 %v2403, %v3287
        %v3382 = vadd.f32 %v2408, %v3292
        %v3383 = vadd.f32 %v2411, %v3295
        %v3384 = vadd.f32 %v2416, %v3300
        %v3385 = vadd.f32 %v2419, %v3303
        %v3386 = vadd.f32 %v2424, %v3308
        %v3387 = vadd.f32 %v2427, %v3311
        %v3388 = vadd.f32 %v2432, %v3316
        %v3389 = vadd.f32 %v2435, %v3319
        %v3390 = vadd.f32 %v2440, %v3324
        %v3391 = vadd.f32 %v2443, %v3327
        %v3392 = vadd.f32 %v2448, %v3332
        %v3393 = vadd.f32 %v2451, %v3335
        %v3394 = vadd.f32 %v2456, %v3340
        %v3395 = vadd.f32 %v2459, %v3343
        %v3396 = vadd.f32 %v2464, %v3348
        %v3397 = vadd.f32 %v2467, %v3351
        %v3398 = vadd.f32 %v2472, %v3356
        %v3399 = vadd.f32 %v2475, %v3359
        %v3400 = vadd.f32 %v2480, %v3364
        %v3401 = vadd.f32 %v2483, %v3367
        %v3402 = vld [vmem:[#allocation12] sm:$0x1]
        %v3404 = vlaneseq
        %v3405 = vshrl.u32 %v3404, 7
        %v3406 = vsub.s32 0, %v3405
        %v3407 = vrot.slane %v3402, %v3406
        %v3409 = vmul.f32 %v3370, %v3407
        %v3410 = vmul.f32 %v3371, %v3407
        %v3411 = vmul.f32 %v3372, %v3407
        %v3412 = vmul.f32 %v3373, %v3407
        %v3413 = vmul.f32 %v3374, %v3407
        %v3414 = vmul.f32 %v3375, %v3407
        %v3415 = vmul.f32 %v3376, %v3407
        %v3416 = vmul.f32 %v3377, %v3407
        %v3417 = vmul.f32 %v3378, %v3407
        %v3418 = vmul.f32 %v3379, %v3407
        %v3419 = vmul.f32 %v3380, %v3407
        %v3420 = vmul.f32 %v3381, %v3407
        %v3421 = vmul.f32 %v3382, %v3407
        %v3422 = vmul.f32 %v3383, %v3407
        %v3423 = vmul.f32 %v3384, %v3407
        %v3424 = vmul.f32 %v3385, %v3407
        %v3425 = vmul.f32 %v3386, %v3407
        %v3426 = vmul.f32 %v3387, %v3407
        %v3427 = vmul.f32 %v3388, %v3407
        %v3428 = vmul.f32 %v3389, %v3407
        %v3429 = vmul.f32 %v3390, %v3407
        %v3430 = vmul.f32 %v3391, %v3407
        %v3431 = vmul.f32 %v3392, %v3407
        %v3432 = vmul.f32 %v3393, %v3407
        %v3433 = vmul.f32 %v3394, %v3407
        %v3434 = vmul.f32 %v3395, %v3407
        %v3435 = vmul.f32 %v3396, %v3407
        %v3436 = vmul.f32 %v3397, %v3407
        %v3437 = vmul.f32 %v3398, %v3407
        %v3438 = vmul.f32 %v3399, %v3407
        %v3439 = vmul.f32 %v3400, %v3407
        %v3440 = vmul.f32 %v3401, %v3407
        %v3441 = vld [vmem:[#allocation13] sm:$0x1]
        %v3443 = vlaneseq
        %v3444 = vshrl.u32 %v3443, 7
        %v3445 = vsub.s32 0, %v3444
        %v3446 = vrot.slane %v3441, %v3445
        %v3448 = vadd.f32 %v3409, %v3446
        %v3449 = vadd.f32 %v3410, %v3446
        %v3450 = vadd.f32 %v3411, %v3446
        %v3451 = vadd.f32 %v3412, %v3446
        %v3452 = vadd.f32 %v3413, %v3446
        %v3453 = vadd.f32 %v3414, %v3446
        %v3454 = vadd.f32 %v3415, %v3446
        %v3455 = vadd.f32 %v3416, %v3446
        %v3456 = vadd.f32 %v3417, %v3446
        %v3457 = vadd.f32 %v3418, %v3446
        %v3458 = vadd.f32 %v3419, %v3446
        %v3459 = vadd.f32 %v3420, %v3446
        %v3460 = vadd.f32 %v3421, %v3446
        %v3461 = vadd.f32 %v3422, %v3446
        %v3462 = vadd.f32 %v3423, %v3446
        %v3463 = vadd.f32 %v3424, %v3446
        %v3464 = vadd.f32 %v3425, %v3446
        %v3465 = vadd.f32 %v3426, %v3446
        %v3466 = vadd.f32 %v3427, %v3446
        %v3467 = vadd.f32 %v3428, %v3446
        %v3468 = vadd.f32 %v3429, %v3446
        %v3469 = vadd.f32 %v3430, %v3446
        %v3470 = vadd.f32 %v3431, %v3446
        %v3471 = vadd.f32 %v3432, %v3446
        %v3472 = vadd.f32 %v3433, %v3446
        %v3473 = vadd.f32 %v3434, %v3446
        %v3474 = vadd.f32 %v3435, %v3446
        %v3475 = vadd.f32 %v3436, %v3446
        %v3476 = vadd.f32 %v3437, %v3446
        %v3477 = vadd.f32 %v3438, %v3446
        %v3478 = vadd.f32 %v3439, %v3446
        %v3479 = vadd.f32 %v3440, %v3446
        %v3480 = vmax.f32 %v3448, 0.0
        %v3481 = vmax.f32 %v3449, 0.0
        %v3482 = vmax.f32 %v3450, 0.0
        %v3483 = vmax.f32 %v3451, 0.0
        %v3484 = vmax.f32 %v3452, 0.0
        %v3485 = vmax.f32 %v3453, 0.0
        %v3486 = vmax.f32 %v3454, 0.0
        %v3487 = vmax.f32 %v3455, 0.0
        %v3488 = vmax.f32 %v3456, 0.0
        %v3489 = vmax.f32 %v3457, 0.0
        %v3490 = vmax.f32 %v3458, 0.0
        %v3491 = vmax.f32 %v3459, 0.0
        %v3492 = vmax.f32 %v3460, 0.0
        %v3493 = vmax.f32 %v3461, 0.0
        %v3494 = vmax.f32 %v3462, 0.0
        %v3495 = vmax.f32 %v3463, 0.0
        %v3496 = vmax.f32 %v3464, 0.0
        %v3497 = vmax.f32 %v3465, 0.0
        %v3498 = vmax.f32 %v3466, 0.0
        %v3499 = vmax.f32 %v3467, 0.0
        %v3500 = vmax.f32 %v3468, 0.0
        %v3501 = vmax.f32 %v3469, 0.0
        %v3502 = vmax.f32 %v3470, 0.0
        %v3503 = vmax.f32 %v3471, 0.0
        %v3504 = vmax.f32 %v3472, 0.0
        %v3505 = vmax.f32 %v3473, 0.0
        %v3506 = vmax.f32 %v3474, 0.0
        %v3507 = vmax.f32 %v3475, 0.0
        %v3508 = vmax.f32 %v3476, 0.0
        %v3509 = vmax.f32 %v3477, 0.0
        %v3510 = vmax.f32 %v3478, 0.0
        %v3511 = vmax.f32 %v3479, 0.0
        %s3512 = scalar_lea.vmem [#allocation3], 24
        %3513 = vst [vmem:[%s3512 + $0x1] sm:$0xff] %v3480
        %3514 = vst [vmem:[%s3512 + $0x9] sm:$0xff] %v3481
        %3515 = vst [vmem:[%s3512 + $0x19] sm:$0xff] %v3482
        %3516 = vst [vmem:[%s3512 + $0x21] sm:$0xff] %v3483
        %3517 = vst [vmem:[%s3512 + $0x31] sm:$0xff] %v3484
        %3518 = vst [vmem:[%s3512 + $0x39] sm:$0xff] %v3485
        %3519 = vst [vmem:[%s3512 + $0x49] sm:$0xff] %v3486
        %3520 = vst [vmem:[%s3512 + $0x51] sm:$0xff] %v3487
        %3521 = vst [vmem:[%s3512 + $0x61] sm:$0xff] %v3488
        %3522 = vst [vmem:[%s3512 + $0x69] sm:$0xff] %v3489
        %3523 = vst [vmem:[%s3512 + $0x79] sm:$0xff] %v3490
        %3524 = vst [vmem:[%s3512 + $0x81] sm:$0xff] %v3491
        %3525 = vst [vmem:[%s3512 + $0x91] sm:$0xff] %v3492
        %3526 = vst [vmem:[%s3512 + $0x99] sm:$0xff] %v3493
        %3527 = vst [vmem:[%s3512 + $0xa9] sm:$0xff] %v3494
        %3528 = vst [vmem:[%s3512 + $0xb1] sm:$0xff] %v3495
        %3529 = vst [vmem:[%s3512 + $0xc1] sm:$0xff] %v3496
        %3530 = vst [vmem:[%s3512 + $0xc9] sm:$0xff] %v3497
        %3531 = vst [vmem:[%s3512 + $0xd9] sm:$0xff] %v3498
        %3532 = vst [vmem:[%s3512 + $0xe1] sm:$0xff] %v3499
        %3533 = vst [vmem:[%s3512 + $0xf1] sm:$0xff] %v3500
        %3534 = vst [vmem:[%s3512 + $0xf9] sm:$0xff] %v3501
        %3535 = vst [vmem:[%s3512 + $0x109] sm:$0xff] %v3502
        %3536 = vst [vmem:[%s3512 + $0x111] sm:$0xff] %v3503
        %3537 = vst [vmem:[%s3512 + $0x121] sm:$0xff] %v3504
        %3538 = vst [vmem:[%s3512 + $0x129] sm:$0xff] %v3505
        %3539 = vst [vmem:[%s3512 + $0x139] sm:$0xff] %v3506
        %3540 = vst [vmem:[%s3512 + $0x141] sm:$0xff] %v3507
        %3541 = vst [vmem:[%s3512 + $0x151] sm:$0xff] %v3508
        %3542 = vst [vmem:[%s3512 + $0x159] sm:$0xff] %v3509
        %3543 = vst [vmem:[%s3512 + $0x169] sm:$0xff] %v3510
        %3544 = vst [vmem:[%s3512 + $0x171] sm:$0xff] %v3511
        %v3545 = vld [vmem:[#allocation3] ss:$2 sm:$0xff]
        %s3546 = scalar_lea.vmem [#allocation3], 48
        %v3547 = vld [vmem:[%s3546] ss:$2 sm:$0xff]
        %s3548 = scalar_lea.vmem [#allocation3], 96
        %v3549 = vld [vmem:[%s3548] ss:$2 sm:$0xff]
        %s3550 = scalar_lea.vmem [#allocation3], 144
        %v3551 = vld [vmem:[%s3550] ss:$2 sm:$0xff]
        %s3552 = scalar_lea.vmem [#allocation3], 192
        %v3553 = vld [vmem:[%s3552] ss:$2 sm:$0xff]
        %s3554 = scalar_lea.vmem [#allocation3], 240
        %v3555 = vld [vmem:[%s3554] ss:$2 sm:$0xff]
        %s3556 = scalar_lea.vmem [#allocation3], 288
        %v3557 = vld [vmem:[%s3556] ss:$2 sm:$0xff]
        %s3558 = scalar_lea.vmem [#allocation3], 336
        %v3559 = vld [vmem:[%s3558] ss:$2 sm:$0xff]
        %s3560 = scalar_lea.vmem [#allocation3], 1
        %v3561 = vld [vmem:[%s3560] ss:$2 sm:$0xff]
        %s3562 = scalar_lea.vmem [#allocation3], 49
        %v3563 = vld [vmem:[%s3562] ss:$2 sm:$0xff]
        %s3564 = scalar_lea.vmem [#allocation3], 97
        %v3565 = vld [vmem:[%s3564] ss:$2 sm:$0xff]
        %s3566 = scalar_lea.vmem [#allocation3], 145
        %v3567 = vld [vmem:[%s3566] ss:$2 sm:$0xff]
        %s3568 = scalar_lea.vmem [#allocation3], 193
        %v3569 = vld [vmem:[%s3568] ss:$2 sm:$0xff]
        %s3570 = scalar_lea.vmem [#allocation3], 241
        %v3571 = vld [vmem:[%s3570] ss:$2 sm:$0xff]
        %s3572 = scalar_lea.vmem [#allocation3], 289
        %v3573 = vld [vmem:[%s3572] ss:$2 sm:$0xff]
        %s3574 = scalar_lea.vmem [#allocation3], 337
        %v3575 = vld [vmem:[%s3574] ss:$2 sm:$0xff]
        %s3576 = scalar_lea.vmem [#allocation3], 2
        %v3577 = vld [vmem:[%s3576] ss:$2 sm:$0xff]
        %s3578 = scalar_lea.vmem [#allocation3], 50
        %v3579 = vld [vmem:[%s3578] ss:$2 sm:$0xff]
        %s3580 = scalar_lea.vmem [#allocation3], 98
        %v3581 = vld [vmem:[%s3580] ss:$2 sm:$0xff]
        %s3582 = scalar_lea.vmem [#allocation3], 146
        %v3583 = vld [vmem:[%s3582] ss:$2 sm:$0xff]
        %s3584 = scalar_lea.vmem [#allocation3], 194
        %v3585 = vld [vmem:[%s3584] ss:$2 sm:$0xff]
        %s3586 = scalar_lea.vmem [#allocation3], 242
        %v3587 = vld [vmem:[%s3586] ss:$2 sm:$0xff]
        %s3588 = scalar_lea.vmem [#allocation3], 290
        %v3589 = vld [vmem:[%s3588] ss:$2 sm:$0xff]
        %s3590 = scalar_lea.vmem [#allocation3], 338
        %v3591 = vld [vmem:[%s3590] ss:$2 sm:$0xff]
        %v3592 = vld [vmem:[#allocation15] sm:$0xf]
        %v3593 = vld [vmem:[#allocation15 + $0x4] sm:$0xf]
        %v3594 = vld [vmem:[#allocation15 + $0x8] sm:$0xf]
        %v3595 = vld [vmem:[#allocation15 + $0xc] sm:$0xf]
        %v3596 = vld [vmem:[#allocation15 + $0x10] sm:$0xf]
        %v3597 = vld [vmem:[#allocation15 + $0x14] sm:$0xf]
        %v3598 = vld [vmem:[#allocation15 + $0x18] sm:$0xf]
        %v3599 = vld [vmem:[#allocation15 + $0x1c] sm:$0xf]
        %v3600 = vld [vmem:[#allocation15 + $0x20] sm:$0xf]
        %v3601 = vld [vmem:[#allocation15 + $0x24] sm:$0xf]
        %v3602 = vld [vmem:[#allocation15 + $0x28] sm:$0xf]
        %v3603 = vld [vmem:[#allocation15 + $0x2c] sm:$0xf]
        %v3604 = vld [vmem:[#allocation15 + $0x30] sm:$0xf]
        %v3605 = vld [vmem:[#allocation15 + $0x34] sm:$0xf]
        %v3606 = vld [vmem:[#allocation15 + $0x38] sm:$0xf]
        %v3607 = vld [vmem:[#allocation15 + $0x3c] sm:$0xf]
        %v3608 = vld [vmem:[#allocation15 + $0x40] sm:$0xf]
        %v3609 = vld [vmem:[#allocation15 + $0x44] sm:$0xf]
        %v3610 = vld [vmem:[#allocation15 + $0x48] sm:$0xf]
        %v3611 = vld [vmem:[#allocation15 + $0x4c] sm:$0xf]
        %v3612 = vld [vmem:[#allocation15 + $0x50] sm:$0xf]
        %v3613 = vld [vmem:[#allocation15 + $0x54] sm:$0xf]
        %v3614 = vld [vmem:[#allocation15 + $0x58] sm:$0xf]
        %v3615 = vld [vmem:[#allocation15 + $0x5c] sm:$0xf]
        %v3616 = vld [vmem:[#allocation15 + $0x60] sm:$0xf]
        %v3617 = vld [vmem:[#allocation15 + $0x64] sm:$0xf]
        %v3618 = vld [vmem:[#allocation15 + $0x68] sm:$0xf]
        %v3619 = vld [vmem:[#allocation15 + $0x6c] sm:$0xf]
        %v3620 = vld [vmem:[#allocation15 + $0x70] sm:$0xf]
        %v3621 = vld [vmem:[#allocation15 + $0x74] sm:$0xf]
        %v3622 = vld [vmem:[#allocation15 + $0x78] sm:$0xf]
        %v3623 = vld [vmem:[#allocation15 + $0x7c] sm:$0xf]
        %v3624 = vld [vmem:[#allocation15 + $0x80] sm:$0xf]
        %v3625 = vld [vmem:[#allocation15 + $0x84] sm:$0xf]
        %v3626 = vld [vmem:[#allocation15 + $0x88] sm:$0xf]
        %v3627 = vld [vmem:[#allocation15 + $0x8c] sm:$0xf]
        %v3628 = vld [vmem:[#allocation15 + $0x90] sm:$0xf]
        %v3629 = vld [vmem:[#allocation15 + $0x94] sm:$0xf]
        %v3630 = vld [vmem:[#allocation15 + $0x98] sm:$0xf]
        %v3631 = vld [vmem:[#allocation15 + $0x9c] sm:$0xf]
        %v3632 = vld [vmem:[#allocation15 + $0xa0] sm:$0xf]
        %v3633 = vld [vmem:[#allocation15 + $0xa4] sm:$0xf]
        %v3634 = vld [vmem:[#allocation15 + $0xa8] sm:$0xf]
        %v3635 = vld [vmem:[#allocation15 + $0xac] sm:$0xf]
        %v3636 = vld [vmem:[#allocation15 + $0xb0] sm:$0xf]
        %v3637 = vld [vmem:[#allocation15 + $0xb4] sm:$0xf]
        %v3638 = vld [vmem:[#allocation15 + $0xb8] sm:$0xf]
        %v3639 = vld [vmem:[#allocation15 + $0xbc] sm:$0xf]
        %v3640 = vpack.c.bf16 %v3547, %v3545
        %v3641 = vpack.c.bf16 %v3563, %v3561
        %v3642 = vpack.c.bf16 %v3579, %v3577
        %v3643 = vpack.c.bf16 %v3551, %v3549
        %v3644 = vpack.c.bf16 %v3567, %v3565
        %v3645 = vpack.c.bf16 %v3583, %v3581
        %v3646 = vpack.c.bf16 %v3555, %v3553
        %v3647 = vpack.c.bf16 %v3571, %v3569
        %v3648 = vpack.c.bf16 %v3587, %v3585
        %v3649 = vpack.c.bf16 %v3559, %v3557
        %v3650 = vpack.c.bf16 %v3575, %v3573
        %v3651 = vpack.c.bf16 %v3591, %v3589
        %v3652 = vld [vmem:[%s3512] ss:$2 sm:$0xff]
        %s3653 = scalar_lea.vmem %s3512, 48 [#allocation3]
        %v3654 = vld [vmem:[%s3653] ss:$2 sm:$0xff]
        %s3655 = scalar_lea.vmem %s3512, 96 [#allocation3]
        %v3656 = vld [vmem:[%s3655] ss:$2 sm:$0xff]
        %s3657 = scalar_lea.vmem %s3512, 144 [#allocation3]
        %v3658 = vld [vmem:[%s3657] ss:$2 sm:$0xff]
        %s3659 = scalar_lea.vmem %s3512, 192 [#allocation3]
        %v3660 = vld [vmem:[%s3659] ss:$2 sm:$0xff]
        %s3661 = scalar_lea.vmem %s3512, 240 [#allocation3]
        %v3662 = vld [vmem:[%s3661] ss:$2 sm:$0xff]
        %s3663 = scalar_lea.vmem %s3512, 288 [#allocation3]
        %v3664 = vld [vmem:[%s3663] ss:$2 sm:$0xff]
        %s3665 = scalar_lea.vmem %s3512, 336 [#allocation3]
        %v3666 = vld [vmem:[%s3665] ss:$2 sm:$0xff]
        %s3667 = scalar_lea.vmem %s3512, 1 [#allocation3]
        %v3668 = vld [vmem:[%s3667] ss:$2 sm:$0xff]
        %s3669 = scalar_lea.vmem %s3512, 49 [#allocation3]
        %v3670 = vld [vmem:[%s3669] ss:$2 sm:$0xff]
        %s3671 = scalar_lea.vmem %s3512, 97 [#allocation3]
        %v3672 = vld [vmem:[%s3671] ss:$2 sm:$0xff]
        %s3673 = scalar_lea.vmem %s3512, 145 [#allocation3]
        %v3674 = vld [vmem:[%s3673] ss:$2 sm:$0xff]
        %s3675 = scalar_lea.vmem %s3512, 193 [#allocation3]
        %v3676 = vld [vmem:[%s3675] ss:$2 sm:$0xff]
        %s3677 = scalar_lea.vmem %s3512, 241 [#allocation3]
        %v3678 = vld [vmem:[%s3677] ss:$2 sm:$0xff]
        %s3679 = scalar_lea.vmem %s3512, 289 [#allocation3]
        %v3680 = vld [vmem:[%s3679] ss:$2 sm:$0xff]
        %s3681 = scalar_lea.vmem %s3512, 337 [#allocation3]
        %v3682 = vld [vmem:[%s3681] ss:$2 sm:$0xff]
        %s3683 = scalar_lea.vmem %s3512, 2 [#allocation3]
        %v3684 = vld [vmem:[%s3683] ss:$2 sm:$0xff]
        %s3685 = scalar_lea.vmem %s3512, 50 [#allocation3]
        %v3686 = vld [vmem:[%s3685] ss:$2 sm:$0xff]
        %s3687 = scalar_lea.vmem %s3512, 98 [#allocation3]
        %v3688 = vld [vmem:[%s3687] ss:$2 sm:$0xff]
        %s3689 = scalar_lea.vmem %s3512, 146 [#allocation3]
        %v3690 = vld [vmem:[%s3689] ss:$2 sm:$0xff]
        %s3691 = scalar_lea.vmem %s3512, 194 [#allocation3]
        %v3692 = vld [vmem:[%s3691] ss:$2 sm:$0xff]
        %s3693 = scalar_lea.vmem %s3512, 242 [#allocation3]
        %v3694 = vld [vmem:[%s3693] ss:$2 sm:$0xff]
        %s3695 = scalar_lea.vmem %s3512, 290 [#allocation3]
        %v3696 = vld [vmem:[%s3695] ss:$2 sm:$0xff]
        %s3697 = scalar_lea.vmem %s3512, 338 [#allocation3]
        %v3698 = vld [vmem:[%s3697] ss:$2 sm:$0xff]
        %s3699 = scalar_lea.vmem [#allocation15], 192
        %v3700 = vld [vmem:[%s3699] sm:$0xf]
        %v3701 = vld [vmem:[%s3699 + $0x4] sm:$0xf]
        %v3702 = vld [vmem:[%s3699 + $0x8] sm:$0xf]
        %v3703 = vld [vmem:[%s3699 + $0xc] sm:$0xf]
        %v3704 = vld [vmem:[%s3699 + $0x10] sm:$0xf]
        %v3705 = vld [vmem:[%s3699 + $0x14] sm:$0xf]
        %v3706 = vld [vmem:[%s3699 + $0x18] sm:$0xf]
        %v3707 = vld [vmem:[%s3699 + $0x1c] sm:$0xf]
        %v3708 = vld [vmem:[%s3699 + $0x20] sm:$0xf]
        %v3709 = vld [vmem:[%s3699 + $0x24] sm:$0xf]
        %v3710 = vld [vmem:[%s3699 + $0x28] sm:$0xf]
        %v3711 = vld [vmem:[%s3699 + $0x2c] sm:$0xf]
        %v3712 = vld [vmem:[%s3699 + $0x30] sm:$0xf]
        %v3713 = vld [vmem:[%s3699 + $0x34] sm:$0xf]
        %v3714 = vld [vmem:[%s3699 + $0x38] sm:$0xf]
        %v3715 = vld [vmem:[%s3699 + $0x3c] sm:$0xf]
        %v3716 = vld [vmem:[%s3699 + $0x40] sm:$0xf]
        %v3717 = vld [vmem:[%s3699 + $0x44] sm:$0xf]
        %v3718 = vld [vmem:[%s3699 + $0x48] sm:$0xf]
        %v3719 = vld [vmem:[%s3699 + $0x4c] sm:$0xf]
        %v3720 = vld [vmem:[%s3699 + $0x50] sm:$0xf]
        %v3721 = vld [vmem:[%s3699 + $0x54] sm:$0xf]
        %v3722 = vld [vmem:[%s3699 + $0x58] sm:$0xf]
        %v3723 = vld [vmem:[%s3699 + $0x5c] sm:$0xf]
        %v3724 = vld [vmem:[%s3699 + $0x60] sm:$0xf]
        %v3725 = vld [vmem:[%s3699 + $0x64] sm:$0xf]
        %v3726 = vld [vmem:[%s3699 + $0x68] sm:$0xf]
        %v3727 = vld [vmem:[%s3699 + $0x6c] sm:$0xf]
        %v3728 = vld [vmem:[%s3699 + $0x70] sm:$0xf]
        %v3729 = vld [vmem:[%s3699 + $0x74] sm:$0xf]
        %v3730 = vld [vmem:[%s3699 + $0x78] sm:$0xf]
        %v3731 = vld [vmem:[%s3699 + $0x7c] sm:$0xf]
        %v3732 = vld [vmem:[%s3699 + $0x80] sm:$0xf]
        %v3733 = vld [vmem:[%s3699 + $0x84] sm:$0xf]
        %v3734 = vld [vmem:[%s3699 + $0x88] sm:$0xf]
        %v3735 = vld [vmem:[%s3699 + $0x8c] sm:$0xf]
        %v3736 = vld [vmem:[%s3699 + $0x90] sm:$0xf]
        %v3737 = vld [vmem:[%s3699 + $0x94] sm:$0xf]
        %v3738 = vld [vmem:[%s3699 + $0x98] sm:$0xf]
        %v3739 = vld [vmem:[%s3699 + $0x9c] sm:$0xf]
        %v3740 = vld [vmem:[%s3699 + $0xa0] sm:$0xf]
        %v3741 = vld [vmem:[%s3699 + $0xa4] sm:$0xf]
        %v3742 = vld [vmem:[%s3699 + $0xa8] sm:$0xf]
        %v3743 = vld [vmem:[%s3699 + $0xac] sm:$0xf]
        %v3744 = vld [vmem:[%s3699 + $0xb0] sm:$0xf]
        %v3745 = vld [vmem:[%s3699 + $0xb4] sm:$0xf]
        %v3746 = vld [vmem:[%s3699 + $0xb8] sm:$0xf]
        %v3747 = vld [vmem:[%s3699 + $0xbc] sm:$0xf]
        %v3748 = vpack.c.bf16 %v3654, %v3652
        %v3749 = vpack.c.bf16 %v3670, %v3668
        %v3750 = vpack.c.bf16 %v3686, %v3684
        %v3751 = vpack.c.bf16 %v3658, %v3656
        %v3752 = vpack.c.bf16 %v3674, %v3672
        %v3753 = vpack.c.bf16 %v3690, %v3688
        %v3754 = vpack.c.bf16 %v3662, %v3660
        %v3755 = vpack.c.bf16 %v3678, %v3676
        %v3756 = vpack.c.bf16 %v3694, %v3692
        %v3757 = vpack.c.bf16 %v3666, %v3664
        %v3758 = vpack.c.bf16 %v3682, %v3680
        %v3759 = vpack.c.bf16 %v3698, %v3696
        %v3808 = vunpack.c.l.b16 %v3700
        %v3809 = vunpack.c.l.b16 %v3701
        %v3810 = vunpack.c.l.b16 %v3702
        %v3811 = vunpack.c.l.b16 %v3703
        %v3812 = vunpack.c.l.b16 %v3704
        %v3813 = vunpack.c.l.b16 %v3705
        %v3814 = vunpack.c.l.b16 %v3706
        %v3815 = vunpack.c.l.b16 %v3707
        %v3816 = vunpack.c.l.b16 %v3708
        %v3817 = vunpack.c.l.b16 %v3709
        %v3818 = vunpack.c.l.b16 %v3710
        %v3819 = vunpack.c.l.b16 %v3711
        %v3820 = vunpack.c.l.b16 %v3712
        %v3821 = vunpack.c.l.b16 %v3713
        %v3822 = vunpack.c.l.b16 %v3714
        %v3823 = vunpack.c.l.b16 %v3715
        %v3824 = vunpack.c.l.b16 %v3716
        %v3825 = vunpack.c.l.b16 %v3717
        %v3826 = vunpack.c.l.b16 %v3718
        %v3827 = vunpack.c.l.b16 %v3719
        %v3828 = vunpack.c.l.b16 %v3720
        %v3829 = vunpack.c.l.b16 %v3721
        %v3830 = vunpack.c.l.b16 %v3722
        %v3831 = vunpack.c.l.b16 %v3723
        %v3832 = vunpack.c.l.b16 %v3724
        %v3833 = vunpack.c.l.b16 %v3725
        %v3834 = vunpack.c.l.b16 %v3726
        %v3835 = vunpack.c.l.b16 %v3727
        %v3836 = vunpack.c.l.b16 %v3728
        %v3837 = vunpack.c.l.b16 %v3729
        %v3838 = vunpack.c.l.b16 %v3730
        %v3839 = vunpack.c.l.b16 %v3731
        %v3840 = vunpack.c.l.b16 %v3732
        %v3841 = vunpack.c.l.b16 %v3733
        %v3842 = vunpack.c.l.b16 %v3734
        %v3843 = vunpack.c.l.b16 %v3735
        %v3844 = vunpack.c.l.b16 %v3736
        %v3845 = vunpack.c.l.b16 %v3737
        %v3846 = vunpack.c.l.b16 %v3738
        %v3847 = vunpack.c.l.b16 %v3739
        %v3848 = vunpack.c.l.b16 %v3740
        %v3849 = vunpack.c.l.b16 %v3741
        %v3850 = vunpack.c.l.b16 %v3742
        %v3851 = vunpack.c.l.b16 %v3743
        %v3852 = vunpack.c.l.b16 %v3744
        %v3853 = vunpack.c.l.b16 %v3745
        %v3854 = vunpack.c.l.b16 %v3746
        %v3855 = vunpack.c.l.b16 %v3747
        %v3856 = vpack.c.b16 %v3809, %v3808
        %v3857 = vpack.c.b16 %v3811, %v3810
        %v3858 = vpack.c.b16 %v3813, %v3812
        %v3859 = vpack.c.b16 %v3815, %v3814
        %v3860 = vpack.c.b16 %v3817, %v3816
        %v3861 = vpack.c.b16 %v3819, %v3818
        %v3862 = vpack.c.b16 %v3821, %v3820
        %v3863 = vpack.c.b16 %v3823, %v3822
        %v3864 = vpack.c.b16 %v3825, %v3824
        %v3865 = vpack.c.b16 %v3827, %v3826
        %v3866 = vpack.c.b16 %v3829, %v3828
        %v3867 = vpack.c.b16 %v3831, %v3830
        %v3868 = vpack.c.b16 %v3833, %v3832
        %v3869 = vpack.c.b16 %v3835, %v3834
        %v3870 = vpack.c.b16 %v3837, %v3836
        %v3871 = vpack.c.b16 %v3839, %v3838
        %v3872 = vpack.c.b16 %v3841, %v3840
        %v3873 = vpack.c.b16 %v3843, %v3842
        %v3874 = vpack.c.b16 %v3845, %v3844
        %v3875 = vpack.c.b16 %v3847, %v3846
        %v3876 = vpack.c.b16 %v3849, %v3848
        %v3877 = vpack.c.b16 %v3851, %v3850
        %v3878 = vpack.c.b16 %v3853, %v3852
        %v3879 = vpack.c.b16 %v3855, %v3854
        %3904 = vmatprep.subr.bf16.mxu0 0
        %3905 = vmatpush1.bf16.msra.mxu0 %v3856
        %3906 = vmatprep.subr.bf16.mxu0 0
        %3907 = vmatpush1.bf16.msra.mxu0 %v3857
        %3908 = vmatprep.subr.bf16.mxu0 0
        %3909 = vmatpush1.bf16.msra.mxu0 %v3858
        %3910 = vmatprep.subr.bf16.mxu0 0
        %3911 = vmatpush1.bf16.msra.mxu0 %v3859
        %3912 = vmatprep.subr.bf16.mxu0 0
        %3913 = vmatpush1.bf16.msra.mxu0 %v3860
        %3914 = vmatprep.subr.bf16.mxu0 0
        %3915 = vmatpush1.bf16.msra.mxu0 %v3861
        %3916 = vmatprep.subr.bf16.mxu0 0
        %3917 = vmatpush1.bf16.msra.mxu0 %v3862
        %3918 = vmatprep.subr.bf16.mxu0 0
        %3919 = vmatpush1.bf16.msra.mxu0 %v3863
        %3920 = vmatprep.subr.bf16.mxu0 0
        %3921 = vmatpush1.bf16.msra.mxu0 %v3864
        %3922 = vmatprep.subr.bf16.mxu0 0
        %3923 = vmatpush1.bf16.msra.mxu0 %v3865
        %3924 = vmatprep.subr.bf16.mxu0 0
        %3925 = vmatpush1.bf16.msra.mxu0 %v3866
        %3926 = vmatprep.subr.bf16.mxu0 0
        %3927 = vmatpush1.bf16.msra.mxu0 %v3867
        %3928 = vmatprep.subr.bf16.mxu0 0
        %3929 = vmatpush1.bf16.msra.mxu0 %v3868
        %3930 = vmatprep.subr.bf16.mxu0 0
        %3931 = vmatpush1.bf16.msra.mxu0 %v3869
        %3932 = vmatprep.subr.bf16.mxu0 0
        %3933 = vmatpush1.bf16.msra.mxu0 %v3870
        %3934 = vmatprep.subr.bf16.mxu0 0
        %3935 = vmatpush1.bf16.msra.mxu0 %v3871
        %3936 = vmatprep.mubr.bf16.mxu0 %v3749
        %3937 = vmatmul.mubr.bf16.gmra.mrb[0].mxu0 %v3748
        %v3938 = vpop.f32.mrb[0].mxu0
        %v3939 = vadd.f32 0.0, %v3938
        %v3940 = vpop.f32.mrb[0].mxu0
        %v3941 = vpop.f32.mrb[0].mxu0
        %v3942 = vadd.f32 0.0, %v3941
        %v3943 = vpop.f32.mrb[0].mxu0
        %3944 = vmatprep.mubr.bf16.mxu0 %v3752
        %3945 = vmatmul.mubr.bf16.gmra.mrb[0].mxu0 %v3751
        %v3946 = vpop.f32.mrb[0].mxu0
        %v3947 = vadd.f32 0.0, %v3946
        %v3948 = vpop.f32.mrb[0].mxu0
        %v3949 = vpop.f32.mrb[0].mxu0
        %v3950 = vadd.f32 0.0, %v3949
        %v3951 = vpop.f32.mrb[0].mxu0
        %3952 = vmatprep.mubr.bf16.mxu0 %v3755
        %3953 = vmatmul.mubr.bf16.gmra.mrb[0].mxu0 %v3754
        %v3954 = vpop.f32.mrb[0].mxu0
        %v3955 = vadd.f32 0.0, %v3954
        %v3956 = vpop.f32.mrb[0].mxu0
        %v3957 = vpop.f32.mrb[0].mxu0
        %v3958 = vadd.f32 0.0, %v3957
        %v3959 = vpop.f32.mrb[0].mxu0
        %3960 = vmatprep.mubr.bf16.mxu0 %v3758
        %3961 = vmatmul.mubr.bf16.gmra.mrb[0].mxu0 %v3757
        %v3962 = vpop.f32.mrb[0].mxu0
        %v3963 = vadd.f32 0.0, %v3962
        %v3964 = vpop.f32.mrb[0].mxu0
        %v3965 = vpop.f32.mrb[0].mxu0
        %v3966 = vadd.f32 0.0, %v3965
        %v3967 = vpop.f32.mrb[0].mxu0
        %3968 = vdwg.mxu0
        %3969 = vmatprep.subr.bf16.mxu0 0
        %3970 = vmatpush1.bf16.msra.mxu0 %v3872
        %3971 = vmatprep.subr.bf16.mxu0 0
        %3972 = vmatpush1.bf16.msra.mxu0 %v3873
        %3973 = vmatprep.subr.bf16.mxu0 0
        %3974 = vmatpush1.bf16.msra.mxu0 %v3874
        %3975 = vmatprep.subr.bf16.mxu0 0
        %3976 = vmatpush1.bf16.msra.mxu0 %v3875
        %3977 = vmatprep.subr.bf16.mxu0 0
        %3978 = vmatpush1.bf16.msra.mxu0 %v3876
        %3979 = vmatprep.subr.bf16.mxu0 0
        %3980 = vmatpush1.bf16.msra.mxu0 %v3877
        %3981 = vmatprep.subr.bf16.mxu0 0
        %3982 = vmatpush1.bf16.msra.mxu0 %v3878
        %3983 = vmatprep.subr.bf16.mxu0 0
        %3984 = vmatpush1.bf16.msra.mxu0 %v3879
        %3985 = vmatprep.subr.bf16.mxu0 0
        %3986 = vmatpush1.bf16.msra.mxu0 0
        %3987 = vmatprep.subr.bf16.mxu0 0
        %3988 = vmatpush1.bf16.msra.mxu0 0
        %3989 = vmatprep.subr.bf16.mxu0 0
        %3990 = vmatpush1.bf16.msra.mxu0 0
        %3991 = vmatprep.subr.bf16.mxu0 0
        %3992 = vmatpush1.bf16.msra.mxu0 0
        %3993 = vmatprep.subr.bf16.mxu0 0
        %3994 = vmatpush1.bf16.msra.mxu0 0
        %3995 = vmatprep.subr.bf16.mxu0 0
        %3996 = vmatpush1.bf16.msra.mxu0 0
        %3997 = vmatprep.subr.bf16.mxu0 0
        %3998 = vmatpush1.bf16.msra.mxu0 0
        %3999 = vmatprep.subr.bf16.mxu0 0
        %4000 = vmatpush1.bf16.msra.mxu0 0
        %4001 = vmatprep.mubr.bf16.mxu0 0
        %4002 = vmatmul.mubr.bf16.gmra.mrb[0].mxu0 %v3750
        %v4003 = vpop.f32.mrb[0].mxu0
        %v4004 = vadd.f32 %v3939, %v4003
        %v4005 = vpop.f32.mrb[0].mxu0
        %v4006 = vpop.f32.mrb[0].mxu0
        %v4007 = vadd.f32 %v3942, %v4006
        %v4008 = vpop.f32.mrb[0].mxu0
        %4009 = vmatprep.mubr.bf16.mxu0 0
        %4010 = vmatmul.mubr.bf16.gmra.mrb[0].mxu0 %v3753
        %v4011 = vpop.f32.mrb[0].mxu0
        %v4012 = vadd.f32 %v3947, %v4011
        %v4013 = vpop.f32.mrb[0].mxu0
        %v4014 = vpop.f32.mrb[0].mxu0
        %v4015 = vadd.f32 %v3950, %v4014
        %v4016 = vpop.f32.mrb[0].mxu0
        %4017 = vmatprep.mubr.bf16.mxu0 0
        %4018 = vmatmul.mubr.bf16.gmra.mrb[0].mxu0 %v3756
        %v4019 = vpop.f32.mrb[0].mxu0
        %v4020 = vadd.f32 %v3955, %v4019
        %v4021 = vpop.f32.mrb[0].mxu0
        %v4022 = vpop.f32.mrb[0].mxu0
        %v4023 = vadd.f32 %v3958, %v4022
        %v4024 = vpop.f32.mrb[0].mxu0
        %4025 = vmatprep.mubr.bf16.mxu0 0
        %4026 = vmatmul.mubr.bf16.gmra.mrb[0].mxu0 %v3759
        %v4027 = vpop.f32.mrb[0].mxu0
        %v4028 = vadd.f32 %v3963, %v4027
        %v4029 = vpop.f32.mrb[0].mxu0
        %v4030 = vpop.f32.mrb[0].mxu0
        %v4031 = vadd.f32 %v3966, %v4030
        %v4032 = vpop.f32.mrb[0].mxu0
        %4033 = vdwg.mxu0
        %v4082 = vunpack.c.l.b16 %v3592
        %v4083 = vunpack.c.l.b16 %v3593
        %v4084 = vunpack.c.l.b16 %v3594
        %v4085 = vunpack.c.l.b16 %v3595
        %v4086 = vunpack.c.l.b16 %v3596
        %v4087 = vunpack.c.l.b16 %v3597
        %v4088 = vunpack.c.l.b16 %v3598
        %v4089 = vunpack.c.l.b16 %v3599
        %v4090 = vunpack.c.l.b16 %v3600
        %v4091 = vunpack.c.l.b16 %v3601
        %v4092 = vunpack.c.l.b16 %v3602
        %v4093 = vunpack.c.l.b16 %v3603
        %v4094 = vunpack.c.l.b16 %v3604
        %v4095 = vunpack.c.l.b16 %v3605
        %v4096 = vunpack.c.l.b16 %v3606
        %v4097 = vunpack.c.l.b16 %v3607
        %v4098 = vunpack.c.l.b16 %v3608
        %v4099 = vunpack.c.l.b16 %v3609
        %v4100 = vunpack.c.l.b16 %v3610
        %v4101 = vunpack.c.l.b16 %v3611
        %v4102 = vunpack.c.l.b16 %v3612
        %v4103 = vunpack.c.l.b16 %v3613
        %v4104 = vunpack.c.l.b16 %v3614
        %v4105 = vunpack.c.l.b16 %v3615
        %v4106 = vunpack.c.l.b16 %v3616
        %v4107 = vunpack.c.l.b16 %v3617
        %v4108 = vunpack.c.l.b16 %v3618
        %v4109 = vunpack.c.l.b16 %v3619
        %v4110 = vunpack.c.l.b16 %v3620
        %v4111 = vunpack.c.l.b16 %v3621
        %v4112 = vunpack.c.l.b16 %v3622
        %v4113 = vunpack.c.l.b16 %v3623
        %v4114 = vunpack.c.l.b16 %v3624
        %v4115 = vunpack.c.l.b16 %v3625
        %v4116 = vunpack.c.l.b16 %v3626
        %v4117 = vunpack.c.l.b16 %v3627
        %v4118 = vunpack.c.l.b16 %v3628
        %v4119 = vunpack.c.l.b16 %v3629
        %v4120 = vunpack.c.l.b16 %v3630
        %v4121 = vunpack.c.l.b16 %v3631
        %v4122 = vunpack.c.l.b16 %v3632
        %v4123 = vunpack.c.l.b16 %v3633
        %v4124 = vunpack.c.l.b16 %v3634
        %v4125 = vunpack.c.l.b16 %v3635
        %v4126 = vunpack.c.l.b16 %v3636
        %v4127 = vunpack.c.l.b16 %v3637
        %v4128 = vunpack.c.l.b16 %v3638
        %v4129 = vunpack.c.l.b16 %v3639
        %v4130 = vpack.c.b16 %v4083, %v4082
        %v4131 = vpack.c.b16 %v4085, %v4084
        %v4132 = vpack.c.b16 %v4087, %v4086
        %v4133 = vpack.c.b16 %v4089, %v4088
        %v4134 = vpack.c.b16 %v4091, %v4090
        %v4135 = vpack.c.b16 %v4093, %v4092
        %v4136 = vpack.c.b16 %v4095, %v4094
        %v4137 = vpack.c.b16 %v4097, %v4096
        %v4138 = vpack.c.b16 %v4099, %v4098
        %v4139 = vpack.c.b16 %v4101, %v4100
        %v4140 = vpack.c.b16 %v4103, %v4102
        %v4141 = vpack.c.b16 %v4105, %v4104
        %v4142 = vpack.c.b16 %v4107, %v4106
        %v4143 = vpack.c.b16 %v4109, %v4108
        %v4144 = vpack.c.b16 %v4111, %v4110
        %v4145 = vpack.c.b16 %v4113, %v4112
        %v4146 = vpack.c.b16 %v4115, %v4114
        %v4147 = vpack.c.b16 %v4117, %v4116
        %v4148 = vpack.c.b16 %v4119, %v4118
        %v4149 = vpack.c.b16 %v4121, %v4120
        %v4150 = vpack.c.b16 %v4123, %v4122
        %v4151 = vpack.c.b16 %v4125, %v4124
        %v4152 = vpack.c.b16 %v4127, %v4126
        %v4153 = vpack.c.b16 %v4129, %v4128
        %4178 = vmatprep.subr.bf16.mxu0 0
        %4179 = vmatpush1.bf16.msra.mxu0 %v4130
        %4180 = vmatprep.subr.bf16.mxu0 0
        %4181 = vmatpush1.bf16.msra.mxu0 %v4131
        %4182 = vmatprep.subr.bf16.mxu0 0
        %4183 = vmatpush1.bf16.msra.mxu0 %v4132
        %4184 = vmatprep.subr.bf16.mxu0 0
        %4185 = vmatpush1.bf16.msra.mxu0 %v4133
        %4186 = vmatprep.subr.bf16.mxu0 0
        %4187 = vmatpush1.bf16.msra.mxu0 %v4134
        %4188 = vmatprep.subr.bf16.mxu0 0
        %4189 = vmatpush1.bf16.msra.mxu0 %v4135
        %4190 = vmatprep.subr.bf16.mxu0 0
        %4191 = vmatpush1.bf16.msra.mxu0 %v4136
        %4192 = vmatprep.subr.bf16.mxu0 0
        %4193 = vmatpush1.bf16.msra.mxu0 %v4137
        %4194 = vmatprep.subr.bf16.mxu0 0
        %4195 = vmatpush1.bf16.msra.mxu0 %v4138
        %4196 = vmatprep.subr.bf16.mxu0 0
        %4197 = vmatpush1.bf16.msra.mxu0 %v4139
        %4198 = vmatprep.subr.bf16.mxu0 0
        %4199 = vmatpush1.bf16.msra.mxu0 %v4140
        %4200 = vmatprep.subr.bf16.mxu0 0
        %4201 = vmatpush1.bf16.msra.mxu0 %v4141
        %4202 = vmatprep.subr.bf16.mxu0 0
        %4203 = vmatpush1.bf16.msra.mxu0 %v4142
        %4204 = vmatprep.subr.bf16.mxu0 0
        %4205 = vmatpush1.bf16.msra.mxu0 %v4143
        %4206 = vmatprep.subr.bf16.mxu0 0
        %4207 = vmatpush1.bf16.msra.mxu0 %v4144
        %4208 = vmatprep.subr.bf16.mxu0 0
        %4209 = vmatpush1.bf16.msra.mxu0 %v4145
        %4210 = vmatprep.mubr.bf16.mxu0 %v3641
        %4211 = vmatmul.mubr.bf16.gmra.mrb[0].mxu0 %v3640
        %v4212 = vpop.f32.mrb[0].mxu0
        %v4213 = vadd.f32 %v4004, %v4212
        %v4214 = vpop.f32.mrb[0].mxu0
        %v4215 = vpop.f32.mrb[0].mxu0
        %v4216 = vadd.f32 %v4007, %v4215
        %v4217 = vpop.f32.mrb[0].mxu0
        %4218 = vmatprep.mubr.bf16.mxu0 %v3644
        %4219 = vmatmul.mubr.bf16.gmra.mrb[0].mxu0 %v3643
        %v4220 = vpop.f32.mrb[0].mxu0
        %v4221 = vadd.f32 %v4012, %v4220
        %v4222 = vpop.f32.mrb[0].mxu0
        %v4223 = vpop.f32.mrb[0].mxu0
        %v4224 = vadd.f32 %v4015, %v4223
        %v4225 = vpop.f32.mrb[0].mxu0
        %4226 = vmatprep.mubr.bf16.mxu0 %v3647
        %4227 = vmatmul.mubr.bf16.gmra.mrb[0].mxu0 %v3646
        %v4228 = vpop.f32.mrb[0].mxu0
        %v4229 = vadd.f32 %v4020, %v4228
        %v4230 = vpop.f32.mrb[0].mxu0
        %v4231 = vpop.f32.mrb[0].mxu0
        %v4232 = vadd.f32 %v4023, %v4231
        %v4233 = vpop.f32.mrb[0].mxu0
        %4234 = vmatprep.mubr.bf16.mxu0 %v3650
        %4235 = vmatmul.mubr.bf16.gmra.mrb[0].mxu0 %v3649
        %v4236 = vpop.f32.mrb[0].mxu0
        %v4237 = vadd.f32 %v4028, %v4236
        %v4238 = vpop.f32.mrb[0].mxu0
        %v4239 = vpop.f32.mrb[0].mxu0
        %v4240 = vadd.f32 %v4031, %v4239
        %v4241 = vpop.f32.mrb[0].mxu0
        %4242 = vdwg.mxu0
        %4243 = vmatprep.subr.bf16.mxu0 0
        %4244 = vmatpush1.bf16.msra.mxu0 %v4146
        %4245 = vmatprep.subr.bf16.mxu0 0
        %4246 = vmatpush1.bf16.msra.mxu0 %v4147
        %4247 = vmatprep.subr.bf16.mxu0 0
        %4248 = vmatpush1.bf16.msra.mxu0 %v4148
        %4249 = vmatprep.subr.bf16.mxu0 0
        %4250 = vmatpush1.bf16.msra.mxu0 %v4149
        %4251 = vmatprep.subr.bf16.mxu0 0
        %4252 = vmatpush1.bf16.msra.mxu0 %v4150
        %4253 = vmatprep.subr.bf16.mxu0 0
        %4254 = vmatpush1.bf16.msra.mxu0 %v4151
        %4255 = vmatprep.subr.bf16.mxu0 0
        %4256 = vmatpush1.bf16.msra.mxu0 %v4152
        %4257 = vmatprep.subr.bf16.mxu0 0
        %4258 = vmatpush1.bf16.msra.mxu0 %v4153
        %4259 = vmatprep.subr.bf16.mxu0 0
        %4260 = vmatpush1.bf16.msra.mxu0 0
        %4261 = vmatprep.subr.bf16.mxu0 0
        %4262 = vmatpush1.bf16.msra.mxu0 0
        %4263 = vmatprep.subr.bf16.mxu0 0
        %4264 = vmatpush1.bf16.msra.mxu0 0
        %4265 = vmatprep.subr.bf16.mxu0 0
        %4266 = vmatpush1.bf16.msra.mxu0 0
        %4267 = vmatprep.subr.bf16.mxu0 0
        %4268 = vmatpush1.bf16.msra.mxu0 0
        %4269 = vmatprep.subr.bf16.mxu0 0
        %4270 = vmatpush1.bf16.msra.mxu0 0
        %4271 = vmatprep.subr.bf16.mxu0 0
        %4272 = vmatpush1.bf16.msra.mxu0 0
        %4273 = vmatprep.subr.bf16.mxu0 0
        %4274 = vmatpush1.bf16.msra.mxu0 0
        %4275 = vmatprep.mubr.bf16.mxu0 0
        %4276 = vmatmul.mubr.bf16.gmra.mrb[0].mxu0 %v3642
        %v4277 = vpop.f32.mrb[0].mxu0
        %v4278 = vadd.f32 %v4213, %v4277
        %v4279 = vpop.f32.mrb[0].mxu0
        %v4280 = vpop.f32.mrb[0].mxu0
        %v4281 = vadd.f32 %v4216, %v4280
        %v4282 = vpop.f32.mrb[0].mxu0
        %4283 = vmatprep.mubr.bf16.mxu0 0
        %4284 = vmatmul.mubr.bf16.gmra.mrb[0].mxu0 %v3645
        %v4285 = vpop.f32.mrb[0].mxu0
        %v4286 = vadd.f32 %v4221, %v4285
        %v4287 = vpop.f32.mrb[0].mxu0
        %v4288 = vpop.f32.mrb[0].mxu0
        %v4289 = vadd.f32 %v4224, %v4288
        %v4290 = vpop.f32.mrb[0].mxu0
        %4291 = vmatprep.mubr.bf16.mxu0 0
        %4292 = vmatmul.mubr.bf16.gmra.mrb[0].mxu0 %v3648
        %v4293 = vpop.f32.mrb[0].mxu0
        %v4294 = vadd.f32 %v4229, %v4293
        %v4295 = vpop.f32.mrb[0].mxu0
        %v4296 = vpop.f32.mrb[0].mxu0
        %v4297 = vadd.f32 %v4232, %v4296
        %v4298 = vpop.f32.mrb[0].mxu0
        %4299 = vmatprep.mubr.bf16.mxu0 0
        %4300 = vmatmul.mubr.bf16.gmra.mrb[0].mxu0 %v3651
        %v4301 = vpop.f32.mrb[0].mxu0
        %v4302 = vadd.f32 %v4237, %v4301
        %v4303 = vpop.f32.mrb[0].mxu0
        %v4304 = vpop.f32.mrb[0].mxu0
        %v4305 = vadd.f32 %v4240, %v4304
        %v4306 = vpop.f32.mrb[0].mxu0
        %4307 = vdwg.mxu0
        %s4308 = scalar_lea.vmem [#allocation3], 48
        %v4309 = vld [vmem:[%s4308] ss:$2 sm:$0xff]
        %s4310 = scalar_lea.vmem %s4308, 48 [#allocation3]
        %v4311 = vld [vmem:[%s4310] ss:$2 sm:$0xff]
        %s4312 = scalar_lea.vmem %s4308, 96 [#allocation3]
        %v4313 = vld [vmem:[%s4312] ss:$2 sm:$0xff]
        %s4314 = scalar_lea.vmem %s4308, 144 [#allocation3]
        %v4315 = vld [vmem:[%s4314] ss:$2 sm:$0xff]
        %s4316 = scalar_lea.vmem %s4308, 192 [#allocation3]
        %v4317 = vld [vmem:[%s4316] ss:$2 sm:$0xff]
        %s4318 = scalar_lea.vmem %s4308, 240 [#allocation3]
        %v4319 = vld [vmem:[%s4318] ss:$2 sm:$0xff]
        %s4320 = scalar_lea.vmem %s4308, 288 [#allocation3]
        %v4321 = vld [vmem:[%s4320] ss:$2 sm:$0xff]
        %s4322 = scalar_lea.vmem %s4308, 336 [#allocation3]
        %v4323 = vld [vmem:[%s4322] ss:$2 sm:$0xff]
        %s4324 = scalar_lea.vmem %s4308, 1 [#allocation3]
        %v4325 = vld [vmem:[%s4324] ss:$2 sm:$0xff]
        %s4326 = scalar_lea.vmem %s4308, 49 [#allocation3]
        %v4327 = vld [vmem:[%s4326] ss:$2 sm:$0xff]
        %s4328 = scalar_lea.vmem %s4308, 97 [#allocation3]
        %v4329 = vld [vmem:[%s4328] ss:$2 sm:$0xff]
        %s4330 = scalar_lea.vmem %s4308, 145 [#allocation3]
        %v4331 = vld [vmem:[%s4330] ss:$2 sm:$0xff]
        %s4332 = scalar_lea.vmem %s4308, 193 [#allocation3]
        %v4333 = vld [vmem:[%s4332] ss:$2 sm:$0xff]
        %s4334 = scalar_lea.vmem %s4308, 241 [#allocation3]
        %v4335 = vld [vmem:[%s4334] ss:$2 sm:$0xff]
        %s4336 = scalar_lea.vmem %s4308, 289 [#allocation3]
        %v4337 = vld [vmem:[%s4336] ss:$2 sm:$0xff]
        %s4338 = scalar_lea.vmem %s4308, 337 [#allocation3]
        %v4339 = vld [vmem:[%s4338] ss:$2 sm:$0xff]
        %s4340 = scalar_lea.vmem %s4308, 2 [#allocation3]
        %v4341 = vld [vmem:[%s4340] ss:$2 sm:$0xff]
        %s4342 = scalar_lea.vmem %s4308, 50 [#allocation3]
        %v4343 = vld [vmem:[%s4342] ss:$2 sm:$0xff]
        %s4344 = scalar_lea.vmem %s4308, 98 [#allocation3]
        %v4345 = vld [vmem:[%s4344] ss:$2 sm:$0xff]
        %s4346 = scalar_lea.vmem %s4308, 146 [#allocation3]
        %v4347 = vld [vmem:[%s4346] ss:$2 sm:$0xff]
        %s4348 = scalar_lea.vmem %s4308, 194 [#allocation3]
        %v4349 = vld [vmem:[%s4348] ss:$2 sm:$0xff]
        %s4350 = scalar_lea.vmem %s4308, 242 [#allocation3]
        %v4351 = vld [vmem:[%s4350] ss:$2 sm:$0xff]
        %s4352 = scalar_lea.vmem %s4308, 290 [#allocation3]
        %v4353 = vld [vmem:[%s4352] ss:$2 sm:$0xff]
        %s4354 = scalar_lea.vmem %s4308, 338 [#allocation3]
        %v4355 = vld [vmem:[%s4354] ss:$2 sm:$0xff]
        %s4356 = scalar_lea.vmem [#allocation15], 384
        %v4357 = vld [vmem:[%s4356] sm:$0xf]
        %v4358 = vld [vmem:[%s4356 + $0x4] sm:$0xf]
        %v4359 = vld [vmem:[%s4356 + $0x8] sm:$0xf]
        %v4360 = vld [vmem:[%s4356 + $0xc] sm:$0xf]
        %v4361 = vld [vmem:[%s4356 + $0x10] sm:$0xf]
        %v4362 = vld [vmem:[%s4356 + $0x14] sm:$0xf]
        %v4363 = vld [vmem:[%s4356 + $0x18] sm:$0xf]
        %v4364 = vld [vmem:[%s4356 + $0x1c] sm:$0xf]
        %v4365 = vld [vmem:[%s4356 + $0x20] sm:$0xf]
        %v4366 = vld [vmem:[%s4356 + $0x24] sm:$0xf]
        %v4367 = vld [vmem:[%s4356 + $0x28] sm:$0xf]
        %v4368 = vld [vmem:[%s4356 + $0x2c] sm:$0xf]
        %v4369 = vld [vmem:[%s4356 + $0x30] sm:$0xf]
        %v4370 = vld [vmem:[%s4356 + $0x34] sm:$0xf]
        %v4371 = vld [vmem:[%s4356 + $0x38] sm:$0xf]
        %v4372 = vld [vmem:[%s4356 + $0x3c] sm:$0xf]
        %v4373 = vld [vmem:[%s4356 + $0x40] sm:$0xf]
        %v4374 = vld [vmem:[%s4356 + $0x44] sm:$0xf]
        %v4375 = vld [vmem:[%s4356 + $0x48] sm:$0xf]
        %v4376 = vld [vmem:[%s4356 + $0x4c] sm:$0xf]
        %v4377 = vld [vmem:[%s4356 + $0x50] sm:$0xf]
        %v4378 = vld [vmem:[%s4356 + $0x54] sm:$0xf]
        %v4379 = vld [vmem:[%s4356 + $0x58] sm:$0xf]
        %v4380 = vld [vmem:[%s4356 + $0x5c] sm:$0xf]
        %v4381 = vld [vmem:[%s4356 + $0x60] sm:$0xf]
        %v4382 = vld [vmem:[%s4356 + $0x64] sm:$0xf]
        %v4383 = vld [vmem:[%s4356 + $0x68] sm:$0xf]
        %v4384 = vld [vmem:[%s4356 + $0x6c] sm:$0xf]
        %v4385 = vld [vmem:[%s4356 + $0x70] sm:$0xf]
        %v4386 = vld [vmem:[%s4356 + $0x74] sm:$0xf]
        %v4387 = vld [vmem:[%s4356 + $0x78] sm:$0xf]
        %v4388 = vld [vmem:[%s4356 + $0x7c] sm:$0xf]
        %v4389 = vld [vmem:[%s4356 + $0x80] sm:$0xf]
        %v4390 = vld [vmem:[%s4356 + $0x84] sm:$0xf]
        %v4391 = vld [vmem:[%s4356 + $0x88] sm:$0xf]
        %v4392 = vld [vmem:[%s4356 + $0x8c] sm:$0xf]
        %v4393 = vld [vmem:[%s4356 + $0x90] sm:$0xf]
        %v4394 = vld [vmem:[%s4356 + $0x94] sm:$0xf]
        %v4395 = vld [vmem:[%s4356 + $0x98] sm:$0xf]
        %v4396 = vld [vmem:[%s4356 + $0x9c] sm:$0xf]
        %v4397 = vld [vmem:[%s4356 + $0xa0] sm:$0xf]
        %v4398 = vld [vmem:[%s4356 + $0xa4] sm:$0xf]
        %v4399 = vld [vmem:[%s4356 + $0xa8] sm:$0xf]
        %v4400 = vld [vmem:[%s4356 + $0xac] sm:$0xf]
        %v4401 = vld [vmem:[%s4356 + $0xb0] sm:$0xf]
        %v4402 = vld [vmem:[%s4356 + $0xb4] sm:$0xf]
        %v4403 = vld [vmem:[%s4356 + $0xb8] sm:$0xf]
        %v4404 = vld [vmem:[%s4356 + $0xbc] sm:$0xf]
        %v4405 = vpack.c.bf16 %v4311, %v4309
        %v4406 = vpack.c.bf16 %v4327, %v4325
        %v4407 = vpack.c.bf16 %v4343, %v4341
        %v4408 = vpack.c.bf16 %v4315, %v4313
        %v4409 = vpack.c.bf16 %v4331, %v4329
        %v4410 = vpack.c.bf16 %v4347, %v4345
        %v4411 = vpack.c.bf16 %v4319, %v4317
        %v4412 = vpack.c.bf16 %v4335, %v4333
        %v4413 = vpack.c.bf16 %v4351, %v4349
        %v4414 = vpack.c.bf16 %v4323, %v4321
        %v4415 = vpack.c.bf16 %v4339, %v4337
        %v4416 = vpack.c.bf16 %v4355, %v4353
        %v4465 = vunpack.c.l.b16 %v4357
        %v4466 = vunpack.c.l.b16 %v4358
        %v4467 = vunpack.c.l.b16 %v4359
        %v4468 = vunpack.c.l.b16 %v4360
        %v4469 = vunpack.c.l.b16 %v4361
        %v4470 = vunpack.c.l.b16 %v4362
        %v4471 = vunpack.c.l.b16 %v4363
        %v4472 = vunpack.c.l.b16 %v4364
        %v4473 = vunpack.c.l.b16 %v4365
        %v4474 = vunpack.c.l.b16 %v4366
        %v4475 = vunpack.c.l.b16 %v4367
        %v4476 = vunpack.c.l.b16 %v4368
        %v4477 = vunpack.c.l.b16 %v4369
        %v4478 = vunpack.c.l.b16 %v4370
        %v4479 = vunpack.c.l.b16 %v4371
        %v4480 = vunpack.c.l.b16 %v4372
        %v4481 = vunpack.c.l.b16 %v4373
        %v4482 = vunpack.c.l.b16 %v4374
        %v4483 = vunpack.c.l.b16 %v4375
        %v4484 = vunpack.c.l.b16 %v4376
        %v4485 = vunpack.c.l.b16 %v4377
        %v4486 = vunpack.c.l.b16 %v4378
        %v4487 = vunpack.c.l.b16 %v4379
        %v4488 = vunpack.c.l.b16 %v4380
        %v4489 = vunpack.c.l.b16 %v4381
        %v4490 = vunpack.c.l.b16 %v4382
        %v4491 = vunpack.c.l.b16 %v4383
        %v4492 = vunpack.c.l.b16 %v4384
        %v4493 = vunpack.c.l.b16 %v4385
        %v4494 = vunpack.c.l.b16 %v4386
        %v4495 = vunpack.c.l.b16 %v4387
        %v4496 = vunpack.c.l.b16 %v4388
        %v4497 = vunpack.c.l.b16 %v4389
        %v4498 = vunpack.c.l.b16 %v4390
        %v4499 = vunpack.c.l.b16 %v4391
        %v4500 = vunpack.c.l.b16 %v4392
        %v4501 = vunpack.c.l.b16 %v4393
        %v4502 = vunpack.c.l.b16 %v4394
        %v4503 = vunpack.c.l.b16 %v4395
        %v4504 = vunpack.c.l.b16 %v4396
        %v4505 = vunpack.c.l.b16 %v4397
        %v4506 = vunpack.c.l.b16 %v4398
        %v4507 = vunpack.c.l.b16 %v4399
        %v4508 = vunpack.c.l.b16 %v4400
        %v4509 = vunpack.c.l.b16 %v4401
        %v4510 = vunpack.c.l.b16 %v4402
        %v4511 = vunpack.c.l.b16 %v4403
        %v4512 = vunpack.c.l.b16 %v4404
        %v4513 = vpack.c.b16 %v4466, %v4465
        %v4514 = vpack.c.b16 %v4468, %v4467
        %v4515 = vpack.c.b16 %v4470, %v4469
        %v4516 = vpack.c.b16 %v4472, %v4471
        %v4517 = vpack.c.b16 %v4474, %v4473
        %v4518 = vpack.c.b16 %v4476, %v4475
        %v4519 = vpack.c.b16 %v4478, %v4477
        %v4520 = vpack.c.b16 %v4480, %v4479
        %v4521 = vpack.c.b16 %v4482, %v4481
        %v4522 = vpack.c.b16 %v4484, %v4483
        %v4523 = vpack.c.b16 %v4486, %v4485
        %v4524 = vpack.c.b16 %v4488, %v4487
        %v4525 = vpack.c.b16 %v4490, %v4489
        %v4526 = vpack.c.b16 %v4492, %v4491
        %v4527 = vpack.c.b16 %v4494, %v4493
        %v4528 = vpack.c.b16 %v4496, %v4495
        %v4529 = vpack.c.b16 %v4498, %v4497
        %v4530 = vpack.c.b16 %v4500, %v4499
        %v4531 = vpack.c.b16 %v4502, %v4501
        %v4532 = vpack.c.b16 %v4504, %v4503
        %v4533 = vpack.c.b16 %v4506, %v4505
        %v4534 = vpack.c.b16 %v4508, %v4507
        %v4535 = vpack.c.b16 %v4510, %v4509
        %v4536 = vpack.c.b16 %v4512, %v4511
        %4561 = vmatprep.subr.bf16.mxu0 0
        %4562 = vmatpush1.bf16.msra.mxu0 %v4513
        %4563 = vmatprep.subr.bf16.mxu0 0
        %4564 = vmatpush1.bf16.msra.mxu0 %v4514
        %4565 = vmatprep.subr.bf16.mxu0 0
        %4566 = vmatpush1.bf16.msra.mxu0 %v4515
        %4567 = vmatprep.subr.bf16.mxu0 0
        %4568 = vmatpush1.bf16.msra.mxu0 %v4516
        %4569 = vmatprep.subr.bf16.mxu0 0
        %4570 = vmatpush1.bf16.msra.mxu0 %v4517
        %4571 = vmatprep.subr.bf16.mxu0 0
        %4572 = vmatpush1.bf16.msra.mxu0 %v4518
        %4573 = vmatprep.subr.bf16.mxu0 0
        %4574 = vmatpush1.bf16.msra.mxu0 %v4519
        %4575 = vmatprep.subr.bf16.mxu0 0
        %4576 = vmatpush1.bf16.msra.mxu0 %v4520
        %4577 = vmatprep.subr.bf16.mxu0 0
        %4578 = vmatpush1.bf16.msra.mxu0 %v4521
        %4579 = vmatprep.subr.bf16.mxu0 0
        %4580 = vmatpush1.bf16.msra.mxu0 %v4522
        %4581 = vmatprep.subr.bf16.mxu0 0
        %4582 = vmatpush1.bf16.msra.mxu0 %v4523
        %4583 = vmatprep.subr.bf16.mxu0 0
        %4584 = vmatpush1.bf16.msra.mxu0 %v4524
        %4585 = vmatprep.subr.bf16.mxu0 0
        %4586 = vmatpush1.bf16.msra.mxu0 %v4525
        %4587 = vmatprep.subr.bf16.mxu0 0
        %4588 = vmatpush1.bf16.msra.mxu0 %v4526
        %4589 = vmatprep.subr.bf16.mxu0 0
        %4590 = vmatpush1.bf16.msra.mxu0 %v4527
        %4591 = vmatprep.subr.bf16.mxu0 0
        %4592 = vmatpush1.bf16.msra.mxu0 %v4528
        %4593 = vmatprep.mubr.bf16.mxu0 %v4406
        %4594 = vmatmul.mubr.bf16.gmra.mrb[0].mxu0 %v4405
        %v4595 = vpop.f32.mrb[0].mxu0
        %v4596 = vadd.f32 0.0, %v4595
        %v4597 = vpop.f32.mrb[0].mxu0
        %v4598 = vpop.f32.mrb[0].mxu0
        %v4599 = vadd.f32 0.0, %v4598
        %v4600 = vpop.f32.mrb[0].mxu0
        %4601 = vmatprep.mubr.bf16.mxu0 %v4409
        %4602 = vmatmul.mubr.bf16.gmra.mrb[0].mxu0 %v4408
        %v4603 = vpop.f32.mrb[0].mxu0
        %v4604 = vadd.f32 0.0, %v4603
        %v4605 = vpop.f32.mrb[0].mxu0
        %v4606 = vpop.f32.mrb[0].mxu0
        %v4607 = vadd.f32 0.0, %v4606
        %v4608 = vpop.f32.mrb[0].mxu0
        %4609 = vmatprep.mubr.bf16.mxu0 %v4412
        %4610 = vmatmul.mubr.bf16.gmra.mrb[0].mxu0 %v4411
        %v4611 = vpop.f32.mrb[0].mxu0
        %v4612 = vadd.f32 0.0, %v4611
        %v4613 = vpop.f32.mrb[0].mxu0
        %v4614 = vpop.f32.mrb[0].mxu0
        %v4615 = vadd.f32 0.0, %v4614
        %v4616 = vpop.f32.mrb[0].mxu0
        %4617 = vmatprep.mubr.bf16.mxu0 %v4415
        %4618 = vmatmul.mubr.bf16.gmra.mrb[0].mxu0 %v4414
        %v4619 = vpop.f32.mrb[0].mxu0
        %v4620 = vadd.f32 0.0, %v4619
        %v4621 = vpop.f32.mrb[0].mxu0
        %v4622 = vpop.f32.mrb[0].mxu0
        %v4623 = vadd.f32 0.0, %v4622
        %v4624 = vpop.f32.mrb[0].mxu0
        %4625 = vdwg.mxu0
        %4626 = vmatprep.subr.bf16.mxu0 0
        %4627 = vmatpush1.bf16.msra.mxu0 %v4529
        %4628 = vmatprep.subr.bf16.mxu0 0
        %4629 = vmatpush1.bf16.msra.mxu0 %v4530
        %4630 = vmatprep.subr.bf16.mxu0 0
        %4631 = vmatpush1.bf16.msra.mxu0 %v4531
        %4632 = vmatprep.subr.bf16.mxu0 0
        %4633 = vmatpush1.bf16.msra.mxu0 %v4532
        %4634 = vmatprep.subr.bf16.mxu0 0
        %4635 = vmatpush1.bf16.msra.mxu0 %v4533
        %4636 = vmatprep.subr.bf16.mxu0 0
        %4637 = vmatpush1.bf16.msra.mxu0 %v4534
        %4638 = vmatprep.subr.bf16.mxu0 0
        %4639 = vmatpush1.bf16.msra.mxu0 %v4535
        %4640 = vmatprep.subr.bf16.mxu0 0
        %4641 = vmatpush1.bf16.msra.mxu0 %v4536
        %4642 = vmatprep.subr.bf16.mxu0 0
        %4643 = vmatpush1.bf16.msra.mxu0 0
        %4644 = vmatprep.subr.bf16.mxu0 0
        %4645 = vmatpush1.bf16.msra.mxu0 0
        %4646 = vmatprep.subr.bf16.mxu0 0
        %4647 = vmatpush1.bf16.msra.mxu0 0
        %4648 = vmatprep.subr.bf16.mxu0 0
        %4649 = vmatpush1.bf16.msra.mxu0 0
        %4650 = vmatprep.subr.bf16.mxu0 0
        %4651 = vmatpush1.bf16.msra.mxu0 0
        %4652 = vmatprep.subr.bf16.mxu0 0
        %4653 = vmatpush1.bf16.msra.mxu0 0
        %4654 = vmatprep.subr.bf16.mxu0 0
        %4655 = vmatpush1.bf16.msra.mxu0 0
        %4656 = vmatprep.subr.bf16.mxu0 0
        %4657 = vmatpush1.bf16.msra.mxu0 0
        %4658 = vmatprep.mubr.bf16.mxu0 0
        %4659 = vmatmul.mubr.bf16.gmra.mrb[0].mxu0 %v4407
        %v4660 = vpop.f32.mrb[0].mxu0
        %v4661 = vadd.f32 %v4596, %v4660
        %v4662 = vpop.f32.mrb[0].mxu0
        %v4663 = vpop.f32.mrb[0].mxu0
        %v4664 = vadd.f32 %v4599, %v4663
        %v4665 = vpop.f32.mrb[0].mxu0
        %4666 = vmatprep.mubr.bf16.mxu0 0
        %4667 = vmatmul.mubr.bf16.gmra.mrb[0].mxu0 %v4410
        %v4668 = vpop.f32.mrb[0].mxu0
        %v4669 = vadd.f32 %v4604, %v4668
        %v4670 = vpop.f32.mrb[0].mxu0
        %v4671 = vpop.f32.mrb[0].mxu0
        %v4672 = vadd.f32 %v4607, %v4671
        %v4673 = vpop.f32.mrb[0].mxu0
        %4674 = vmatprep.mubr.bf16.mxu0 0
        %4675 = vmatmul.mubr.bf16.gmra.mrb[0].mxu0 %v4413
        %v4676 = vpop.f32.mrb[0].mxu0
        %v4677 = vadd.f32 %v4612, %v4676
        %v4678 = vpop.f32.mrb[0].mxu0
        %v4679 = vpop.f32.mrb[0].mxu0
        %v4680 = vadd.f32 %v4615, %v4679
        %v4681 = vpop.f32.mrb[0].mxu0
        %4682 = vmatprep.mubr.bf16.mxu0 0
        %4683 = vmatmul.mubr.bf16.gmra.mrb[0].mxu0 %v4416
        %v4684 = vpop.f32.mrb[0].mxu0
        %v4685 = vadd.f32 %v4620, %v4684
        %v4686 = vpop.f32.mrb[0].mxu0
        %v4687 = vpop.f32.mrb[0].mxu0
        %v4688 = vadd.f32 %v4623, %v4687
        %v4689 = vpop.f32.mrb[0].mxu0
        %4690 = vdwg.mxu0
        %v4691 = vadd.f32 %v4278, %v4661
        %v4692 = vadd.f32 %v4281, %v4664
        %v4693 = vadd.f32 %v4286, %v4669
        %v4694 = vadd.f32 %v4289, %v4672
        %v4695 = vadd.f32 %v4294, %v4677
        %v4696 = vadd.f32 %v4297, %v4680
        %v4697 = vadd.f32 %v4302, %v4685
        %v4698 = vadd.f32 %v4305, %v4688
        %v4699 = vld [vmem:[%s390] ss:$2 sm:$0xff]
        %s4700 = scalar_lea.vmem %s390, 32 [#allocation4]
        %v4701 = vld [vmem:[%s4700] ss:$2 sm:$0xff]
        %s4702 = scalar_lea.vmem %s390, 64 [#allocation4]
        %v4703 = vld [vmem:[%s4702] ss:$2 sm:$0xff]
        %s4704 = scalar_lea.vmem %s390, 96 [#allocation4]
        %v4705 = vld [vmem:[%s4704] ss:$2 sm:$0xff]
        %s4706 = scalar_lea.vmem %s390, 128 [#allocation4]
        %v4707 = vld [vmem:[%s4706] ss:$2 sm:$0xff]
        %s4708 = scalar_lea.vmem %s390, 160 [#allocation4]
        %v4709 = vld [vmem:[%s4708] ss:$2 sm:$0xff]
        %s4710 = scalar_lea.vmem %s390, 192 [#allocation4]
        %v4711 = vld [vmem:[%s4710] ss:$2 sm:$0xff]
        %s4712 = scalar_lea.vmem %s390, 224 [#allocation4]
        %v4713 = vld [vmem:[%s4712] ss:$2 sm:$0xff]
        %v4714 = vld [vmem:[#allocation16] sm:$0xf]
        %v4715 = vld [vmem:[#allocation16 + $0x4] sm:$0xf]
        %v4716 = vld [vmem:[#allocation16 + $0x8] sm:$0xf]
        %v4717 = vld [vmem:[#allocation16 + $0xc] sm:$0xf]
        %v4718 = vld [vmem:[#allocation16 + $0x10] sm:$0xf]
        %v4719 = vld [vmem:[#allocation16 + $0x14] sm:$0xf]
        %v4720 = vld [vmem:[#allocation16 + $0x18] sm:$0xf]
        %v4721 = vld [vmem:[#allocation16 + $0x1c] sm:$0xf]
        %v4722 = vld [vmem:[#allocation16 + $0x20] sm:$0xf]
        %v4723 = vld [vmem:[#allocation16 + $0x24] sm:$0xf]
        %v4724 = vld [vmem:[#allocation16 + $0x28] sm:$0xf]
        %v4725 = vld [vmem:[#allocation16 + $0x2c] sm:$0xf]
        %v4726 = vld [vmem:[#allocation16 + $0x30] sm:$0xf]
        %v4727 = vld [vmem:[#allocation16 + $0x34] sm:$0xf]
        %v4728 = vld [vmem:[#allocation16 + $0x38] sm:$0xf]
        %v4729 = vld [vmem:[#allocation16 + $0x3c] sm:$0xf]
        %v4730 = vpack.c.bf16 %v4701, %v4699
        %v4731 = vpack.c.bf16 %v4705, %v4703
        %v4732 = vpack.c.bf16 %v4709, %v4707
        %v4733 = vpack.c.bf16 %v4713, %v4711
        %v4734 = vld [vmem:[#allocation18] sm:$0x1]
        %v4736 = vlaneseq
        %v4737 = vshrl.u32 %v4736, 7
        %v4738 = vsub.s32 0, %v4737
        %v4739 = vrot.slane %v4734, %v4738
        %v4757 = vunpack.c.l.b16 %v4714
        %v4758 = vunpack.c.l.b16 %v4715
        %v4759 = vunpack.c.l.b16 %v4716
        %v4760 = vunpack.c.l.b16 %v4717
        %v4761 = vunpack.c.l.b16 %v4718
        %v4762 = vunpack.c.l.b16 %v4719
        %v4763 = vunpack.c.l.b16 %v4720
        %v4764 = vunpack.c.l.b16 %v4721
        %v4765 = vunpack.c.l.b16 %v4722
        %v4766 = vunpack.c.l.b16 %v4723
        %v4767 = vunpack.c.l.b16 %v4724
        %v4768 = vunpack.c.l.b16 %v4725
        %v4769 = vunpack.c.l.b16 %v4726
        %v4770 = vunpack.c.l.b16 %v4727
        %v4771 = vunpack.c.l.b16 %v4728
        %v4772 = vunpack.c.l.b16 %v4729
        %v4773 = vpack.c.b16 %v4758, %v4757
        %v4774 = vpack.c.b16 %v4760, %v4759
        %v4775 = vpack.c.b16 %v4762, %v4761
        %v4776 = vpack.c.b16 %v4764, %v4763
        %v4777 = vpack.c.b16 %v4766, %v4765
        %v4778 = vpack.c.b16 %v4768, %v4767
        %v4779 = vpack.c.b16 %v4770, %v4769
        %v4780 = vpack.c.b16 %v4772, %v4771
        %4789 = vmatprep.subr.bf16.mxu0 0
        %4790 = vmatpush1.bf16.msra.mxu0 %v4773
        %4791 = vmatprep.subr.bf16.mxu0 0
        %4792 = vmatpush1.bf16.msra.mxu0 %v4774
        %4793 = vmatprep.subr.bf16.mxu0 0
        %4794 = vmatpush1.bf16.msra.mxu0 %v4775
        %4795 = vmatprep.subr.bf16.mxu0 0
        %4796 = vmatpush1.bf16.msra.mxu0 %v4776
        %4797 = vmatprep.subr.bf16.mxu0 0
        %4798 = vmatpush1.bf16.msra.mxu0 %v4777
        %4799 = vmatprep.subr.bf16.mxu0 0
        %4800 = vmatpush1.bf16.msra.mxu0 %v4778
        %4801 = vmatprep.subr.bf16.mxu0 0
        %4802 = vmatpush1.bf16.msra.mxu0 %v4779
        %4803 = vmatprep.subr.bf16.mxu0 0
        %4804 = vmatpush1.bf16.msra.mxu0 %v4780
        %4805 = vmatprep.subr.bf16.mxu0 0
        %4806 = vmatpush1.bf16.msra.mxu0 0
        %4807 = vmatprep.subr.bf16.mxu0 0
        %4808 = vmatpush1.bf16.msra.mxu0 0
        %4809 = vmatprep.subr.bf16.mxu0 0
        %4810 = vmatpush1.bf16.msra.mxu0 0
        %4811 = vmatprep.subr.bf16.mxu0 0
        %4812 = vmatpush1.bf16.msra.mxu0 0
        %4813 = vmatprep.subr.bf16.mxu0 0
        %4814 = vmatpush1.bf16.msra.mxu0 0
        %4815 = vmatprep.subr.bf16.mxu0 0
        %4816 = vmatpush1.bf16.msra.mxu0 0
        %4817 = vmatprep.subr.bf16.mxu0 0
        %4818 = vmatpush1.bf16.msra.mxu0 0
        %4819 = vmatprep.subr.bf16.mxu0 0
        %4820 = vmatpush1.bf16.msra.mxu0 0
        %4821 = vmatprep.mubr.bf16.mxu0 0
        %4822 = vmatmul.mubr.bf16.gmra.mrb[0].mxu0 %v4730
        %v4823 = vpop.f32.mrb[0].mxu0
        %v4824 = vadd.f32 %v4739, %v4823
        %v4825 = vpop.f32.mrb[0].mxu0
        %v4826 = vpop.f32.mrb[0].mxu0
        %v4827 = vadd.f32 %v4739, %v4826
        %v4828 = vpop.f32.mrb[0].mxu0
        %4829 = vmatprep.mubr.bf16.mxu0 0
        %4830 = vmatmul.mubr.bf16.gmra.mrb[0].mxu0 %v4731
        %v4831 = vpop.f32.mrb[0].mxu0
        %v4832 = vadd.f32 %v4739, %v4831
        %v4833 = vpop.f32.mrb[0].mxu0
        %v4834 = vpop.f32.mrb[0].mxu0
        %v4835 = vadd.f32 %v4739, %v4834
        %v4836 = vpop.f32.mrb[0].mxu0
        %4837 = vmatprep.mubr.bf16.mxu0 0
        %4838 = vmatmul.mubr.bf16.gmra.mrb[0].mxu0 %v4732
        %v4839 = vpop.f32.mrb[0].mxu0
        %v4840 = vadd.f32 %v4739, %v4839
        %v4841 = vpop.f32.mrb[0].mxu0
        %v4842 = vpop.f32.mrb[0].mxu0
        %v4843 = vadd.f32 %v4739, %v4842
        %v4844 = vpop.f32.mrb[0].mxu0
        %4845 = vmatprep.mubr.bf16.mxu0 0
        %4846 = vmatmul.mubr.bf16.gmra.mrb[0].mxu0 %v4733
        %v4847 = vpop.f32.mrb[0].mxu0
        %v4848 = vadd.f32 %v4739, %v4847
        %v4849 = vpop.f32.mrb[0].mxu0
        %v4850 = vpop.f32.mrb[0].mxu0
        %v4851 = vadd.f32 %v4739, %v4850
        %v4852 = vpop.f32.mrb[0].mxu0
        %4853 = vdwg.mxu0
        %v4854 = vadd.f32 %v4691, %v4824
        %v4855 = vadd.f32 %v4692, %v4827
        %v4856 = vadd.f32 %v4693, %v4832
        %v4857 = vadd.f32 %v4694, %v4835
        %v4858 = vadd.f32 %v4695, %v4840
        %v4859 = vadd.f32 %v4696, %v4843
        %v4860 = vadd.f32 %v4697, %v4848
        %v4861 = vadd.f32 %v4698, %v4851
        %4862 = vst [vmem:[%s456] sm:$0xff] %v4854
        %4863 = vst [vmem:[%s456 + $0x8] sm:$0xff] %v4855
        %4864 = vst [vmem:[%s456 + $0x10] sm:$0xff] %v4856
        %4865 = vst [vmem:[%s456 + $0x18] sm:$0xff] %v4857
        %4866 = vst [vmem:[%s456 + $0x20] sm:$0xff] %v4858
        %4867 = vst [vmem:[%s456 + $0x28] sm:$0xff] %v4859
        %4868 = vst [vmem:[%s456 + $0x30] sm:$0xff] %v4860
        %4869 = vst [vmem:[%s456 + $0x38] sm:$0xff] %v4861
        %s4870 = sand.u32 %s232, 1
        %s4871 = scalar_lea.sflag [#allocation6], %s4870
        %s4872 = sand.u32 %s232, 1
        %s4873 = smul.addr %s4872, 64
        %s4874 = scalar_lea.vmem [#allocation19], %s4873
        // Predicated region
        $region93: #{tpu_custom_call.1} parent=55 // pred_check
          %p4875 = pneg %p242
        $region94: #{tpu_custom_call.1} parent=55 // pred_check_branch
          %4877 = sbr.rel (%p4875) target = $region96
        $region95: #{tpu_custom_call.1} parent=55 // pred_region
          %s4879 = ssub.s32 1024, 1024
          %4880 = vsyncadd %s4871, %s4879
          %s4881 = smul.addr %s30, 8
          %s4882 = smul.addr %s4881, 128
          %s4883 = scalar_lea.hbm %s9, %s4882
          %s4884 = sshll.u32 %s4874, 4
          %s4885 = int_to_ptr.vmem [resolvable:$true] %s4884
          %4890 = dma.vmem_to_hbm [thread:$0]  %s4885, 1024, %s4883, %s4871, 128, 128, 8
        $region96: #{tpu_custom_call.1} parent=55 // pred_fallthru
          _
      $region56: #{tpu_custom_call.1} parent=5 // pred_fallthru
        _
      %p4891 = scmp.le.s32.totalorder 2, %s25
      // Predicated region
      $region97: #{tpu_custom_call.1} parent=5 // pred_check
        %p4892 = pneg %p4891
      $region98: #{tpu_custom_call.1} parent=5 // pred_check_branch
        %4894 = sbr.rel (%p4892) target = $region100
      $region99: #{tpu_custom_call.1} parent=5 // pred_region
        %s4895 = ssub.s32 %s25, 2
        // Predicated region
        $region101: #{tpu_custom_call.1} parent=99 // pred_check
          %p4896 = pneg %p248
        $region102: #{tpu_custom_call.1} parent=99 // pred_check_branch
          %4898 = sbr.rel (%p4896) target = $region104
        $region103: #{tpu_custom_call.1} parent=99 // pred_region
          %s4899 = sand.u32 %s233, 1
          %s4900 = scalar_lea.sflag [#allocation6], %s4899
          %s4901 = sand.u32 %s233, 1
          %s4902 = smul.addr %s4901, 64
          %s4903 = scalar_lea.vmem [#allocation19], %s4902
          %4904 = dma.done %s4900, 1024
        $region104: #{tpu_custom_call.1} parent=99 // pred_fallthru
          _
      $region100: #{tpu_custom_call.1} parent=5 // pred_fallthru
        _
    $region6: #{tpu_custom_call.1} parent=1 // loop_footer
      %s29 = sadd.s32 1, %s25
    $region7: #{tpu_custom_call.1} parent=1 // loop_footer_branch
      %24 = sbr.rel target = $region3
    $region8: #{tpu_custom_call.1} parent=1 // loop_exit
      _
    %4905 = vsyncpa [#allocation5], 1
    %s4906 = scalar_lea.sflag [#allocation5], 1
    %4907 = vsyncpa %s4906, 1
    %4908 = vsyncpa [#allocation8], 1
    %4909 = vsyncpa [#allocation11], 1
    %4910 = vsyncpa [#allocation14], 1
    %4911 = vsyncpa [#allocation17], 1
    %4912 = vsyncpa [#allocation6], 1
    %s4913 = scalar_lea.sflag [#allocation6], 1
    %4914 = vsyncpa %s4913, 1

</llo_original>
